<compile_context>
chip_gen: v7x
topology: tpu7x:2x2x1
jax: 0.10.0
libtpu: 0.0.40
codegen_flags: <defaults>
</compile_context>

<pallas_src>
import functools

import jax
import jax.numpy as jnp
import numpy as np
from jax import lax
from jax.experimental import pallas as pl
from jax.experimental.pallas import tpu as pltpu

ROUTING_ITERATIONS = 3


def digitcaps_kernel(u_ref, w_ref, o_ref, *, valid_p):
    # u_ref: (TB, Ci, Pp)      batch tile of capsule inputs, route nodes on the lane axis
    # w_ref: (C, Ci, Co, Pp)   full weight tensor, resident in VMEM (constant index_map)
    # o_ref: (TB, 1, Cout_pad) lane-dense output slab (Cout_pad = round_up(C*Co, 128))
    TB, Ci, Pp = u_ref.shape
    C, _, Co, _ = w_ref.shape
    _, _, Cout_pad = o_ref.shape

    u = u_ref[...].astype(jnp.float32)                               # (TB, Ci, Pp)

    full_p = (valid_p == Pp)
    if not full_p:
        p_mask = lax.broadcasted_iota(jnp.int32, (1, 1, Pp), 2) < valid_p
    inv_p = jnp.float32(1.0 / valid_p)

    def squash(s_j):
        # v = s * sqrt(|s|^2) / (1 + |s|^2)  ==  (|s|^2/(1+|s|^2)) * s / sqrt(|s|^2)
        sqn = jnp.sum(s_j * s_j, axis=1, keepdims=True)              # (TB, 1, 1)
        return s_j * (jnp.sqrt(sqn) / (1.0 + sqn))

    outs = []
    for c in range(C):
        # u_hat[b, o, p] = sum_i u[b, i, p] * W[c, i, o, p]
        # Accumulate over the tiny Ci axis; only a (TB, Co, Pp) tile stays live.
        u_hat = jnp.zeros((TB, Co, Pp), jnp.float32)
        for i in range(Ci):
            u_hat = u_hat + (u[:, i][:, None, :] *
                             w_ref[c, i].astype(jnp.float32)[None, :, :])

        # --- routing iteration 0 (peeled): b_ij == 0 => softmax is exactly uniform.
        # Padded lanes of u_hat are zero, so the plain sum * 1/valid_p is exact.
        s_j = jnp.sum(u_hat, axis=-1, keepdims=True) * inv_p        # (TB, Co, 1)
        v = squash(s_j)                                              # (TB, Co, 1)

        # b_ij is constant along Co (the update adds a_ij broadcast over Co), so carry
        # it as (TB, 1, Pp).  After iteration 0, b_ij == a_ij of that iteration.
        b_ij = jnp.sum(u_hat * v, axis=1, keepdims=True)             # (TB, 1, Pp)

        for it in range(1, ROUTING_ITERATIONS):
            if full_p:
                m = jnp.max(b_ij, axis=-1, keepdims=True)            # (TB, 1, 1)
                e = jnp.exp(b_ij - m)                                # (TB, 1, Pp)
            else:
                m = jnp.max(jnp.where(p_mask, b_ij, -jnp.inf),
                            axis=-1, keepdims=True)
                e = jnp.where(p_mask, jnp.exp(b_ij - m), 0.0)
            sum_e = jnp.sum(e, axis=-1, keepdims=True)               # (TB, 1, 1)
            # c_ij is only ever consumed by s_j, so fuse: divide the (TB, Co, 1) result
            # instead of normalizing a (TB, Co, Pp) tile.
            s_j = jnp.sum(e * u_hat, axis=-1, keepdims=True) / sum_e  # (TB, Co, 1)
            v = squash(s_j)
            if it < ROUTING_ITERATIONS - 1:
                b_ij = b_ij + jnp.sum(u_hat * v, axis=1, keepdims=True)

        outs.append(v[:, :, 0])                                      # (TB, Co)

    # Single lane-dense, 128-multiple-wide store of the whole output slab.
    pad_w = Cout_pad - C * Co
    if pad_w:
        outs.append(jnp.zeros((TB, pad_w), jnp.float32))
    o_ref[...] = jnp.concatenate(outs, axis=-1)[:, None, :].astype(o_ref.dtype)


def _round_up(x, m):
    return (x + m - 1) // m * m


def _pick_batch_tile(B, *, max_tb=8, min_tiles=2):
    # Bounded tile (keeps VMEM / vreg pressure deterministic for any B) and at least
    # `min_tiles` grid steps when B >= 2 so v7x's 2 TensorCores both get work.
    if B <= 1:
        return 1
    return max(1, min(max_tb, pl.cdiv(B, min_tiles)))


def prepare_digitcaps_weights(W, dtype=jnp.float32):
    """One-time parameter re-layout: (C, P, Ci, Co) -> (C, Ci, Co, Pp), route nodes on
    the 128-lane axis, zero-padded to a multiple of 128.  Use dtype=jnp.bfloat16 on
    v6e / v7x (NOT v5e) to halve weight DMA; the kernel accumulates in f32 regardless."""
    C, P, Ci, Co = W.shape
    Pp = _round_up(P, 128)
    W_t = jnp.transpose(W, (0, 2, 3, 1))                             # (C, Ci, Co, P)
    W_t = jnp.pad(W_t, ((0, 0), (0, 0), (0, 0), (0, Pp - P)))
    return W_t.astype(dtype)


def digitcaps_forward(u, W_t):
    """u: (B, P, Ci); W_t: (C, Ci, Co, Pp) from prepare_digitcaps_weights.
    Returns (C, B, 1, 1, Co), matching the PyTorch DigitCaps.forward output."""
    B, P, Ci = u.shape
    C, Ci2, Co, Pp = W_t.shape
    assert Ci == Ci2 and Pp == _round_up(P, 128)

    TB = _pick_batch_tile(B)
    n_tiles = pl.cdiv(B, TB)
    Bp = TB * n_tiles

    Cout = C * Co
    Cout_pad = _round_up(Cout, 128)

    # Lane-dense input layout: (B, Ci, P) zero-padded to (Bp, Ci, Pp).
    # TODO(synk): have the producing capsule layer emit u directly in (B, Ci, P) layout
    # to kill this per-call transpose/pad HBM round trip.
    u_t = jnp.transpose(u, (0, 2, 1))
    u_t = jnp.pad(u_t, ((0, Bp - B), (0, 0), (0, Pp - P))).astype(W_t.dtype)

    kern = functools.partial(digitcaps_kernel, valid_p=P)

    def build(w_single_buffered):
        w_kwargs = (
            {"pipeline_mode": pl.Buffered(buffer_count=1)} if w_single_buffered else {}
        )
        return pl.pallas_call(
            kern,
            out_shape=jax.ShapeDtypeStruct((Bp, 1, Cout_pad), jnp.float32),
            grid_spec=pltpu.PrefetchScalarGridSpec(
                num_scalar_prefetch=0,
                grid=(n_tiles,),   # one grid step per batch tile; all classes inside
                in_specs=[
                    pl.BlockSpec((TB, Ci, Pp), lambda b: (b, 0, 0)),
                    # Constant index_map -> W stays resident in VMEM, never re-DMA'd;
                    # single-buffered so it is not pointlessly double-allocated.
                    pl.BlockSpec((C, Ci, Co, Pp), lambda b: (0, 0, 0, 0), **w_kwargs),
                ],
                out_specs=pl.BlockSpec((TB, 1, Cout_pad), lambda b: (b, 0, 0)),
            ),
            compiler_params=pltpu.CompilerParams(
                # Batch tiles are independent -> v7x shards them across its 2 TCs.
                dimension_semantics=("parallel",)),
        )

    try:
        out = build(True)(u_t, W_t)
    except Exception:
        # Fallback for JAX versions without single-buffered pipeline_mode support.
        out = build(False)(u_t, W_t)

    out = out[:B, 0, :Cout]                                          # (B, C*Co)
    return jnp.transpose(out.reshape(B, C, Co), (1, 0, 2)).reshape(C, B, 1, 1, Co)


def digitcaps_reference(u, W):
    """Pure-JAX transcription of the PyTorch forward (correctness check)."""
    u5 = u[None, :, :, None, :]                      # (1, B, P, 1, Ci)
    W5 = W[:, None, :, :, :]                         # (C, 1, P, Ci, Co)
    u_hat = jnp.matmul(u5, W5)                       # (C, B, P, 1, Co)
    b_ij = jnp.zeros_like(u_hat)
    v_j = None
    for it in range(ROUTING_ITERATIONS):
        c_ij = jax.nn.softmax(b_ij, axis=2)
        s_j = jnp.sum(c_ij * u_hat, axis=2, keepdims=True)
        sqn = jnp.sum(s_j ** 2, axis=-1, keepdims=True)
        v_j = (sqn / (1.0 + sqn)) * s_j / jnp.sqrt(sqn)
        if it < ROUTING_ITERATIONS - 1:
            a_ij = jnp.sum(u_hat * v_j, axis=-1, keepdims=True)
            b_ij = b_ij + a_ij
    return v_j


if __name__ == "__main__":
    # Small, shape-consistent config:
    #   num_classes=4, in_channels=8, out_channels=16,
    #   previous_out_channels=4, cropped_size=4  ->  P = 4*4*4 = 64 (padded to 128 lanes)
    num_classes = 4
    in_channels = 8
    out_channels = 16
    previous_out_channels = 4
    cropped_size = 4
    P = previous_out_channels * cropped_size * cropped_size
    batch = 2

    key = jax.random.PRNGKey(0)
    k_w, k_u = jax.random.split(key)
    W = jax.random.normal(k_w, (num_classes, P, in_channels, out_channels), jnp.float32)
    u = jax.random.normal(k_u, (batch, P, in_channels), jnp.float32) * 0.1

    W_t = prepare_digitcaps_weights(W)   # one-time parameter re-layout (hoisted)
    v = digitcaps_forward(u, W_t)
    jax.block_until_ready(v)

    v_ref = digitcaps_reference(u, W)
    np.testing.assert_allclose(np.asarray(v), np.asarray(v_ref), rtol=5e-4, atol=1e-5)

    print("KERNEL_OK")
</pallas_src>

<mosaic_0001>
module attributes {stable_mosaic.version = 11 : i64} {
  func.func @digitcaps_kernel(%arg0: i32, %arg1: memref<1x8x128xf32, #tpu.memory_space<vmem>>, %arg2: memref<4x8x16x128xf32, #tpu.memory_space<vmem>>, %arg3: memref<1x1x128xf32, #tpu.memory_space<vmem>>) attributes {dimension_semantics = [#tpu.dimension_semantics<parallel>], iteration_bounds = array<i64: 2>, scalar_prefetch = 0 : i64, scratch_operands = 0 : i64, tpu.core_type = #tpu.core_type<tc>, window_params = [{transform_indices = @transform_0, window_bounds = array<i64: 1, 8, 128>}, {pipeline_mode = #tpu.pipeline_mode<synchronous>, transform_indices = @transform_1, window_bounds = array<i64: 4, 8, 16, 128>}, {transform_indices = @transform_2, window_bounds = array<i64: 1, 1, 128>}]} {
    %c0 = arith.constant 0 : index
    %c0_0 = arith.constant 0 : index
    %c0_1 = arith.constant 0 : index
    %0 = vector.load %arg1[%c0, %c0_0, %c0_1] : memref<1x8x128xf32, #tpu.memory_space<vmem>>, vector<1x8x128xf32>
    %1 = tpu.iota {dimensions = array<i32: 2>} : vector<1x1x128xi32>
    %c64_i32 = arith.constant 64 : i32
    %2 = vector.broadcast %c64_i32 : i32 to vector<1x1x128xi32>
    %3 = arith.cmpi slt, %1, %2 : vector<1x1x128xi32>
    %cst = arith.constant 0.000000e+00 : f32
    %4 = vector.broadcast %cst : f32 to vector<1x16x128xf32>
    %5 = vector.extract_strided_slice %0 {offsets = [0, 0, 0], sizes = [1, 1, 128], strides = [1, 1, 1]} : vector<1x8x128xf32> to vector<1x1x128xf32>
    %6 = vector.shape_cast %5 : vector<1x1x128xf32> to vector<1x128xf32>
    %7 = vector.shape_cast %6 : vector<1x128xf32> to vector<1x1x128xf32>
    %c0_2 = arith.constant 0 : index
    %c0_3 = arith.constant 0 : index
    %c0_4 = arith.constant 0 : index
    %c0_5 = arith.constant 0 : index
    %8 = vector.load %arg2[%c0_2, %c0_3, %c0_4, %c0_5] : memref<4x8x16x128xf32, #tpu.memory_space<vmem>>, vector<1x1x16x128xf32>
    %9 = vector.shape_cast %8 : vector<1x1x16x128xf32> to vector<16x128xf32>
    %10 = vector.shape_cast %9 : vector<16x128xf32> to vector<1x16x128xf32>
    %11 = vector.broadcast %7 : vector<1x1x128xf32> to vector<1x16x128xf32>
    %12 = arith.mulf %11, %10 : vector<1x16x128xf32>
    %13 = arith.addf %4, %12 : vector<1x16x128xf32>
    %14 = vector.extract_strided_slice %0 {offsets = [0, 1, 0], sizes = [1, 1, 128], strides = [1, 1, 1]} : vector<1x8x128xf32> to vector<1x1x128xf32>
    %15 = vector.shape_cast %14 : vector<1x1x128xf32> to vector<1x128xf32>
    %16 = vector.shape_cast %15 : vector<1x128xf32> to vector<1x1x128xf32>
    %c0_6 = arith.constant 0 : index
    %c1 = arith.constant 1 : index
    %c0_7 = arith.constant 0 : index
    %c0_8 = arith.constant 0 : index
    %17 = vector.load %arg2[%c0_6, %c1, %c0_7, %c0_8] : memref<4x8x16x128xf32, #tpu.memory_space<vmem>>, vector<1x1x16x128xf32>
    %18 = vector.shape_cast %17 : vector<1x1x16x128xf32> to vector<16x128xf32>
    %19 = vector.shape_cast %18 : vector<16x128xf32> to vector<1x16x128xf32>
    %20 = vector.broadcast %16 : vector<1x1x128xf32> to vector<1x16x128xf32>
    %21 = arith.mulf %20, %19 : vector<1x16x128xf32>
    %22 = arith.addf %13, %21 : vector<1x16x128xf32>
    %23 = vector.extract_strided_slice %0 {offsets = [0, 2, 0], sizes = [1, 1, 128], strides = [1, 1, 1]} : vector<1x8x128xf32> to vector<1x1x128xf32>
    %24 = vector.shape_cast %23 : vector<1x1x128xf32> to vector<1x128xf32>
    %25 = vector.shape_cast %24 : vector<1x128xf32> to vector<1x1x128xf32>
    %c0_9 = arith.constant 0 : index
    %c2 = arith.constant 2 : index
    %c0_10 = arith.constant 0 : index
    %c0_11 = arith.constant 0 : index
    %26 = vector.load %arg2[%c0_9, %c2, %c0_10, %c0_11] : memref<4x8x16x128xf32, #tpu.memory_space<vmem>>, vector<1x1x16x128xf32>
    %27 = vector.shape_cast %26 : vector<1x1x16x128xf32> to vector<16x128xf32>
    %28 = vector.shape_cast %27 : vector<16x128xf32> to vector<1x16x128xf32>
    %29 = vector.broadcast %25 : vector<1x1x128xf32> to vector<1x16x128xf32>
    %30 = arith.mulf %29, %28 : vector<1x16x128xf32>
    %31 = arith.addf %22, %30 : vector<1x16x128xf32>
    %32 = vector.extract_strided_slice %0 {offsets = [0, 3, 0], sizes = [1, 1, 128], strides = [1, 1, 1]} : vector<1x8x128xf32> to vector<1x1x128xf32>
    %33 = vector.shape_cast %32 : vector<1x1x128xf32> to vector<1x128xf32>
    %34 = vector.shape_cast %33 : vector<1x128xf32> to vector<1x1x128xf32>
    %c0_12 = arith.constant 0 : index
    %c3 = arith.constant 3 : index
    %c0_13 = arith.constant 0 : index
    %c0_14 = arith.constant 0 : index
    %35 = vector.load %arg2[%c0_12, %c3, %c0_13, %c0_14] : memref<4x8x16x128xf32, #tpu.memory_space<vmem>>, vector<1x1x16x128xf32>
    %36 = vector.shape_cast %35 : vector<1x1x16x128xf32> to vector<16x128xf32>
    %37 = vector.shape_cast %36 : vector<16x128xf32> to vector<1x16x128xf32>
    %38 = vector.broadcast %34 : vector<1x1x128xf32> to vector<1x16x128xf32>
    %39 = arith.mulf %38, %37 : vector<1x16x128xf32>
    %40 = arith.addf %31, %39 : vector<1x16x128xf32>
    %41 = vector.extract_strided_slice %0 {offsets = [0, 4, 0], sizes = [1, 1, 128], strides = [1, 1, 1]} : vector<1x8x128xf32> to vector<1x1x128xf32>
    %42 = vector.shape_cast %41 : vector<1x1x128xf32> to vector<1x128xf32>
    %43 = vector.shape_cast %42 : vector<1x128xf32> to vector<1x1x128xf32>
    %c0_15 = arith.constant 0 : index
    %c4 = arith.constant 4 : index
    %c0_16 = arith.constant 0 : index
    %c0_17 = arith.constant 0 : index
    %44 = vector.load %arg2[%c0_15, %c4, %c0_16, %c0_17] : memref<4x8x16x128xf32, #tpu.memory_space<vmem>>, vector<1x1x16x128xf32>
    %45 = vector.shape_cast %44 : vector<1x1x16x128xf32> to vector<16x128xf32>
    %46 = vector.shape_cast %45 : vector<16x128xf32> to vector<1x16x128xf32>
    %47 = vector.broadcast %43 : vector<1x1x128xf32> to vector<1x16x128xf32>
    %48 = arith.mulf %47, %46 : vector<1x16x128xf32>
    %49 = arith.addf %40, %48 : vector<1x16x128xf32>
    %50 = vector.extract_strided_slice %0 {offsets = [0, 5, 0], sizes = [1, 1, 128], strides = [1, 1, 1]} : vector<1x8x128xf32> to vector<1x1x128xf32>
    %51 = vector.shape_cast %50 : vector<1x1x128xf32> to vector<1x128xf32>
    %52 = vector.shape_cast %51 : vector<1x128xf32> to vector<1x1x128xf32>
    %c0_18 = arith.constant 0 : index
    %c5 = arith.constant 5 : index
    %c0_19 = arith.constant 0 : index
    %c0_20 = arith.constant 0 : index
    %53 = vector.load %arg2[%c0_18, %c5, %c0_19, %c0_20] : memref<4x8x16x128xf32, #tpu.memory_space<vmem>>, vector<1x1x16x128xf32>
    %54 = vector.shape_cast %53 : vector<1x1x16x128xf32> to vector<16x128xf32>
    %55 = vector.shape_cast %54 : vector<16x128xf32> to vector<1x16x128xf32>
    %56 = vector.broadcast %52 : vector<1x1x128xf32> to vector<1x16x128xf32>
    %57 = arith.mulf %56, %55 : vector<1x16x128xf32>
    %58 = arith.addf %49, %57 : vector<1x16x128xf32>
    %59 = vector.extract_strided_slice %0 {offsets = [0, 6, 0], sizes = [1, 1, 128], strides = [1, 1, 1]} : vector<1x8x128xf32> to vector<1x1x128xf32>
    %60 = vector.shape_cast %59 : vector<1x1x128xf32> to vector<1x128xf32>
    %61 = vector.shape_cast %60 : vector<1x128xf32> to vector<1x1x128xf32>
    %c0_21 = arith.constant 0 : index
    %c6 = arith.constant 6 : index
    %c0_22 = arith.constant 0 : index
    %c0_23 = arith.constant 0 : index
    %62 = vector.load %arg2[%c0_21, %c6, %c0_22, %c0_23] : memref<4x8x16x128xf32, #tpu.memory_space<vmem>>, vector<1x1x16x128xf32>
    %63 = vector.shape_cast %62 : vector<1x1x16x128xf32> to vector<16x128xf32>
    %64 = vector.shape_cast %63 : vector<16x128xf32> to vector<1x16x128xf32>
    %65 = vector.broadcast %61 : vector<1x1x128xf32> to vector<1x16x128xf32>
    %66 = arith.mulf %65, %64 : vector<1x16x128xf32>
    %67 = arith.addf %58, %66 : vector<1x16x128xf32>
    %68 = vector.extract_strided_slice %0 {offsets = [0, 7, 0], sizes = [1, 1, 128], strides = [1, 1, 1]} : vector<1x8x128xf32> to vector<1x1x128xf32>
    %69 = vector.shape_cast %68 : vector<1x1x128xf32> to vector<1x128xf32>
    %70 = vector.shape_cast %69 : vector<1x128xf32> to vector<1x1x128xf32>
    %c0_24 = arith.constant 0 : index
    %c7 = arith.constant 7 : index
    %c0_25 = arith.constant 0 : index
    %c0_26 = arith.constant 0 : index
    %71 = vector.load %arg2[%c0_24, %c7, %c0_25, %c0_26] : memref<4x8x16x128xf32, #tpu.memory_space<vmem>>, vector<1x1x16x128xf32>
    %72 = vector.shape_cast %71 : vector<1x1x16x128xf32> to vector<16x128xf32>
    %73 = vector.shape_cast %72 : vector<16x128xf32> to vector<1x16x128xf32>
    %74 = vector.broadcast %70 : vector<1x1x128xf32> to vector<1x16x128xf32>
    %75 = arith.mulf %74, %73 : vector<1x16x128xf32>
    %76 = arith.addf %67, %75 : vector<1x16x128xf32>
    %cst_27 = arith.constant dense<0.000000e+00> : vector<1x16xf32>
    %77 = vector.multi_reduction <add>, %76, %cst_27 [2] : vector<1x16x128xf32> to vector<1x16xf32>
    %78 = vector.shape_cast %77 : vector<1x16xf32> to vector<1x16x1xf32>
    %cst_28 = arith.constant 1.562500e-02 : f32
    %79 = vector.broadcast %cst_28 : f32 to vector<1x16x1xf32>
    %80 = arith.mulf %78, %79 : vector<1x16x1xf32>
    %81 = arith.mulf %80, %80 : vector<1x16x1xf32>
    %cst_29 = arith.constant dense<0.000000e+00> : vector<1x1xf32>
    %82 = vector.multi_reduction <add>, %81, %cst_29 [1] : vector<1x16x1xf32> to vector<1x1xf32>
    %83 = vector.shape_cast %82 : vector<1x1xf32> to vector<1x1x1xf32>
    %84 = math.sqrt %83 : vector<1x1x1xf32>
    %cst_30 = arith.constant 1.000000e+00 : f32
    %85 = vector.broadcast %cst_30 : f32 to vector<1x1x1xf32>
    %86 = arith.addf %85, %83 : vector<1x1x1xf32>
    %87 = arith.divf %84, %86 : vector<1x1x1xf32>
    %88 = vector.broadcast %87 : vector<1x1x1xf32> to vector<1x16x1xf32>
    %89 = arith.mulf %80, %88 : vector<1x16x1xf32>
    %90 = vector.broadcast %89 : vector<1x16x1xf32> to vector<1x16x128xf32>
    %91 = arith.mulf %76, %90 : vector<1x16x128xf32>
    %cst_31 = arith.constant dense<0.000000e+00> : vector<1x128xf32>
    %92 = vector.multi_reduction <add>, %91, %cst_31 [1] : vector<1x16x128xf32> to vector<1x128xf32>
    %93 = vector.shape_cast %92 : vector<1x128xf32> to vector<1x1x128xf32>
    %cst_32 = arith.constant 0xFF800000 : f32
    %94 = vector.broadcast %cst_32 : f32 to vector<1x1x128xf32>
    %95 = arith.select %3, %93, %94 : vector<1x1x128xi1>, vector<1x1x128xf32>
    %cst_33 = arith.constant dense<0xFF800000> : vector<1x1xf32>
    %96 = vector.multi_reduction <maximumf>, %95, %cst_33 [2] : vector<1x1x128xf32> to vector<1x1xf32>
    %97 = vector.shape_cast %96 : vector<1x1xf32> to vector<1x1x1xf32>
    %98 = vector.broadcast %97 : vector<1x1x1xf32> to vector<1x1x128xf32>
    %99 = arith.subf %93, %98 : vector<1x1x128xf32>
    %100 = math.exp %99 : vector<1x1x128xf32>
    %cst_34 = arith.constant 0.000000e+00 : f32
    %101 = vector.broadcast %cst_34 : f32 to vector<1x1x128xf32>
    %102 = arith.select %3, %100, %101 : vector<1x1x128xi1>, vector<1x1x128xf32>
    %cst_35 = arith.constant dense<0.000000e+00> : vector<1x1xf32>
    %103 = vector.multi_reduction <add>, %102, %cst_35 [2] : vector<1x1x128xf32> to vector<1x1xf32>
    %104 = vector.shape_cast %103 : vector<1x1xf32> to vector<1x1x1xf32>
    %105 = vector.broadcast %102 : vector<1x1x128xf32> to vector<1x16x128xf32>
    %106 = arith.mulf %105, %76 : vector<1x16x128xf32>
    %cst_36 = arith.constant dense<0.000000e+00> : vector<1x16xf32>
    %107 = vector.multi_reduction <add>, %106, %cst_36 [2] : vector<1x16x128xf32> to vector<1x16xf32>
    %108 = vector.shape_cast %107 : vector<1x16xf32> to vector<1x16x1xf32>
    %109 = vector.broadcast %104 : vector<1x1x1xf32> to vector<1x16x1xf32>
    %110 = arith.divf %108, %109 : vector<1x16x1xf32>
    %111 = arith.mulf %110, %110 : vector<1x16x1xf32>
    %cst_37 = arith.constant dense<0.000000e+00> : vector<1x1xf32>
    %112 = vector.multi_reduction <add>, %111, %cst_37 [1] : vector<1x16x1xf32> to vector<1x1xf32>
    %113 = vector.shape_cast %112 : vector<1x1xf32> to vector<1x1x1xf32>
    %114 = math.sqrt %113 : vector<1x1x1xf32>
    %cst_38 = arith.constant 1.000000e+00 : f32
    %115 = vector.broadcast %cst_38 : f32 to vector<1x1x1xf32>
    %116 = arith.addf %115, %113 : vector<1x1x1xf32>
    %117 = arith.divf %114, %116 : vector<1x1x1xf32>
    %118 = vector.broadcast %117 : vector<1x1x1xf32> to vector<1x16x1xf32>
    %119 = arith.mulf %110, %118 : vector<1x16x1xf32>
    %120 = vector.broadcast %119 : vector<1x16x1xf32> to vector<1x16x128xf32>
    %121 = arith.mulf %76, %120 : vector<1x16x128xf32>
    %cst_39 = arith.constant dense<0.000000e+00> : vector<1x128xf32>
    %122 = vector.multi_reduction <add>, %121, %cst_39 [1] : vector<1x16x128xf32> to vector<1x128xf32>
    %123 = vector.shape_cast %122 : vector<1x128xf32> to vector<1x1x128xf32>
    %124 = arith.addf %93, %123 : vector<1x1x128xf32>
    %cst_40 = arith.constant 0xFF800000 : f32
    %125 = vector.broadcast %cst_40 : f32 to vector<1x1x128xf32>
    %126 = arith.select %3, %124, %125 : vector<1x1x128xi1>, vector<1x1x128xf32>
    %cst_41 = arith.constant dense<0xFF800000> : vector<1x1xf32>
    %127 = vector.multi_reduction <maximumf>, %126, %cst_41 [2] : vector<1x1x128xf32> to vector<1x1xf32>
    %128 = vector.shape_cast %127 : vector<1x1xf32> to vector<1x1x1xf32>
    %129 = vector.broadcast %128 : vector<1x1x1xf32> to vector<1x1x128xf32>
    %130 = arith.subf %124, %129 : vector<1x1x128xf32>
    %131 = math.exp %130 : vector<1x1x128xf32>
    %cst_42 = arith.constant 0.000000e+00 : f32
    %132 = vector.broadcast %cst_42 : f32 to vector<1x1x128xf32>
    %133 = arith.select %3, %131, %132 : vector<1x1x128xi1>, vector<1x1x128xf32>
    %cst_43 = arith.constant dense<0.000000e+00> : vector<1x1xf32>
    %134 = vector.multi_reduction <add>, %133, %cst_43 [2] : vector<1x1x128xf32> to vector<1x1xf32>
    %135 = vector.shape_cast %134 : vector<1x1xf32> to vector<1x1x1xf32>
    %136 = vector.broadcast %133 : vector<1x1x128xf32> to vector<1x16x128xf32>
    %137 = arith.mulf %136, %76 : vector<1x16x128xf32>
    %cst_44 = arith.constant dense<0.000000e+00> : vector<1x16xf32>
    %138 = vector.multi_reduction <add>, %137, %cst_44 [2] : vector<1x16x128xf32> to vector<1x16xf32>
    %139 = vector.shape_cast %138 : vector<1x16xf32> to vector<1x16x1xf32>
    %140 = vector.broadcast %135 : vector<1x1x1xf32> to vector<1x16x1xf32>
    %141 = arith.divf %139, %140 : vector<1x16x1xf32>
    %142 = arith.mulf %141, %141 : vector<1x16x1xf32>
    %cst_45 = arith.constant dense<0.000000e+00> : vector<1x1xf32>
    %143 = vector.multi_reduction <add>, %142, %cst_45 [1] : vector<1x16x1xf32> to vector<1x1xf32>
    %144 = vector.shape_cast %143 : vector<1x1xf32> to vector<1x1x1xf32>
    %145 = math.sqrt %144 : vector<1x1x1xf32>
    %cst_46 = arith.constant 1.000000e+00 : f32
    %146 = vector.broadcast %cst_46 : f32 to vector<1x1x1xf32>
    %147 = arith.addf %146, %144 : vector<1x1x1xf32>
    %148 = arith.divf %145, %147 : vector<1x1x1xf32>
    %149 = vector.broadcast %148 : vector<1x1x1xf32> to vector<1x16x1xf32>
    %150 = arith.mulf %141, %149 : vector<1x16x1xf32>
    %151 = vector.shape_cast %150 : vector<1x16x1xf32> to vector<1x16xf32>
    %cst_47 = arith.constant 0.000000e+00 : f32
    %152 = vector.broadcast %cst_47 : f32 to vector<1x16x128xf32>
    %153 = vector.extract_strided_slice %0 {offsets = [0, 0, 0], sizes = [1, 1, 128], strides = [1, 1, 1]} : vector<1x8x128xf32> to vector<1x1x128xf32>
    %154 = vector.shape_cast %153 : vector<1x1x128xf32> to vector<1x128xf32>
    %155 = vector.shape_cast %154 : vector<1x128xf32> to vector<1x1x128xf32>
    %c1_48 = arith.constant 1 : index
    %c0_49 = arith.constant 0 : index
    %c0_50 = arith.constant 0 : index
    %c0_51 = arith.constant 0 : index
    %156 = vector.load %arg2[%c1_48, %c0_49, %c0_50, %c0_51] : memref<4x8x16x128xf32, #tpu.memory_space<vmem>>, vector<1x1x16x128xf32>
    %157 = vector.shape_cast %156 : vector<1x1x16x128xf32> to vector<16x128xf32>
    %158 = vector.shape_cast %157 : vector<16x128xf32> to vector<1x16x128xf32>
    %159 = vector.broadcast %155 : vector<1x1x128xf32> to vector<1x16x128xf32>
    %160 = arith.mulf %159, %158 : vector<1x16x128xf32>
    %161 = arith.addf %152, %160 : vector<1x16x128xf32>
    %162 = vector.extract_strided_slice %0 {offsets = [0, 1, 0], sizes = [1, 1, 128], strides = [1, 1, 1]} : vector<1x8x128xf32> to vector<1x1x128xf32>
    %163 = vector.shape_cast %162 : vector<1x1x128xf32> to vector<1x128xf32>
    %164 = vector.shape_cast %163 : vector<1x128xf32> to vector<1x1x128xf32>
    %c1_52 = arith.constant 1 : index
    %c1_53 = arith.constant 1 : index
    %c0_54 = arith.constant 0 : index
    %c0_55 = arith.constant 0 : index
    %165 = vector.load %arg2[%c1_52, %c1_53, %c0_54, %c0_55] : memref<4x8x16x128xf32, #tpu.memory_space<vmem>>, vector<1x1x16x128xf32>
    %166 = vector.shape_cast %165 : vector<1x1x16x128xf32> to vector<16x128xf32>
    %167 = vector.shape_cast %166 : vector<16x128xf32> to vector<1x16x128xf32>
    %168 = vector.broadcast %164 : vector<1x1x128xf32> to vector<1x16x128xf32>
    %169 = arith.mulf %168, %167 : vector<1x16x128xf32>
    %170 = arith.addf %161, %169 : vector<1x16x128xf32>
    %171 = vector.extract_strided_slice %0 {offsets = [0, 2, 0], sizes = [1, 1, 128], strides = [1, 1, 1]} : vector<1x8x128xf32> to vector<1x1x128xf32>
    %172 = vector.shape_cast %171 : vector<1x1x128xf32> to vector<1x128xf32>
    %173 = vector.shape_cast %172 : vector<1x128xf32> to vector<1x1x128xf32>
    %c1_56 = arith.constant 1 : index
    %c2_57 = arith.constant 2 : index
    %c0_58 = arith.constant 0 : index
    %c0_59 = arith.constant 0 : index
    %174 = vector.load %arg2[%c1_56, %c2_57, %c0_58, %c0_59] : memref<4x8x16x128xf32, #tpu.memory_space<vmem>>, vector<1x1x16x128xf32>
    %175 = vector.shape_cast %174 : vector<1x1x16x128xf32> to vector<16x128xf32>
    %176 = vector.shape_cast %175 : vector<16x128xf32> to vector<1x16x128xf32>
    %177 = vector.broadcast %173 : vector<1x1x128xf32> to vector<1x16x128xf32>
    %178 = arith.mulf %177, %176 : vector<1x16x128xf32>
    %179 = arith.addf %170, %178 : vector<1x16x128xf32>
    %180 = vector.extract_strided_slice %0 {offsets = [0, 3, 0], sizes = [1, 1, 128], strides = [1, 1, 1]} : vector<1x8x128xf32> to vector<1x1x128xf32>
    %181 = vector.shape_cast %180 : vector<1x1x128xf32> to vector<1x128xf32>
    %182 = vector.shape_cast %181 : vector<1x128xf32> to vector<1x1x128xf32>
    %c1_60 = arith.constant 1 : index
    %c3_61 = arith.constant 3 : index
    %c0_62 = arith.constant 0 : index
    %c0_63 = arith.constant 0 : index
    %183 = vector.load %arg2[%c1_60, %c3_61, %c0_62, %c0_63] : memref<4x8x16x128xf32, #tpu.memory_space<vmem>>, vector<1x1x16x128xf32>
    %184 = vector.shape_cast %183 : vector<1x1x16x128xf32> to vector<16x128xf32>
    %185 = vector.shape_cast %184 : vector<16x128xf32> to vector<1x16x128xf32>
    %186 = vector.broadcast %182 : vector<1x1x128xf32> to vector<1x16x128xf32>
    %187 = arith.mulf %186, %185 : vector<1x16x128xf32>
    %188 = arith.addf %179, %187 : vector<1x16x128xf32>
    %189 = vector.extract_strided_slice %0 {offsets = [0, 4, 0], sizes = [1, 1, 128], strides = [1, 1, 1]} : vector<1x8x128xf32> to vector<1x1x128xf32>
    %190 = vector.shape_cast %189 : vector<1x1x128xf32> to vector<1x128xf32>
    %191 = vector.shape_cast %190 : vector<1x128xf32> to vector<1x1x128xf32>
    %c1_64 = arith.constant 1 : index
    %c4_65 = arith.constant 4 : index
    %c0_66 = arith.constant 0 : index
    %c0_67 = arith.constant 0 : index
    %192 = vector.load %arg2[%c1_64, %c4_65, %c0_66, %c0_67] : memref<4x8x16x128xf32, #tpu.memory_space<vmem>>, vector<1x1x16x128xf32>
    %193 = vector.shape_cast %192 : vector<1x1x16x128xf32> to vector<16x128xf32>
    %194 = vector.shape_cast %193 : vector<16x128xf32> to vector<1x16x128xf32>
    %195 = vector.broadcast %191 : vector<1x1x128xf32> to vector<1x16x128xf32>
    %196 = arith.mulf %195, %194 : vector<1x16x128xf32>
    %197 = arith.addf %188, %196 : vector<1x16x128xf32>
    %198 = vector.extract_strided_slice %0 {offsets = [0, 5, 0], sizes = [1, 1, 128], strides = [1, 1, 1]} : vector<1x8x128xf32> to vector<1x1x128xf32>
    %199 = vector.shape_cast %198 : vector<1x1x128xf32> to vector<1x128xf32>
    %200 = vector.shape_cast %199 : vector<1x128xf32> to vector<1x1x128xf32>
    %c1_68 = arith.constant 1 : index
    %c5_69 = arith.constant 5 : index
    %c0_70 = arith.constant 0 : index
    %c0_71 = arith.constant 0 : index
    %201 = vector.load %arg2[%c1_68, %c5_69, %c0_70, %c0_71] : memref<4x8x16x128xf32, #tpu.memory_space<vmem>>, vector<1x1x16x128xf32>
    %202 = vector.shape_cast %201 : vector<1x1x16x128xf32> to vector<16x128xf32>
    %203 = vector.shape_cast %202 : vector<16x128xf32> to vector<1x16x128xf32>
    %204 = vector.broadcast %200 : vector<1x1x128xf32> to vector<1x16x128xf32>
    %205 = arith.mulf %204, %203 : vector<1x16x128xf32>
    %206 = arith.addf %197, %205 : vector<1x16x128xf32>
    %207 = vector.extract_strided_slice %0 {offsets = [0, 6, 0], sizes = [1, 1, 128], strides = [1, 1, 1]} : vector<1x8x128xf32> to vector<1x1x128xf32>
    %208 = vector.shape_cast %207 : vector<1x1x128xf32> to vector<1x128xf32>
    %209 = vector.shape_cast %208 : vector<1x128xf32> to vector<1x1x128xf32>
    %c1_72 = arith.constant 1 : index
    %c6_73 = arith.constant 6 : index
    %c0_74 = arith.constant 0 : index
    %c0_75 = arith.constant 0 : index
    %210 = vector.load %arg2[%c1_72, %c6_73, %c0_74, %c0_75] : memref<4x8x16x128xf32, #tpu.memory_space<vmem>>, vector<1x1x16x128xf32>
    %211 = vector.shape_cast %210 : vector<1x1x16x128xf32> to vector<16x128xf32>
    %212 = vector.shape_cast %211 : vector<16x128xf32> to vector<1x16x128xf32>
    %213 = vector.broadcast %209 : vector<1x1x128xf32> to vector<1x16x128xf32>
    %214 = arith.mulf %213, %212 : vector<1x16x128xf32>
    %215 = arith.addf %206, %214 : vector<1x16x128xf32>
    %216 = vector.extract_strided_slice %0 {offsets = [0, 7, 0], sizes = [1, 1, 128], strides = [1, 1, 1]} : vector<1x8x128xf32> to vector<1x1x128xf32>
    %217 = vector.shape_cast %216 : vector<1x1x128xf32> to vector<1x128xf32>
    %218 = vector.shape_cast %217 : vector<1x128xf32> to vector<1x1x128xf32>
    %c1_76 = arith.constant 1 : index
    %c7_77 = arith.constant 7 : index
    %c0_78 = arith.constant 0 : index
    %c0_79 = arith.constant 0 : index
    %219 = vector.load %arg2[%c1_76, %c7_77, %c0_78, %c0_79] : memref<4x8x16x128xf32, #tpu.memory_space<vmem>>, vector<1x1x16x128xf32>
    %220 = vector.shape_cast %219 : vector<1x1x16x128xf32> to vector<16x128xf32>
    %221 = vector.shape_cast %220 : vector<16x128xf32> to vector<1x16x128xf32>
    %222 = vector.broadcast %218 : vector<1x1x128xf32> to vector<1x16x128xf32>
    %223 = arith.mulf %222, %221 : vector<1x16x128xf32>
    %224 = arith.addf %215, %223 : vector<1x16x128xf32>
    %cst_80 = arith.constant dense<0.000000e+00> : vector<1x16xf32>
    %225 = vector.multi_reduction <add>, %224, %cst_80 [2] : vector<1x16x128xf32> to vector<1x16xf32>
    %226 = vector.shape_cast %225 : vector<1x16xf32> to vector<1x16x1xf32>
    %cst_81 = arith.constant 1.562500e-02 : f32
    %227 = vector.broadcast %cst_81 : f32 to vector<1x16x1xf32>
    %228 = arith.mulf %226, %227 : vector<1x16x1xf32>
    %229 = arith.mulf %228, %228 : vector<1x16x1xf32>
    %cst_82 = arith.constant dense<0.000000e+00> : vector<1x1xf32>
    %230 = vector.multi_reduction <add>, %229, %cst_82 [1] : vector<1x16x1xf32> to vector<1x1xf32>
    %231 = vector.shape_cast %230 : vector<1x1xf32> to vector<1x1x1xf32>
    %232 = math.sqrt %231 : vector<1x1x1xf32>
    %cst_83 = arith.constant 1.000000e+00 : f32
    %233 = vector.broadcast %cst_83 : f32 to vector<1x1x1xf32>
    %234 = arith.addf %233, %231 : vector<1x1x1xf32>
    %235 = arith.divf %232, %234 : vector<1x1x1xf32>
    %236 = vector.broadcast %235 : vector<1x1x1xf32> to vector<1x16x1xf32>
    %237 = arith.mulf %228, %236 : vector<1x16x1xf32>
    %238 = vector.broadcast %237 : vector<1x16x1xf32> to vector<1x16x128xf32>
    %239 = arith.mulf %224, %238 : vector<1x16x128xf32>
    %cst_84 = arith.constant dense<0.000000e+00> : vector<1x128xf32>
    %240 = vector.multi_reduction <add>, %239, %cst_84 [1] : vector<1x16x128xf32> to vector<1x128xf32>
    %241 = vector.shape_cast %240 : vector<1x128xf32> to vector<1x1x128xf32>
    %cst_85 = arith.constant 0xFF800000 : f32
    %242 = vector.broadcast %cst_85 : f32 to vector<1x1x128xf32>
    %243 = arith.select %3, %241, %242 : vector<1x1x128xi1>, vector<1x1x128xf32>
    %cst_86 = arith.constant dense<0xFF800000> : vector<1x1xf32>
    %244 = vector.multi_reduction <maximumf>, %243, %cst_86 [2] : vector<1x1x128xf32> to vector<1x1xf32>
    %245 = vector.shape_cast %244 : vector<1x1xf32> to vector<1x1x1xf32>
    %246 = vector.broadcast %245 : vector<1x1x1xf32> to vector<1x1x128xf32>
    %247 = arith.subf %241, %246 : vector<1x1x128xf32>
    %248 = math.exp %247 : vector<1x1x128xf32>
    %cst_87 = arith.constant 0.000000e+00 : f32
    %249 = vector.broadcast %cst_87 : f32 to vector<1x1x128xf32>
    %250 = arith.select %3, %248, %249 : vector<1x1x128xi1>, vector<1x1x128xf32>
    %cst_88 = arith.constant dense<0.000000e+00> : vector<1x1xf32>
    %251 = vector.multi_reduction <add>, %250, %cst_88 [2] : vector<1x1x128xf32> to vector<1x1xf32>
    %252 = vector.shape_cast %251 : vector<1x1xf32> to vector<1x1x1xf32>
    %253 = vector.broadcast %250 : vector<1x1x128xf32> to vector<1x16x128xf32>
    %254 = arith.mulf %253, %224 : vector<1x16x128xf32>
    %cst_89 = arith.constant dense<0.000000e+00> : vector<1x16xf32>
    %255 = vector.multi_reduction <add>, %254, %cst_89 [2] : vector<1x16x128xf32> to vector<1x16xf32>
    %256 = vector.shape_cast %255 : vector<1x16xf32> to vector<1x16x1xf32>
    %257 = vector.broadcast %252 : vector<1x1x1xf32> to vector<1x16x1xf32>
    %258 = arith.divf %256, %257 : vector<1x16x1xf32>
    %259 = arith.mulf %258, %258 : vector<1x16x1xf32>
    %cst_90 = arith.constant dense<0.000000e+00> : vector<1x1xf32>
    %260 = vector.multi_reduction <add>, %259, %cst_90 [1] : vector<1x16x1xf32> to vector<1x1xf32>
    %261 = vector.shape_cast %260 : vector<1x1xf32> to vector<1x1x1xf32>
    %262 = math.sqrt %261 : vector<1x1x1xf32>
    %cst_91 = arith.constant 1.000000e+00 : f32
    %263 = vector.broadcast %cst_91 : f32 to vector<1x1x1xf32>
    %264 = arith.addf %263, %261 : vector<1x1x1xf32>
    %265 = arith.divf %262, %264 : vector<1x1x1xf32>
    %266 = vector.broadcast %265 : vector<1x1x1xf32> to vector<1x16x1xf32>
    %267 = arith.mulf %258, %266 : vector<1x16x1xf32>
    %268 = vector.broadcast %267 : vector<1x16x1xf32> to vector<1x16x128xf32>
    %269 = arith.mulf %224, %268 : vector<1x16x128xf32>
    %cst_92 = arith.constant dense<0.000000e+00> : vector<1x128xf32>
    %270 = vector.multi_reduction <add>, %269, %cst_92 [1] : vector<1x16x128xf32> to vector<1x128xf32>
    %271 = vector.shape_cast %270 : vector<1x128xf32> to vector<1x1x128xf32>
    %272 = arith.addf %241, %271 : vector<1x1x128xf32>
    %cst_93 = arith.constant 0xFF800000 : f32
    %273 = vector.broadcast %cst_93 : f32 to vector<1x1x128xf32>
    %274 = arith.select %3, %272, %273 : vector<1x1x128xi1>, vector<1x1x128xf32>
    %cst_94 = arith.constant dense<0xFF800000> : vector<1x1xf32>
    %275 = vector.multi_reduction <maximumf>, %274, %cst_94 [2] : vector<1x1x128xf32> to vector<1x1xf32>
    %276 = vector.shape_cast %275 : vector<1x1xf32> to vector<1x1x1xf32>
    %277 = vector.broadcast %276 : vector<1x1x1xf32> to vector<1x1x128xf32>
    %278 = arith.subf %272, %277 : vector<1x1x128xf32>
    %279 = math.exp %278 : vector<1x1x128xf32>
    %cst_95 = arith.constant 0.000000e+00 : f32
    %280 = vector.broadcast %cst_95 : f32 to vector<1x1x128xf32>
    %281 = arith.select %3, %279, %280 : vector<1x1x128xi1>, vector<1x1x128xf32>
    %cst_96 = arith.constant dense<0.000000e+00> : vector<1x1xf32>
    %282 = vector.multi_reduction <add>, %281, %cst_96 [2] : vector<1x1x128xf32> to vector<1x1xf32>
    %283 = vector.shape_cast %282 : vector<1x1xf32> to vector<1x1x1xf32>
    %284 = vector.broadcast %281 : vector<1x1x128xf32> to vector<1x16x128xf32>
    %285 = arith.mulf %284, %224 : vector<1x16x128xf32>
    %cst_97 = arith.constant dense<0.000000e+00> : vector<1x16xf32>
    %286 = vector.multi_reduction <add>, %285, %cst_97 [2] : vector<1x16x128xf32> to vector<1x16xf32>
    %287 = vector.shape_cast %286 : vector<1x16xf32> to vector<1x16x1xf32>
    %288 = vector.broadcast %283 : vector<1x1x1xf32> to vector<1x16x1xf32>
    %289 = arith.divf %287, %288 : vector<1x16x1xf32>
    %290 = arith.mulf %289, %289 : vector<1x16x1xf32>
    %cst_98 = arith.constant dense<0.000000e+00> : vector<1x1xf32>
    %291 = vector.multi_reduction <add>, %290, %cst_98 [1] : vector<1x16x1xf32> to vector<1x1xf32>
    %292 = vector.shape_cast %291 : vector<1x1xf32> to vector<1x1x1xf32>
    %293 = math.sqrt %292 : vector<1x1x1xf32>
    %cst_99 = arith.constant 1.000000e+00 : f32
    %294 = vector.broadcast %cst_99 : f32 to vector<1x1x1xf32>
    %295 = arith.addf %294, %292 : vector<1x1x1xf32>
    %296 = arith.divf %293, %295 : vector<1x1x1xf32>
    %297 = vector.broadcast %296 : vector<1x1x1xf32> to vector<1x16x1xf32>
    %298 = arith.mulf %289, %297 : vector<1x16x1xf32>
    %299 = vector.shape_cast %298 : vector<1x16x1xf32> to vector<1x16xf32>
    %cst_100 = arith.constant 0.000000e+00 : f32
    %300 = vector.broadcast %cst_100 : f32 to vector<1x16x128xf32>
    %301 = vector.extract_strided_slice %0 {offsets = [0, 0, 0], sizes = [1, 1, 128], strides = [1, 1, 1]} : vector<1x8x128xf32> to vector<1x1x128xf32>
    %302 = vector.shape_cast %301 : vector<1x1x128xf32> to vector<1x128xf32>
    %303 = vector.shape_cast %302 : vector<1x128xf32> to vector<1x1x128xf32>
    %c2_101 = arith.constant 2 : index
    %c0_102 = arith.constant 0 : index
    %c0_103 = arith.constant 0 : index
    %c0_104 = arith.constant 0 : index
    %304 = vector.load %arg2[%c2_101, %c0_102, %c0_103, %c0_104] : memref<4x8x16x128xf32, #tpu.memory_space<vmem>>, vector<1x1x16x128xf32>
    %305 = vector.shape_cast %304 : vector<1x1x16x128xf32> to vector<16x128xf32>
    %306 = vector.shape_cast %305 : vector<16x128xf32> to vector<1x16x128xf32>
    %307 = vector.broadcast %303 : vector<1x1x128xf32> to vector<1x16x128xf32>
    %308 = arith.mulf %307, %306 : vector<1x16x128xf32>
    %309 = arith.addf %300, %308 : vector<1x16x128xf32>
    %310 = vector.extract_strided_slice %0 {offsets = [0, 1, 0], sizes = [1, 1, 128], strides = [1, 1, 1]} : vector<1x8x128xf32> to vector<1x1x128xf32>
    %311 = vector.shape_cast %310 : vector<1x1x128xf32> to vector<1x128xf32>
    %312 = vector.shape_cast %311 : vector<1x128xf32> to vector<1x1x128xf32>
    %c2_105 = arith.constant 2 : index
    %c1_106 = arith.constant 1 : index
    %c0_107 = arith.constant 0 : index
    %c0_108 = arith.constant 0 : index
    %313 = vector.load %arg2[%c2_105, %c1_106, %c0_107, %c0_108] : memref<4x8x16x128xf32, #tpu.memory_space<vmem>>, vector<1x1x16x128xf32>
    %314 = vector.shape_cast %313 : vector<1x1x16x128xf32> to vector<16x128xf32>
    %315 = vector.shape_cast %314 : vector<16x128xf32> to vector<1x16x128xf32>
    %316 = vector.broadcast %312 : vector<1x1x128xf32> to vector<1x16x128xf32>
    %317 = arith.mulf %316, %315 : vector<1x16x128xf32>
    %318 = arith.addf %309, %317 : vector<1x16x128xf32>
    %319 = vector.extract_strided_slice %0 {offsets = [0, 2, 0], sizes = [1, 1, 128], strides = [1, 1, 1]} : vector<1x8x128xf32> to vector<1x1x128xf32>
    %320 = vector.shape_cast %319 : vector<1x1x128xf32> to vector<1x128xf32>
    %321 = vector.shape_cast %320 : vector<1x128xf32> to vector<1x1x128xf32>
    %c2_109 = arith.constant 2 : index
    %c2_110 = arith.constant 2 : index
    %c0_111 = arith.constant 0 : index
    %c0_112 = arith.constant 0 : index
    %322 = vector.load %arg2[%c2_109, %c2_110, %c0_111, %c0_112] : memref<4x8x16x128xf32, #tpu.memory_space<vmem>>, vector<1x1x16x128xf32>
    %323 = vector.shape_cast %322 : vector<1x1x16x128xf32> to vector<16x128xf32>
    %324 = vector.shape_cast %323 : vector<16x128xf32> to vector<1x16x128xf32>
    %325 = vector.broadcast %321 : vector<1x1x128xf32> to vector<1x16x128xf32>
    %326 = arith.mulf %325, %324 : vector<1x16x128xf32>
    %327 = arith.addf %318, %326 : vector<1x16x128xf32>
    %328 = vector.extract_strided_slice %0 {offsets = [0, 3, 0], sizes = [1, 1, 128], strides = [1, 1, 1]} : vector<1x8x128xf32> to vector<1x1x128xf32>
    %329 = vector.shape_cast %328 : vector<1x1x128xf32> to vector<1x128xf32>
    %330 = vector.shape_cast %329 : vector<1x128xf32> to vector<1x1x128xf32>
    %c2_113 = arith.constant 2 : index
    %c3_114 = arith.constant 3 : index
    %c0_115 = arith.constant 0 : index
    %c0_116 = arith.constant 0 : index
    %331 = vector.load %arg2[%c2_113, %c3_114, %c0_115, %c0_116] : memref<4x8x16x128xf32, #tpu.memory_space<vmem>>, vector<1x1x16x128xf32>
    %332 = vector.shape_cast %331 : vector<1x1x16x128xf32> to vector<16x128xf32>
    %333 = vector.shape_cast %332 : vector<16x128xf32> to vector<1x16x128xf32>
    %334 = vector.broadcast %330 : vector<1x1x128xf32> to vector<1x16x128xf32>
    %335 = arith.mulf %334, %333 : vector<1x16x128xf32>
    %336 = arith.addf %327, %335 : vector<1x16x128xf32>
    %337 = vector.extract_strided_slice %0 {offsets = [0, 4, 0], sizes = [1, 1, 128], strides = [1, 1, 1]} : vector<1x8x128xf32> to vector<1x1x128xf32>
    %338 = vector.shape_cast %337 : vector<1x1x128xf32> to vector<1x128xf32>
    %339 = vector.shape_cast %338 : vector<1x128xf32> to vector<1x1x128xf32>
    %c2_117 = arith.constant 2 : index
    %c4_118 = arith.constant 4 : index
    %c0_119 = arith.constant 0 : index
    %c0_120 = arith.constant 0 : index
    %340 = vector.load %arg2[%c2_117, %c4_118, %c0_119, %c0_120] : memref<4x8x16x128xf32, #tpu.memory_space<vmem>>, vector<1x1x16x128xf32>
    %341 = vector.shape_cast %340 : vector<1x1x16x128xf32> to vector<16x128xf32>
    %342 = vector.shape_cast %341 : vector<16x128xf32> to vector<1x16x128xf32>
    %343 = vector.broadcast %339 : vector<1x1x128xf32> to vector<1x16x128xf32>
    %344 = arith.mulf %343, %342 : vector<1x16x128xf32>
    %345 = arith.addf %336, %344 : vector<1x16x128xf32>
    %346 = vector.extract_strided_slice %0 {offsets = [0, 5, 0], sizes = [1, 1, 128], strides = [1, 1, 1]} : vector<1x8x128xf32> to vector<1x1x128xf32>
    %347 = vector.shape_cast %346 : vector<1x1x128xf32> to vector<1x128xf32>
    %348 = vector.shape_cast %347 : vector<1x128xf32> to vector<1x1x128xf32>
    %c2_121 = arith.constant 2 : index
    %c5_122 = arith.constant 5 : index
    %c0_123 = arith.constant 0 : index
    %c0_124 = arith.constant 0 : index
    %349 = vector.load %arg2[%c2_121, %c5_122, %c0_123, %c0_124] : memref<4x8x16x128xf32, #tpu.memory_space<vmem>>, vector<1x1x16x128xf32>
    %350 = vector.shape_cast %349 : vector<1x1x16x128xf32> to vector<16x128xf32>
    %351 = vector.shape_cast %350 : vector<16x128xf32> to vector<1x16x128xf32>
    %352 = vector.broadcast %348 : vector<1x1x128xf32> to vector<1x16x128xf32>
    %353 = arith.mulf %352, %351 : vector<1x16x128xf32>
    %354 = arith.addf %345, %353 : vector<1x16x128xf32>
    %355 = vector.extract_strided_slice %0 {offsets = [0, 6, 0], sizes = [1, 1, 128], strides = [1, 1, 1]} : vector<1x8x128xf32> to vector<1x1x128xf32>
    %356 = vector.shape_cast %355 : vector<1x1x128xf32> to vector<1x128xf32>
    %357 = vector.shape_cast %356 : vector<1x128xf32> to vector<1x1x128xf32>
    %c2_125 = arith.constant 2 : index
    %c6_126 = arith.constant 6 : index
    %c0_127 = arith.constant 0 : index
    %c0_128 = arith.constant 0 : index
    %358 = vector.load %arg2[%c2_125, %c6_126, %c0_127, %c0_128] : memref<4x8x16x128xf32, #tpu.memory_space<vmem>>, vector<1x1x16x128xf32>
    %359 = vector.shape_cast %358 : vector<1x1x16x128xf32> to vector<16x128xf32>
    %360 = vector.shape_cast %359 : vector<16x128xf32> to vector<1x16x128xf32>
    %361 = vector.broadcast %357 : vector<1x1x128xf32> to vector<1x16x128xf32>
    %362 = arith.mulf %361, %360 : vector<1x16x128xf32>
    %363 = arith.addf %354, %362 : vector<1x16x128xf32>
    %364 = vector.extract_strided_slice %0 {offsets = [0, 7, 0], sizes = [1, 1, 128], strides = [1, 1, 1]} : vector<1x8x128xf32> to vector<1x1x128xf32>
    %365 = vector.shape_cast %364 : vector<1x1x128xf32> to vector<1x128xf32>
    %366 = vector.shape_cast %365 : vector<1x128xf32> to vector<1x1x128xf32>
    %c2_129 = arith.constant 2 : index
    %c7_130 = arith.constant 7 : index
    %c0_131 = arith.constant 0 : index
    %c0_132 = arith.constant 0 : index
    %367 = vector.load %arg2[%c2_129, %c7_130, %c0_131, %c0_132] : memref<4x8x16x128xf32, #tpu.memory_space<vmem>>, vector<1x1x16x128xf32>
    %368 = vector.shape_cast %367 : vector<1x1x16x128xf32> to vector<16x128xf32>
    %369 = vector.shape_cast %368 : vector<16x128xf32> to vector<1x16x128xf32>
    %370 = vector.broadcast %366 : vector<1x1x128xf32> to vector<1x16x128xf32>
    %371 = arith.mulf %370, %369 : vector<1x16x128xf32>
    %372 = arith.addf %363, %371 : vector<1x16x128xf32>
    %cst_133 = arith.constant dense<0.000000e+00> : vector<1x16xf32>
    %373 = vector.multi_reduction <add>, %372, %cst_133 [2] : vector<1x16x128xf32> to vector<1x16xf32>
    %374 = vector.shape_cast %373 : vector<1x16xf32> to vector<1x16x1xf32>
    %cst_134 = arith.constant 1.562500e-02 : f32
    %375 = vector.broadcast %cst_134 : f32 to vector<1x16x1xf32>
    %376 = arith.mulf %374, %375 : vector<1x16x1xf32>
    %377 = arith.mulf %376, %376 : vector<1x16x1xf32>
    %cst_135 = arith.constant dense<0.000000e+00> : vector<1x1xf32>
    %378 = vector.multi_reduction <add>, %377, %cst_135 [1] : vector<1x16x1xf32> to vector<1x1xf32>
    %379 = vector.shape_cast %378 : vector<1x1xf32> to vector<1x1x1xf32>
    %380 = math.sqrt %379 : vector<1x1x1xf32>
    %cst_136 = arith.constant 1.000000e+00 : f32
    %381 = vector.broadcast %cst_136 : f32 to vector<1x1x1xf32>
    %382 = arith.addf %381, %379 : vector<1x1x1xf32>
    %383 = arith.divf %380, %382 : vector<1x1x1xf32>
    %384 = vector.broadcast %383 : vector<1x1x1xf32> to vector<1x16x1xf32>
    %385 = arith.mulf %376, %384 : vector<1x16x1xf32>
    %386 = vector.broadcast %385 : vector<1x16x1xf32> to vector<1x16x128xf32>
    %387 = arith.mulf %372, %386 : vector<1x16x128xf32>
    %cst_137 = arith.constant dense<0.000000e+00> : vector<1x128xf32>
    %388 = vector.multi_reduction <add>, %387, %cst_137 [1] : vector<1x16x128xf32> to vector<1x128xf32>
    %389 = vector.shape_cast %388 : vector<1x128xf32> to vector<1x1x128xf32>
    %cst_138 = arith.constant 0xFF800000 : f32
    %390 = vector.broadcast %cst_138 : f32 to vector<1x1x128xf32>
    %391 = arith.select %3, %389, %390 : vector<1x1x128xi1>, vector<1x1x128xf32>
    %cst_139 = arith.constant dense<0xFF800000> : vector<1x1xf32>
    %392 = vector.multi_reduction <maximumf>, %391, %cst_139 [2] : vector<1x1x128xf32> to vector<1x1xf32>
    %393 = vector.shape_cast %392 : vector<1x1xf32> to vector<1x1x1xf32>
    %394 = vector.broadcast %393 : vector<1x1x1xf32> to vector<1x1x128xf32>
    %395 = arith.subf %389, %394 : vector<1x1x128xf32>
    %396 = math.exp %395 : vector<1x1x128xf32>
    %cst_140 = arith.constant 0.000000e+00 : f32
    %397 = vector.broadcast %cst_140 : f32 to vector<1x1x128xf32>
    %398 = arith.select %3, %396, %397 : vector<1x1x128xi1>, vector<1x1x128xf32>
    %cst_141 = arith.constant dense<0.000000e+00> : vector<1x1xf32>
    %399 = vector.multi_reduction <add>, %398, %cst_141 [2] : vector<1x1x128xf32> to vector<1x1xf32>
    %400 = vector.shape_cast %399 : vector<1x1xf32> to vector<1x1x1xf32>
    %401 = vector.broadcast %398 : vector<1x1x128xf32> to vector<1x16x128xf32>
    %402 = arith.mulf %401, %372 : vector<1x16x128xf32>
    %cst_142 = arith.constant dense<0.000000e+00> : vector<1x16xf32>
    %403 = vector.multi_reduction <add>, %402, %cst_142 [2] : vector<1x16x128xf32> to vector<1x16xf32>
    %404 = vector.shape_cast %403 : vector<1x16xf32> to vector<1x16x1xf32>
    %405 = vector.broadcast %400 : vector<1x1x1xf32> to vector<1x16x1xf32>
    %406 = arith.divf %404, %405 : vector<1x16x1xf32>
    %407 = arith.mulf %406, %406 : vector<1x16x1xf32>
    %cst_143 = arith.constant dense<0.000000e+00> : vector<1x1xf32>
    %408 = vector.multi_reduction <add>, %407, %cst_143 [1] : vector<1x16x1xf32> to vector<1x1xf32>
    %409 = vector.shape_cast %408 : vector<1x1xf32> to vector<1x1x1xf32>
    %410 = math.sqrt %409 : vector<1x1x1xf32>
    %cst_144 = arith.constant 1.000000e+00 : f32
    %411 = vector.broadcast %cst_144 : f32 to vector<1x1x1xf32>
    %412 = arith.addf %411, %409 : vector<1x1x1xf32>
    %413 = arith.divf %410, %412 : vector<1x1x1xf32>
    %414 = vector.broadcast %413 : vector<1x1x1xf32> to vector<1x16x1xf32>
    %415 = arith.mulf %406, %414 : vector<1x16x1xf32>
    %416 = vector.broadcast %415 : vector<1x16x1xf32> to vector<1x16x128xf32>
    %417 = arith.mulf %372, %416 : vector<1x16x128xf32>
    %cst_145 = arith.constant dense<0.000000e+00> : vector<1x128xf32>
    %418 = vector.multi_reduction <add>, %417, %cst_145 [1] : vector<1x16x128xf32> to vector<1x128xf32>
    %419 = vector.shape_cast %418 : vector<1x128xf32> to vector<1x1x128xf32>
    %420 = arith.addf %389, %419 : vector<1x1x128xf32>
    %cst_146 = arith.constant 0xFF800000 : f32
    %421 = vector.broadcast %cst_146 : f32 to vector<1x1x128xf32>
    %422 = arith.select %3, %420, %421 : vector<1x1x128xi1>, vector<1x1x128xf32>
    %cst_147 = arith.constant dense<0xFF800000> : vector<1x1xf32>
    %423 = vector.multi_reduction <maximumf>, %422, %cst_147 [2] : vector<1x1x128xf32> to vector<1x1xf32>
    %424 = vector.shape_cast %423 : vector<1x1xf32> to vector<1x1x1xf32>
    %425 = vector.broadcast %424 : vector<1x1x1xf32> to vector<1x1x128xf32>
    %426 = arith.subf %420, %425 : vector<1x1x128xf32>
    %427 = math.exp %426 : vector<1x1x128xf32>
    %cst_148 = arith.constant 0.000000e+00 : f32
    %428 = vector.broadcast %cst_148 : f32 to vector<1x1x128xf32>
    %429 = arith.select %3, %427, %428 : vector<1x1x128xi1>, vector<1x1x128xf32>
    %cst_149 = arith.constant dense<0.000000e+00> : vector<1x1xf32>
    %430 = vector.multi_reduction <add>, %429, %cst_149 [2] : vector<1x1x128xf32> to vector<1x1xf32>
    %431 = vector.shape_cast %430 : vector<1x1xf32> to vector<1x1x1xf32>
    %432 = vector.broadcast %429 : vector<1x1x128xf32> to vector<1x16x128xf32>
    %433 = arith.mulf %432, %372 : vector<1x16x128xf32>
    %cst_150 = arith.constant dense<0.000000e+00> : vector<1x16xf32>
    %434 = vector.multi_reduction <add>, %433, %cst_150 [2] : vector<1x16x128xf32> to vector<1x16xf32>
    %435 = vector.shape_cast %434 : vector<1x16xf32> to vector<1x16x1xf32>
    %436 = vector.broadcast %431 : vector<1x1x1xf32> to vector<1x16x1xf32>
    %437 = arith.divf %435, %436 : vector<1x16x1xf32>
    %438 = arith.mulf %437, %437 : vector<1x16x1xf32>
    %cst_151 = arith.constant dense<0.000000e+00> : vector<1x1xf32>
    %439 = vector.multi_reduction <add>, %438, %cst_151 [1] : vector<1x16x1xf32> to vector<1x1xf32>
    %440 = vector.shape_cast %439 : vector<1x1xf32> to vector<1x1x1xf32>
    %441 = math.sqrt %440 : vector<1x1x1xf32>
    %cst_152 = arith.constant 1.000000e+00 : f32
    %442 = vector.broadcast %cst_152 : f32 to vector<1x1x1xf32>
    %443 = arith.addf %442, %440 : vector<1x1x1xf32>
    %444 = arith.divf %441, %443 : vector<1x1x1xf32>
    %445 = vector.broadcast %444 : vector<1x1x1xf32> to vector<1x16x1xf32>
    %446 = arith.mulf %437, %445 : vector<1x16x1xf32>
    %447 = vector.shape_cast %446 : vector<1x16x1xf32> to vector<1x16xf32>
    %cst_153 = arith.constant 0.000000e+00 : f32
    %448 = vector.broadcast %cst_153 : f32 to vector<1x16x128xf32>
    %449 = vector.extract_strided_slice %0 {offsets = [0, 0, 0], sizes = [1, 1, 128], strides = [1, 1, 1]} : vector<1x8x128xf32> to vector<1x1x128xf32>
    %450 = vector.shape_cast %449 : vector<1x1x128xf32> to vector<1x128xf32>
    %451 = vector.shape_cast %450 : vector<1x128xf32> to vector<1x1x128xf32>
    %c3_154 = arith.constant 3 : index
    %c0_155 = arith.constant 0 : index
    %c0_156 = arith.constant 0 : index
    %c0_157 = arith.constant 0 : index
    %452 = vector.load %arg2[%c3_154, %c0_155, %c0_156, %c0_157] : memref<4x8x16x128xf32, #tpu.memory_space<vmem>>, vector<1x1x16x128xf32>
    %453 = vector.shape_cast %452 : vector<1x1x16x128xf32> to vector<16x128xf32>
    %454 = vector.shape_cast %453 : vector<16x128xf32> to vector<1x16x128xf32>
    %455 = vector.broadcast %451 : vector<1x1x128xf32> to vector<1x16x128xf32>
    %456 = arith.mulf %455, %454 : vector<1x16x128xf32>
    %457 = arith.addf %448, %456 : vector<1x16x128xf32>
    %458 = vector.extract_strided_slice %0 {offsets = [0, 1, 0], sizes = [1, 1, 128], strides = [1, 1, 1]} : vector<1x8x128xf32> to vector<1x1x128xf32>
    %459 = vector.shape_cast %458 : vector<1x1x128xf32> to vector<1x128xf32>
    %460 = vector.shape_cast %459 : vector<1x128xf32> to vector<1x1x128xf32>
    %c3_158 = arith.constant 3 : index
    %c1_159 = arith.constant 1 : index
    %c0_160 = arith.constant 0 : index
    %c0_161 = arith.constant 0 : index
    %461 = vector.load %arg2[%c3_158, %c1_159, %c0_160, %c0_161] : memref<4x8x16x128xf32, #tpu.memory_space<vmem>>, vector<1x1x16x128xf32>
    %462 = vector.shape_cast %461 : vector<1x1x16x128xf32> to vector<16x128xf32>
    %463 = vector.shape_cast %462 : vector<16x128xf32> to vector<1x16x128xf32>
    %464 = vector.broadcast %460 : vector<1x1x128xf32> to vector<1x16x128xf32>
    %465 = arith.mulf %464, %463 : vector<1x16x128xf32>
    %466 = arith.addf %457, %465 : vector<1x16x128xf32>
    %467 = vector.extract_strided_slice %0 {offsets = [0, 2, 0], sizes = [1, 1, 128], strides = [1, 1, 1]} : vector<1x8x128xf32> to vector<1x1x128xf32>
    %468 = vector.shape_cast %467 : vector<1x1x128xf32> to vector<1x128xf32>
    %469 = vector.shape_cast %468 : vector<1x128xf32> to vector<1x1x128xf32>
    %c3_162 = arith.constant 3 : index
    %c2_163 = arith.constant 2 : index
    %c0_164 = arith.constant 0 : index
    %c0_165 = arith.constant 0 : index
    %470 = vector.load %arg2[%c3_162, %c2_163, %c0_164, %c0_165] : memref<4x8x16x128xf32, #tpu.memory_space<vmem>>, vector<1x1x16x128xf32>
    %471 = vector.shape_cast %470 : vector<1x1x16x128xf32> to vector<16x128xf32>
    %472 = vector.shape_cast %471 : vector<16x128xf32> to vector<1x16x128xf32>
    %473 = vector.broadcast %469 : vector<1x1x128xf32> to vector<1x16x128xf32>
    %474 = arith.mulf %473, %472 : vector<1x16x128xf32>
    %475 = arith.addf %466, %474 : vector<1x16x128xf32>
    %476 = vector.extract_strided_slice %0 {offsets = [0, 3, 0], sizes = [1, 1, 128], strides = [1, 1, 1]} : vector<1x8x128xf32> to vector<1x1x128xf32>
    %477 = vector.shape_cast %476 : vector<1x1x128xf32> to vector<1x128xf32>
    %478 = vector.shape_cast %477 : vector<1x128xf32> to vector<1x1x128xf32>
    %c3_166 = arith.constant 3 : index
    %c3_167 = arith.constant 3 : index
    %c0_168 = arith.constant 0 : index
    %c0_169 = arith.constant 0 : index
    %479 = vector.load %arg2[%c3_166, %c3_167, %c0_168, %c0_169] : memref<4x8x16x128xf32, #tpu.memory_space<vmem>>, vector<1x1x16x128xf32>
    %480 = vector.shape_cast %479 : vector<1x1x16x128xf32> to vector<16x128xf32>
    %481 = vector.shape_cast %480 : vector<16x128xf32> to vector<1x16x128xf32>
    %482 = vector.broadcast %478 : vector<1x1x128xf32> to vector<1x16x128xf32>
    %483 = arith.mulf %482, %481 : vector<1x16x128xf32>
    %484 = arith.addf %475, %483 : vector<1x16x128xf32>
    %485 = vector.extract_strided_slice %0 {offsets = [0, 4, 0], sizes = [1, 1, 128], strides = [1, 1, 1]} : vector<1x8x128xf32> to vector<1x1x128xf32>
    %486 = vector.shape_cast %485 : vector<1x1x128xf32> to vector<1x128xf32>
    %487 = vector.shape_cast %486 : vector<1x128xf32> to vector<1x1x128xf32>
    %c3_170 = arith.constant 3 : index
    %c4_171 = arith.constant 4 : index
    %c0_172 = arith.constant 0 : index
    %c0_173 = arith.constant 0 : index
    %488 = vector.load %arg2[%c3_170, %c4_171, %c0_172, %c0_173] : memref<4x8x16x128xf32, #tpu.memory_space<vmem>>, vector<1x1x16x128xf32>
    %489 = vector.shape_cast %488 : vector<1x1x16x128xf32> to vector<16x128xf32>
    %490 = vector.shape_cast %489 : vector<16x128xf32> to vector<1x16x128xf32>
    %491 = vector.broadcast %487 : vector<1x1x128xf32> to vector<1x16x128xf32>
    %492 = arith.mulf %491, %490 : vector<1x16x128xf32>
    %493 = arith.addf %484, %492 : vector<1x16x128xf32>
    %494 = vector.extract_strided_slice %0 {offsets = [0, 5, 0], sizes = [1, 1, 128], strides = [1, 1, 1]} : vector<1x8x128xf32> to vector<1x1x128xf32>
    %495 = vector.shape_cast %494 : vector<1x1x128xf32> to vector<1x128xf32>
    %496 = vector.shape_cast %495 : vector<1x128xf32> to vector<1x1x128xf32>
    %c3_174 = arith.constant 3 : index
    %c5_175 = arith.constant 5 : index
    %c0_176 = arith.constant 0 : index
    %c0_177 = arith.constant 0 : index
    %497 = vector.load %arg2[%c3_174, %c5_175, %c0_176, %c0_177] : memref<4x8x16x128xf32, #tpu.memory_space<vmem>>, vector<1x1x16x128xf32>
    %498 = vector.shape_cast %497 : vector<1x1x16x128xf32> to vector<16x128xf32>
    %499 = vector.shape_cast %498 : vector<16x128xf32> to vector<1x16x128xf32>
    %500 = vector.broadcast %496 : vector<1x1x128xf32> to vector<1x16x128xf32>
    %501 = arith.mulf %500, %499 : vector<1x16x128xf32>
    %502 = arith.addf %493, %501 : vector<1x16x128xf32>
    %503 = vector.extract_strided_slice %0 {offsets = [0, 6, 0], sizes = [1, 1, 128], strides = [1, 1, 1]} : vector<1x8x128xf32> to vector<1x1x128xf32>
    %504 = vector.shape_cast %503 : vector<1x1x128xf32> to vector<1x128xf32>
    %505 = vector.shape_cast %504 : vector<1x128xf32> to vector<1x1x128xf32>
    %c3_178 = arith.constant 3 : index
    %c6_179 = arith.constant 6 : index
    %c0_180 = arith.constant 0 : index
    %c0_181 = arith.constant 0 : index
    %506 = vector.load %arg2[%c3_178, %c6_179, %c0_180, %c0_181] : memref<4x8x16x128xf32, #tpu.memory_space<vmem>>, vector<1x1x16x128xf32>
    %507 = vector.shape_cast %506 : vector<1x1x16x128xf32> to vector<16x128xf32>
    %508 = vector.shape_cast %507 : vector<16x128xf32> to vector<1x16x128xf32>
    %509 = vector.broadcast %505 : vector<1x1x128xf32> to vector<1x16x128xf32>
    %510 = arith.mulf %509, %508 : vector<1x16x128xf32>
    %511 = arith.addf %502, %510 : vector<1x16x128xf32>
    %512 = vector.extract_strided_slice %0 {offsets = [0, 7, 0], sizes = [1, 1, 128], strides = [1, 1, 1]} : vector<1x8x128xf32> to vector<1x1x128xf32>
    %513 = vector.shape_cast %512 : vector<1x1x128xf32> to vector<1x128xf32>
    %514 = vector.shape_cast %513 : vector<1x128xf32> to vector<1x1x128xf32>
    %c3_182 = arith.constant 3 : index
    %c7_183 = arith.constant 7 : index
    %c0_184 = arith.constant 0 : index
    %c0_185 = arith.constant 0 : index
    %515 = vector.load %arg2[%c3_182, %c7_183, %c0_184, %c0_185] : memref<4x8x16x128xf32, #tpu.memory_space<vmem>>, vector<1x1x16x128xf32>
    %516 = vector.shape_cast %515 : vector<1x1x16x128xf32> to vector<16x128xf32>
    %517 = vector.shape_cast %516 : vector<16x128xf32> to vector<1x16x128xf32>
    %518 = vector.broadcast %514 : vector<1x1x128xf32> to vector<1x16x128xf32>
    %519 = arith.mulf %518, %517 : vector<1x16x128xf32>
    %520 = arith.addf %511, %519 : vector<1x16x128xf32>
    %cst_186 = arith.constant dense<0.000000e+00> : vector<1x16xf32>
    %521 = vector.multi_reduction <add>, %520, %cst_186 [2] : vector<1x16x128xf32> to vector<1x16xf32>
    %522 = vector.shape_cast %521 : vector<1x16xf32> to vector<1x16x1xf32>
    %cst_187 = arith.constant 1.562500e-02 : f32
    %523 = vector.broadcast %cst_187 : f32 to vector<1x16x1xf32>
    %524 = arith.mulf %522, %523 : vector<1x16x1xf32>
    %525 = arith.mulf %524, %524 : vector<1x16x1xf32>
    %cst_188 = arith.constant dense<0.000000e+00> : vector<1x1xf32>
    %526 = vector.multi_reduction <add>, %525, %cst_188 [1] : vector<1x16x1xf32> to vector<1x1xf32>
    %527 = vector.shape_cast %526 : vector<1x1xf32> to vector<1x1x1xf32>
    %528 = math.sqrt %527 : vector<1x1x1xf32>
    %cst_189 = arith.constant 1.000000e+00 : f32
    %529 = vector.broadcast %cst_189 : f32 to vector<1x1x1xf32>
    %530 = arith.addf %529, %527 : vector<1x1x1xf32>
    %531 = arith.divf %528, %530 : vector<1x1x1xf32>
    %532 = vector.broadcast %531 : vector<1x1x1xf32> to vector<1x16x1xf32>
    %533 = arith.mulf %524, %532 : vector<1x16x1xf32>
    %534 = vector.broadcast %533 : vector<1x16x1xf32> to vector<1x16x128xf32>
    %535 = arith.mulf %520, %534 : vector<1x16x128xf32>
    %cst_190 = arith.constant dense<0.000000e+00> : vector<1x128xf32>
    %536 = vector.multi_reduction <add>, %535, %cst_190 [1] : vector<1x16x128xf32> to vector<1x128xf32>
    %537 = vector.shape_cast %536 : vector<1x128xf32> to vector<1x1x128xf32>
    %cst_191 = arith.constant 0xFF800000 : f32
    %538 = vector.broadcast %cst_191 : f32 to vector<1x1x128xf32>
    %539 = arith.select %3, %537, %538 : vector<1x1x128xi1>, vector<1x1x128xf32>
    %cst_192 = arith.constant dense<0xFF800000> : vector<1x1xf32>
    %540 = vector.multi_reduction <maximumf>, %539, %cst_192 [2] : vector<1x1x128xf32> to vector<1x1xf32>
    %541 = vector.shape_cast %540 : vector<1x1xf32> to vector<1x1x1xf32>
    %542 = vector.broadcast %541 : vector<1x1x1xf32> to vector<1x1x128xf32>
    %543 = arith.subf %537, %542 : vector<1x1x128xf32>
    %544 = math.exp %543 : vector<1x1x128xf32>
    %cst_193 = arith.constant 0.000000e+00 : f32
    %545 = vector.broadcast %cst_193 : f32 to vector<1x1x128xf32>
    %546 = arith.select %3, %544, %545 : vector<1x1x128xi1>, vector<1x1x128xf32>
    %cst_194 = arith.constant dense<0.000000e+00> : vector<1x1xf32>
    %547 = vector.multi_reduction <add>, %546, %cst_194 [2] : vector<1x1x128xf32> to vector<1x1xf32>
    %548 = vector.shape_cast %547 : vector<1x1xf32> to vector<1x1x1xf32>
    %549 = vector.broadcast %546 : vector<1x1x128xf32> to vector<1x16x128xf32>
    %550 = arith.mulf %549, %520 : vector<1x16x128xf32>
    %cst_195 = arith.constant dense<0.000000e+00> : vector<1x16xf32>
    %551 = vector.multi_reduction <add>, %550, %cst_195 [2] : vector<1x16x128xf32> to vector<1x16xf32>
    %552 = vector.shape_cast %551 : vector<1x16xf32> to vector<1x16x1xf32>
    %553 = vector.broadcast %548 : vector<1x1x1xf32> to vector<1x16x1xf32>
    %554 = arith.divf %552, %553 : vector<1x16x1xf32>
    %555 = arith.mulf %554, %554 : vector<1x16x1xf32>
    %cst_196 = arith.constant dense<0.000000e+00> : vector<1x1xf32>
    %556 = vector.multi_reduction <add>, %555, %cst_196 [1] : vector<1x16x1xf32> to vector<1x1xf32>
    %557 = vector.shape_cast %556 : vector<1x1xf32> to vector<1x1x1xf32>
    %558 = math.sqrt %557 : vector<1x1x1xf32>
    %cst_197 = arith.constant 1.000000e+00 : f32
    %559 = vector.broadcast %cst_197 : f32 to vector<1x1x1xf32>
    %560 = arith.addf %559, %557 : vector<1x1x1xf32>
    %561 = arith.divf %558, %560 : vector<1x1x1xf32>
    %562 = vector.broadcast %561 : vector<1x1x1xf32> to vector<1x16x1xf32>
    %563 = arith.mulf %554, %562 : vector<1x16x1xf32>
    %564 = vector.broadcast %563 : vector<1x16x1xf32> to vector<1x16x128xf32>
    %565 = arith.mulf %520, %564 : vector<1x16x128xf32>
    %cst_198 = arith.constant dense<0.000000e+00> : vector<1x128xf32>
    %566 = vector.multi_reduction <add>, %565, %cst_198 [1] : vector<1x16x128xf32> to vector<1x128xf32>
    %567 = vector.shape_cast %566 : vector<1x128xf32> to vector<1x1x128xf32>
    %568 = arith.addf %537, %567 : vector<1x1x128xf32>
    %cst_199 = arith.constant 0xFF800000 : f32
    %569 = vector.broadcast %cst_199 : f32 to vector<1x1x128xf32>
    %570 = arith.select %3, %568, %569 : vector<1x1x128xi1>, vector<1x1x128xf32>
    %cst_200 = arith.constant dense<0xFF800000> : vector<1x1xf32>
    %571 = vector.multi_reduction <maximumf>, %570, %cst_200 [2] : vector<1x1x128xf32> to vector<1x1xf32>
    %572 = vector.shape_cast %571 : vector<1x1xf32> to vector<1x1x1xf32>
    %573 = vector.broadcast %572 : vector<1x1x1xf32> to vector<1x1x128xf32>
    %574 = arith.subf %568, %573 : vector<1x1x128xf32>
    %575 = math.exp %574 : vector<1x1x128xf32>
    %cst_201 = arith.constant 0.000000e+00 : f32
    %576 = vector.broadcast %cst_201 : f32 to vector<1x1x128xf32>
    %577 = arith.select %3, %575, %576 : vector<1x1x128xi1>, vector<1x1x128xf32>
    %cst_202 = arith.constant dense<0.000000e+00> : vector<1x1xf32>
    %578 = vector.multi_reduction <add>, %577, %cst_202 [2] : vector<1x1x128xf32> to vector<1x1xf32>
    %579 = vector.shape_cast %578 : vector<1x1xf32> to vector<1x1x1xf32>
    %580 = vector.broadcast %577 : vector<1x1x128xf32> to vector<1x16x128xf32>
    %581 = arith.mulf %580, %520 : vector<1x16x128xf32>
    %cst_203 = arith.constant dense<0.000000e+00> : vector<1x16xf32>
    %582 = vector.multi_reduction <add>, %581, %cst_203 [2] : vector<1x16x128xf32> to vector<1x16xf32>
    %583 = vector.shape_cast %582 : vector<1x16xf32> to vector<1x16x1xf32>
    %584 = vector.broadcast %579 : vector<1x1x1xf32> to vector<1x16x1xf32>
    %585 = arith.divf %583, %584 : vector<1x16x1xf32>
    %586 = arith.mulf %585, %585 : vector<1x16x1xf32>
    %cst_204 = arith.constant dense<0.000000e+00> : vector<1x1xf32>
    %587 = vector.multi_reduction <add>, %586, %cst_204 [1] : vector<1x16x1xf32> to vector<1x1xf32>
    %588 = vector.shape_cast %587 : vector<1x1xf32> to vector<1x1x1xf32>
    %589 = math.sqrt %588 : vector<1x1x1xf32>
    %cst_205 = arith.constant 1.000000e+00 : f32
    %590 = vector.broadcast %cst_205 : f32 to vector<1x1x1xf32>
    %591 = arith.addf %590, %588 : vector<1x1x1xf32>
    %592 = arith.divf %589, %591 : vector<1x1x1xf32>
    %593 = vector.broadcast %592 : vector<1x1x1xf32> to vector<1x16x1xf32>
    %594 = arith.mulf %585, %593 : vector<1x16x1xf32>
    %595 = vector.shape_cast %594 : vector<1x16x1xf32> to vector<1x16xf32>
    %cst_206 = arith.constant 0.000000e+00 : f32
    %596 = vector.broadcast %cst_206 : f32 to vector<1x64xf32>
    %597 = tpu.concatenate %151, %299, %447, %595, %596 in 1 : vector<1x16xf32>, vector<1x16xf32>, vector<1x16xf32>, vector<1x16xf32>, vector<1x64xf32> -> vector<1x128xf32>
    %598 = vector.shape_cast %597 : vector<1x128xf32> to vector<1x1x128xf32>
    %c0_207 = arith.constant 0 : index
    %c0_208 = arith.constant 0 : index
    %c0_209 = arith.constant 0 : index
    %599 = vector.load %arg3[%c0_207, %c0_208, %c0_209] : memref<1x1x128xf32, #tpu.memory_space<vmem>>, vector<1x1x128xf32>
    tpu.vector_store %arg3[%c0_207, %c0_208, %c0_209], %598 {strides = array<i32>} : memref<1x1x128xf32, #tpu.memory_space<vmem>>, vector<1x1x128xf32>,
    return
  }
  func.func @transform_0(%arg0: i32) -> (i32, i32, i32) {
    %c0_i32 = arith.constant 0 : i32
    %c0_i32_0 = arith.constant 0 : i32
    %c0_i32_1 = arith.constant 0 : i32
    return %arg0, %c0_i32, %c0_i32_0 : i32, i32, i32
  }
  func.func @transform_1(%arg0: i32) -> (i32, i32, i32, i32) {
    %c0_i32 = arith.constant 0 : i32
    %c0_i32_0 = arith.constant 0 : i32
    %c0_i32_1 = arith.constant 0 : i32
    %c0_i32_2 = arith.constant 0 : i32
    %c0_i32_3 = arith.constant 0 : i32
    return %c0_i32, %c0_i32_0, %c0_i32_1, %c0_i32_2 : i32, i32, i32, i32
  }
  func.func @transform_2(%arg0: i32) -> (i32, i32, i32) {
    %c0_i32 = arith.constant 0 : i32
    %c0_i32_0 = arith.constant 0 : i32
    %c0_i32_1 = arith.constant 0 : i32
    return %arg0, %c0_i32, %c0_i32_0 : i32, i32, i32
  }
}

module attributes {stable_mosaic.version = 11 : i64} {
  func.func @digitcaps_kernel(%arg0: i32, %arg1: memref<1x8x128xf32, #tpu.memory_space<vmem>>, %arg2: memref<4x8x16x128xf32, #tpu.memory_space<vmem>>, %arg3: memref<1x1x128xf32, #tpu.memory_space<vmem>>) attributes {dimension_semantics = [#tpu.dimension_semantics<parallel>], iteration_bounds = array<i64: 2>, scalar_prefetch = 0 : i64, scratch_operands = 0 : i64, tpu.core_type = #tpu.core_type<tc>, window_params = [{transform_indices = @transform_0, window_bounds = array<i64: 1, 8, 128>}, {pipeline_mode = #tpu.pipeline_mode<synchronous>, transform_indices = @transform_1, window_bounds = array<i64: 4, 8, 16, 128>}, {transform_indices = @transform_2, window_bounds = array<i64: 1, 1, 128>}]} {
    %c0 = arith.constant 0 : index
    %c0_0 = arith.constant 0 : index
    %c0_1 = arith.constant 0 : index
    %0 = vector.load %arg1[%c0, %c0_0, %c0_1] : memref<1x8x128xf32, #tpu.memory_space<vmem>>, vector<1x8x128xf32>
    %1 = tpu.iota {dimensions = array<i32: 2>} : vector<1x1x128xi32>
    %c64_i32 = arith.constant 64 : i32
    %2 = vector.broadcast %c64_i32 : i32 to vector<1x1x128xi32>
    %3 = arith.cmpi slt, %1, %2 : vector<1x1x128xi32>
    %cst = arith.constant 0.000000e+00 : f32
    %4 = vector.broadcast %cst : f32 to vector<1x16x128xf32>
    %5 = vector.extract_strided_slice %0 {offsets = [0, 0, 0], sizes = [1, 1, 128], strides = [1, 1, 1]} : vector<1x8x128xf32> to vector<1x1x128xf32>
    %6 = vector.shape_cast %5 : vector<1x1x128xf32> to vector<1x128xf32>
    %7 = vector.shape_cast %6 : vector<1x128xf32> to vector<1x1x128xf32>
    %c0_2 = arith.constant 0 : index
    %c0_3 = arith.constant 0 : index
    %c0_4 = arith.constant 0 : index
    %c0_5 = arith.constant 0 : index
    %8 = vector.load %arg2[%c0_2, %c0_3, %c0_4, %c0_5] : memref<4x8x16x128xf32, #tpu.memory_space<vmem>>, vector<1x1x16x128xf32>
    %9 = vector.shape_cast %8 : vector<1x1x16x128xf32> to vector<16x128xf32>
    %10 = vector.shape_cast %9 : vector<16x128xf32> to vector<1x16x128xf32>
    %11 = vector.broadcast %7 : vector<1x1x128xf32> to vector<1x16x128xf32>
    %12 = arith.mulf %11, %10 : vector<1x16x128xf32>
    %13 = arith.addf %4, %12 : vector<1x16x128xf32>
    %14 = vector.extract_strided_slice %0 {offsets = [0, 1, 0], sizes = [1, 1, 128], strides = [1, 1, 1]} : vector<1x8x128xf32> to vector<1x1x128xf32>
    %15 = vector.shape_cast %14 : vector<1x1x128xf32> to vector<1x128xf32>
    %16 = vector.shape_cast %15 : vector<1x128xf32> to vector<1x1x128xf32>
    %c0_6 = arith.constant 0 : index
    %c1 = arith.constant 1 : index
    %c0_7 = arith.constant 0 : index
    %c0_8 = arith.constant 0 : index
    %17 = vector.load %arg2[%c0_6, %c1, %c0_7, %c0_8] : memref<4x8x16x128xf32, #tpu.memory_space<vmem>>, vector<1x1x16x128xf32>
    %18 = vector.shape_cast %17 : vector<1x1x16x128xf32> to vector<16x128xf32>
    %19 = vector.shape_cast %18 : vector<16x128xf32> to vector<1x16x128xf32>
    %20 = vector.broadcast %16 : vector<1x1x128xf32> to vector<1x16x128xf32>
    %21 = arith.mulf %20, %19 : vector<1x16x128xf32>
    %22 = arith.addf %13, %21 : vector<1x16x128xf32>
    %23 = vector.extract_strided_slice %0 {offsets = [0, 2, 0], sizes = [1, 1, 128], strides = [1, 1, 1]} : vector<1x8x128xf32> to vector<1x1x128xf32>
    %24 = vector.shape_cast %23 : vector<1x1x128xf32> to vector<1x128xf32>
    %25 = vector.shape_cast %24 : vector<1x128xf32> to vector<1x1x128xf32>
    %c0_9 = arith.constant 0 : index
    %c2 = arith.constant 2 : index
    %c0_10 = arith.constant 0 : index
    %c0_11 = arith.constant 0 : index
    %26 = vector.load %arg2[%c0_9, %c2, %c0_10, %c0_11] : memref<4x8x16x128xf32, #tpu.memory_space<vmem>>, vector<1x1x16x128xf32>
    %27 = vector.shape_cast %26 : vector<1x1x16x128xf32> to vector<16x128xf32>
    %28 = vector.shape_cast %27 : vector<16x128xf32> to vector<1x16x128xf32>
    %29 = vector.broadcast %25 : vector<1x1x128xf32> to vector<1x16x128xf32>
    %30 = arith.mulf %29, %28 : vector<1x16x128xf32>
    %31 = arith.addf %22, %30 : vector<1x16x128xf32>
    %32 = vector.extract_strided_slice %0 {offsets = [0, 3, 0], sizes = [1, 1, 128], strides = [1, 1, 1]} : vector<1x8x128xf32> to vector<1x1x128xf32>
    %33 = vector.shape_cast %32 : vector<1x1x128xf32> to vector<1x128xf32>
    %34 = vector.shape_cast %33 : vector<1x128xf32> to vector<1x1x128xf32>
    %c0_12 = arith.constant 0 : index
    %c3 = arith.constant 3 : index
    %c0_13 = arith.constant 0 : index
    %c0_14 = arith.constant 0 : index
    %35 = vector.load %arg2[%c0_12, %c3, %c0_13, %c0_14] : memref<4x8x16x128xf32, #tpu.memory_space<vmem>>, vector<1x1x16x128xf32>
    %36 = vector.shape_cast %35 : vector<1x1x16x128xf32> to vector<16x128xf32>
    %37 = vector.shape_cast %36 : vector<16x128xf32> to vector<1x16x128xf32>
    %38 = vector.broadcast %34 : vector<1x1x128xf32> to vector<1x16x128xf32>
    %39 = arith.mulf %38, %37 : vector<1x16x128xf32>
    %40 = arith.addf %31, %39 : vector<1x16x128xf32>
    %41 = vector.extract_strided_slice %0 {offsets = [0, 4, 0], sizes = [1, 1, 128], strides = [1, 1, 1]} : vector<1x8x128xf32> to vector<1x1x128xf32>
    %42 = vector.shape_cast %41 : vector<1x1x128xf32> to vector<1x128xf32>
    %43 = vector.shape_cast %42 : vector<1x128xf32> to vector<1x1x128xf32>
    %c0_15 = arith.constant 0 : index
    %c4 = arith.constant 4 : index
    %c0_16 = arith.constant 0 : index
    %c0_17 = arith.constant 0 : index
    %44 = vector.load %arg2[%c0_15, %c4, %c0_16, %c0_17] : memref<4x8x16x128xf32, #tpu.memory_space<vmem>>, vector<1x1x16x128xf32>
    %45 = vector.shape_cast %44 : vector<1x1x16x128xf32> to vector<16x128xf32>
    %46 = vector.shape_cast %45 : vector<16x128xf32> to vector<1x16x128xf32>
    %47 = vector.broadcast %43 : vector<1x1x128xf32> to vector<1x16x128xf32>
    %48 = arith.mulf %47, %46 : vector<1x16x128xf32>
    %49 = arith.addf %40, %48 : vector<1x16x128xf32>
    %50 = vector.extract_strided_slice %0 {offsets = [0, 5, 0], sizes = [1, 1, 128], strides = [1, 1, 1]} : vector<1x8x128xf32> to vector<1x1x128xf32>
    %51 = vector.shape_cast %50 : vector<1x1x128xf32> to vector<1x128xf32>
    %52 = vector.shape_cast %51 : vector<1x128xf32> to vector<1x1x128xf32>
    %c0_18 = arith.constant 0 : index
    %c5 = arith.constant 5 : index
    %c0_19 = arith.constant 0 : index
    %c0_20 = arith.constant 0 : index
    %53 = vector.load %arg2[%c0_18, %c5, %c0_19, %c0_20] : memref<4x8x16x128xf32, #tpu.memory_space<vmem>>, vector<1x1x16x128xf32>
    %54 = vector.shape_cast %53 : vector<1x1x16x128xf32> to vector<16x128xf32>
    %55 = vector.shape_cast %54 : vector<16x128xf32> to vector<1x16x128xf32>
    %56 = vector.broadcast %52 : vector<1x1x128xf32> to vector<1x16x128xf32>
    %57 = arith.mulf %56, %55 : vector<1x16x128xf32>
    %58 = arith.addf %49, %57 : vector<1x16x128xf32>
    %59 = vector.extract_strided_slice %0 {offsets = [0, 6, 0], sizes = [1, 1, 128], strides = [1, 1, 1]} : vector<1x8x128xf32> to vector<1x1x128xf32>
    %60 = vector.shape_cast %59 : vector<1x1x128xf32> to vector<1x128xf32>
    %61 = vector.shape_cast %60 : vector<1x128xf32> to vector<1x1x128xf32>
    %c0_21 = arith.constant 0 : index
    %c6 = arith.constant 6 : index
    %c0_22 = arith.constant 0 : index
    %c0_23 = arith.constant 0 : index
    %62 = vector.load %arg2[%c0_21, %c6, %c0_22, %c0_23] : memref<4x8x16x128xf32, #tpu.memory_space<vmem>>, vector<1x1x16x128xf32>
    %63 = vector.shape_cast %62 : vector<1x1x16x128xf32> to vector<16x128xf32>
    %64 = vector.shape_cast %63 : vector<16x128xf32> to vector<1x16x128xf32>
    %65 = vector.broadcast %61 : vector<1x1x128xf32> to vector<1x16x128xf32>
    %66 = arith.mulf %65, %64 : vector<1x16x128xf32>
    %67 = arith.addf %58, %66 : vector<1x16x128xf32>
    %68 = vector.extract_strided_slice %0 {offsets = [0, 7, 0], sizes = [1, 1, 128], strides = [1, 1, 1]} : vector<1x8x128xf32> to vector<1x1x128xf32>
    %69 = vector.shape_cast %68 : vector<1x1x128xf32> to vector<1x128xf32>
    %70 = vector.shape_cast %69 : vector<1x128xf32> to vector<1x1x128xf32>
    %c0_24 = arith.constant 0 : index
    %c7 = arith.constant 7 : index
    %c0_25 = arith.constant 0 : index
    %c0_26 = arith.constant 0 : index
    %71 = vector.load %arg2[%c0_24, %c7, %c0_25, %c0_26] : memref<4x8x16x128xf32, #tpu.memory_space<vmem>>, vector<1x1x16x128xf32>
    %72 = vector.shape_cast %71 : vector<1x1x16x128xf32> to vector<16x128xf32>
    %73 = vector.shape_cast %72 : vector<16x128xf32> to vector<1x16x128xf32>
    %74 = vector.broadcast %70 : vector<1x1x128xf32> to vector<1x16x128xf32>
    %75 = arith.mulf %74, %73 : vector<1x16x128xf32>
    %76 = arith.addf %67, %75 : vector<1x16x128xf32>
    %cst_27 = arith.constant dense<0.000000e+00> : vector<1x16xf32>
    %77 = vector.multi_reduction <add>, %76, %cst_27 [2] : vector<1x16x128xf32> to vector<1x16xf32>
    %78 = vector.shape_cast %77 : vector<1x16xf32> to vector<1x16x1xf32>
    %cst_28 = arith.constant 1.562500e-02 : f32
    %79 = vector.broadcast %cst_28 : f32 to vector<1x16x1xf32>
    %80 = arith.mulf %78, %79 : vector<1x16x1xf32>
    %81 = arith.mulf %80, %80 : vector<1x16x1xf32>
    %cst_29 = arith.constant dense<0.000000e+00> : vector<1x1xf32>
    %82 = vector.multi_reduction <add>, %81, %cst_29 [1] : vector<1x16x1xf32> to vector<1x1xf32>
    %83 = vector.shape_cast %82 : vector<1x1xf32> to vector<1x1x1xf32>
    %84 = math.sqrt %83 : vector<1x1x1xf32>
    %cst_30 = arith.constant 1.000000e+00 : f32
    %85 = vector.broadcast %cst_30 : f32 to vector<1x1x1xf32>
    %86 = arith.addf %85, %83 : vector<1x1x1xf32>
    %87 = arith.divf %84, %86 : vector<1x1x1xf32>
    %88 = vector.broadcast %87 : vector<1x1x1xf32> to vector<1x16x1xf32>
    %89 = arith.mulf %80, %88 : vector<1x16x1xf32>
    %90 = vector.broadcast %89 : vector<1x16x1xf32> to vector<1x16x128xf32>
    %91 = arith.mulf %76, %90 : vector<1x16x128xf32>
    %cst_31 = arith.constant dense<0.000000e+00> : vector<1x128xf32>
    %92 = vector.multi_reduction <add>, %91, %cst_31 [1] : vector<1x16x128xf32> to vector<1x128xf32>
    %93 = vector.shape_cast %92 : vector<1x128xf32> to vector<1x1x128xf32>
    %cst_32 = arith.constant 0xFF800000 : f32
    %94 = vector.broadcast %cst_32 : f32 to vector<1x1x128xf32>
    %95 = arith.select %3, %93, %94 : vector<1x1x128xi1>, vector<1x1x128xf32>
    %cst_33 = arith.constant dense<0xFF800000> : vector<1x1xf32>
    %96 = vector.multi_reduction <maximumf>, %95, %cst_33 [2] : vector<1x1x128xf32> to vector<1x1xf32>
    %97 = vector.shape_cast %96 : vector<1x1xf32> to vector<1x1x1xf32>
    %98 = vector.broadcast %97 : vector<1x1x1xf32> to vector<1x1x128xf32>
    %99 = arith.subf %93, %98 : vector<1x1x128xf32>
    %100 = math.exp %99 : vector<1x1x128xf32>
    %cst_34 = arith.constant 0.000000e+00 : f32
    %101 = vector.broadcast %cst_34 : f32 to vector<1x1x128xf32>
    %102 = arith.select %3, %100, %101 : vector<1x1x128xi1>, vector<1x1x128xf32>
    %cst_35 = arith.constant dense<0.000000e+00> : vector<1x1xf32>
    %103 = vector.multi_reduction <add>, %102, %cst_35 [2] : vector<1x1x128xf32> to vector<1x1xf32>
    %104 = vector.shape_cast %103 : vector<1x1xf32> to vector<1x1x1xf32>
    %105 = vector.broadcast %102 : vector<1x1x128xf32> to vector<1x16x128xf32>
    %106 = arith.mulf %105, %76 : vector<1x16x128xf32>
    %cst_36 = arith.constant dense<0.000000e+00> : vector<1x16xf32>
    %107 = vector.multi_reduction <add>, %106, %cst_36 [2] : vector<1x16x128xf32> to vector<1x16xf32>
    %108 = vector.shape_cast %107 : vector<1x16xf32> to vector<1x16x1xf32>
    %109 = vector.broadcast %104 : vector<1x1x1xf32> to vector<1x16x1xf32>
    %110 = arith.divf %108, %109 : vector<1x16x1xf32>
    %111 = arith.mulf %110, %110 : vector<1x16x1xf32>
    %cst_37 = arith.constant dense<0.000000e+00> : vector<1x1xf32>
    %112 = vector.multi_reduction <add>, %111, %cst_37 [1] : vector<1x16x1xf32> to vector<1x1xf32>
    %113 = vector.shape_cast %112 : vector<1x1xf32> to vector<1x1x1xf32>
    %114 = math.sqrt %113 : vector<1x1x1xf32>
    %cst_38 = arith.constant 1.000000e+00 : f32
    %115 = vector.broadcast %cst_38 : f32 to vector<1x1x1xf32>
    %116 = arith.addf %115, %113 : vector<1x1x1xf32>
    %117 = arith.divf %114, %116 : vector<1x1x1xf32>
    %118 = vector.broadcast %117 : vector<1x1x1xf32> to vector<1x16x1xf32>
    %119 = arith.mulf %110, %118 : vector<1x16x1xf32>
    %120 = vector.broadcast %119 : vector<1x16x1xf32> to vector<1x16x128xf32>
    %121 = arith.mulf %76, %120 : vector<1x16x128xf32>
    %cst_39 = arith.constant dense<0.000000e+00> : vector<1x128xf32>
    %122 = vector.multi_reduction <add>, %121, %cst_39 [1] : vector<1x16x128xf32> to vector<1x128xf32>
    %123 = vector.shape_cast %122 : vector<1x128xf32> to vector<1x1x128xf32>
    %124 = arith.addf %93, %123 : vector<1x1x128xf32>
    %cst_40 = arith.constant 0xFF800000 : f32
    %125 = vector.broadcast %cst_40 : f32 to vector<1x1x128xf32>
    %126 = arith.select %3, %124, %125 : vector<1x1x128xi1>, vector<1x1x128xf32>
    %cst_41 = arith.constant dense<0xFF800000> : vector<1x1xf32>
    %127 = vector.multi_reduction <maximumf>, %126, %cst_41 [2] : vector<1x1x128xf32> to vector<1x1xf32>
    %128 = vector.shape_cast %127 : vector<1x1xf32> to vector<1x1x1xf32>
    %129 = vector.broadcast %128 : vector<1x1x1xf32> to vector<1x1x128xf32>
    %130 = arith.subf %124, %129 : vector<1x1x128xf32>
    %131 = math.exp %130 : vector<1x1x128xf32>
    %cst_42 = arith.constant 0.000000e+00 : f32
    %132 = vector.broadcast %cst_42 : f32 to vector<1x1x128xf32>
    %133 = arith.select %3, %131, %132 : vector<1x1x128xi1>, vector<1x1x128xf32>
    %cst_43 = arith.constant dense<0.000000e+00> : vector<1x1xf32>
    %134 = vector.multi_reduction <add>, %133, %cst_43 [2] : vector<1x1x128xf32> to vector<1x1xf32>
    %135 = vector.shape_cast %134 : vector<1x1xf32> to vector<1x1x1xf32>
    %136 = vector.broadcast %133 : vector<1x1x128xf32> to vector<1x16x128xf32>
    %137 = arith.mulf %136, %76 : vector<1x16x128xf32>
    %cst_44 = arith.constant dense<0.000000e+00> : vector<1x16xf32>
    %138 = vector.multi_reduction <add>, %137, %cst_44 [2] : vector<1x16x128xf32> to vector<1x16xf32>
    %139 = vector.shape_cast %138 : vector<1x16xf32> to vector<1x16x1xf32>
    %140 = vector.broadcast %135 : vector<1x1x1xf32> to vector<1x16x1xf32>
    %141 = arith.divf %139, %140 : vector<1x16x1xf32>
    %142 = arith.mulf %141, %141 : vector<1x16x1xf32>
    %cst_45 = arith.constant dense<0.000000e+00> : vector<1x1xf32>
    %143 = vector.multi_reduction <add>, %142, %cst_45 [1] : vector<1x16x1xf32> to vector<1x1xf32>
    %144 = vector.shape_cast %143 : vector<1x1xf32> to vector<1x1x1xf32>
    %145 = math.sqrt %144 : vector<1x1x1xf32>
    %cst_46 = arith.constant 1.000000e+00 : f32
    %146 = vector.broadcast %cst_46 : f32 to vector<1x1x1xf32>
    %147 = arith.addf %146, %144 : vector<1x1x1xf32>
    %148 = arith.divf %145, %147 : vector<1x1x1xf32>
    %149 = vector.broadcast %148 : vector<1x1x1xf32> to vector<1x16x1xf32>
    %150 = arith.mulf %141, %149 : vector<1x16x1xf32>
    %151 = vector.shape_cast %150 : vector<1x16x1xf32> to vector<1x16xf32>
    %cst_47 = arith.constant 0.000000e+00 : f32
    %152 = vector.broadcast %cst_47 : f32 to vector<1x16x128xf32>
    %153 = vector.extract_strided_slice %0 {offsets = [0, 0, 0], sizes = [1, 1, 128], strides = [1, 1, 1]} : vector<1x8x128xf32> to vector<1x1x128xf32>
    %154 = vector.shape_cast %153 : vector<1x1x128xf32> to vector<1x128xf32>
    %155 = vector.shape_cast %154 : vector<1x128xf32> to vector<1x1x128xf32>
    %c1_48 = arith.constant 1 : index
    %c0_49 = arith.constant 0 : index
    %c0_50 = arith.constant 0 : index
    %c0_51 = arith.constant 0 : index
    %156 = vector.load %arg2[%c1_48, %c0_49, %c0_50, %c0_51] : memref<4x8x16x128xf32, #tpu.memory_space<vmem>>, vector<1x1x16x128xf32>
    %157 = vector.shape_cast %156 : vector<1x1x16x128xf32> to vector<16x128xf32>
    %158 = vector.shape_cast %157 : vector<16x128xf32> to vector<1x16x128xf32>
    %159 = vector.broadcast %155 : vector<1x1x128xf32> to vector<1x16x128xf32>
    %160 = arith.mulf %159, %158 : vector<1x16x128xf32>
    %161 = arith.addf %152, %160 : vector<1x16x128xf32>
    %162 = vector.extract_strided_slice %0 {offsets = [0, 1, 0], sizes = [1, 1, 128], strides = [1, 1, 1]} : vector<1x8x128xf32> to vector<1x1x128xf32>
    %163 = vector.shape_cast %162 : vector<1x1x128xf32> to vector<1x128xf32>
    %164 = vector.shape_cast %163 : vector<1x128xf32> to vector<1x1x128xf32>
    %c1_52 = arith.constant 1 : index
    %c1_53 = arith.constant 1 : index
    %c0_54 = arith.constant 0 : index
    %c0_55 = arith.constant 0 : index
    %165 = vector.load %arg2[%c1_52, %c1_53, %c0_54, %c0_55] : memref<4x8x16x128xf32, #tpu.memory_space<vmem>>, vector<1x1x16x128xf32>
    %166 = vector.shape_cast %165 : vector<1x1x16x128xf32> to vector<16x128xf32>
    %167 = vector.shape_cast %166 : vector<16x128xf32> to vector<1x16x128xf32>
    %168 = vector.broadcast %164 : vector<1x1x128xf32> to vector<1x16x128xf32>
    %169 = arith.mulf %168, %167 : vector<1x16x128xf32>
    %170 = arith.addf %161, %169 : vector<1x16x128xf32>
    %171 = vector.extract_strided_slice %0 {offsets = [0, 2, 0], sizes = [1, 1, 128], strides = [1, 1, 1]} : vector<1x8x128xf32> to vector<1x1x128xf32>
    %172 = vector.shape_cast %171 : vector<1x1x128xf32> to vector<1x128xf32>
    %173 = vector.shape_cast %172 : vector<1x128xf32> to vector<1x1x128xf32>
    %c1_56 = arith.constant 1 : index
    %c2_57 = arith.constant 2 : index
    %c0_58 = arith.constant 0 : index
    %c0_59 = arith.constant 0 : index
    %174 = vector.load %arg2[%c1_56, %c2_57, %c0_58, %c0_59] : memref<4x8x16x128xf32, #tpu.memory_space<vmem>>, vector<1x1x16x128xf32>
    %175 = vector.shape_cast %174 : vector<1x1x16x128xf32> to vector<16x128xf32>
    %176 = vector.shape_cast %175 : vector<16x128xf32> to vector<1x16x128xf32>
    %177 = vector.broadcast %173 : vector<1x1x128xf32> to vector<1x16x128xf32>
    %178 = arith.mulf %177, %176 : vector<1x16x128xf32>
    %179 = arith.addf %170, %178 : vector<1x16x128xf32>
    %180 = vector.extract_strided_slice %0 {offsets = [0, 3, 0], sizes = [1, 1, 128], strides = [1, 1, 1]} : vector<1x8x128xf32> to vector<1x1x128xf32>
    %181 = vector.shape_cast %180 : vector<1x1x128xf32> to vector<1x128xf32>
    %182 = vector.shape_cast %181 : vector<1x128xf32> to vector<1x1x128xf32>
    %c1_60 = arith.constant 1 : index
    %c3_61 = arith.constant 3 : index
    %c0_62 = arith.constant 0 : index
    %c0_63 = arith.constant 0 : index
    %183 = vector.load %arg2[%c1_60, %c3_61, %c0_62, %c0_63] : memref<4x8x16x128xf32, #tpu.memory_space<vmem>>, vector<1x1x16x128xf32>
    %184 = vector.shape_cast %183 : vector<1x1x16x128xf32> to vector<16x128xf32>
    %185 = vector.shape_cast %184 : vector<16x128xf32> to vector<1x16x128xf32>
    %186 = vector.broadcast %182 : vector<1x1x128xf32> to vector<1x16x128xf32>
    %187 = arith.mulf %186, %185 : vector<1x16x128xf32>
    %188 = arith.addf %179, %187 : vector<1x16x128xf32>
    %189 = vector.extract_strided_slice %0 {offsets = [0, 4, 0], sizes = [1, 1, 128], strides = [1, 1, 1]} : vector<1x8x128xf32> to vector<1x1x128xf32>
    %190 = vector.shape_cast %189 : vector<1x1x128xf32> to vector<1x128xf32>
    %191 = vector.shape_cast %190 : vector<1x128xf32> to vector<1x1x128xf32>
    %c1_64 = arith.constant 1 : index
    %c4_65 = arith.constant 4 : index
    %c0_66 = arith.constant 0 : index
    %c0_67 = arith.constant 0 : index
    %192 = vector.load %arg2[%c1_64, %c4_65, %c0_66, %c0_67] : memref<4x8x16x128xf32, #tpu.memory_space<vmem>>, vector<1x1x16x128xf32>
    %193 = vector.shape_cast %192 : vector<1x1x16x128xf32> to vector<16x128xf32>
    %194 = vector.shape_cast %193 : vector<16x128xf32> to vector<1x16x128xf32>
    %195 = vector.broadcast %191 : vector<1x1x128xf32> to vector<1x16x128xf32>
    %196 = arith.mulf %195, %194 : vector<1x16x128xf32>
    %197 = arith.addf %188, %196 : vector<1x16x128xf32>
    %198 = vector.extract_strided_slice %0 {offsets = [0, 5, 0], sizes = [1, 1, 128], strides = [1, 1, 1]} : vector<1x8x128xf32> to vector<1x1x128xf32>
    %199 = vector.shape_cast %198 : vector<1x1x128xf32> to vector<1x128xf32>
    %200 = vector.shape_cast %199 : vector<1x128xf32> to vector<1x1x128xf32>
    %c1_68 = arith.constant 1 : index
    %c5_69 = arith.constant 5 : index
    %c0_70 = arith.constant 0 : index
    %c0_71 = arith.constant 0 : index
    %201 = vector.load %arg2[%c1_68, %c5_69, %c0_70, %c0_71] : memref<4x8x16x128xf32, #tpu.memory_space<vmem>>, vector<1x1x16x128xf32>
    %202 = vector.shape_cast %201 : vector<1x1x16x128xf32> to vector<16x128xf32>
    %203 = vector.shape_cast %202 : vector<16x128xf32> to vector<1x16x128xf32>
    %204 = vector.broadcast %200 : vector<1x1x128xf32> to vector<1x16x128xf32>
    %205 = arith.mulf %204, %203 : vector<1x16x128xf32>
    %206 = arith.addf %197, %205 : vector<1x16x128xf32>
    %207 = vector.extract_strided_slice %0 {offsets = [0, 6, 0], sizes = [1, 1, 128], strides = [1, 1, 1]} : vector<1x8x128xf32> to vector<1x1x128xf32>
    %208 = vector.shape_cast %207 : vector<1x1x128xf32> to vector<1x128xf32>
    %209 = vector.shape_cast %208 : vector<1x128xf32> to vector<1x1x128xf32>
    %c1_72 = arith.constant 1 : index
    %c6_73 = arith.constant 6 : index
    %c0_74 = arith.constant 0 : index
    %c0_75 = arith.constant 0 : index
    %210 = vector.load %arg2[%c1_72, %c6_73, %c0_74, %c0_75] : memref<4x8x16x128xf32, #tpu.memory_space<vmem>>, vector<1x1x16x128xf32>
    %211 = vector.shape_cast %210 : vector<1x1x16x128xf32> to vector<16x128xf32>
    %212 = vector.shape_cast %211 : vector<16x128xf32> to vector<1x16x128xf32>
    %213 = vector.broadcast %209 : vector<1x1x128xf32> to vector<1x16x128xf32>
    %214 = arith.mulf %213, %212 : vector<1x16x128xf32>
    %215 = arith.addf %206, %214 : vector<1x16x128xf32>
    %216 = vector.extract_strided_slice %0 {offsets = [0, 7, 0], sizes = [1, 1, 128], strides = [1, 1, 1]} : vector<1x8x128xf32> to vector<1x1x128xf32>
    %217 = vector.shape_cast %216 : vector<1x1x128xf32> to vector<1x128xf32>
    %218 = vector.shape_cast %217 : vector<1x128xf32> to vector<1x1x128xf32>
    %c1_76 = arith.constant 1 : index
    %c7_77 = arith.constant 7 : index
    %c0_78 = arith.constant 0 : index
    %c0_79 = arith.constant 0 : index
    %219 = vector.load %arg2[%c1_76, %c7_77, %c0_78, %c0_79] : memref<4x8x16x128xf32, #tpu.memory_space<vmem>>, vector<1x1x16x128xf32>
    %220 = vector.shape_cast %219 : vector<1x1x16x128xf32> to vector<16x128xf32>
    %221 = vector.shape_cast %220 : vector<16x128xf32> to vector<1x16x128xf32>
    %222 = vector.broadcast %218 : vector<1x1x128xf32> to vector<1x16x128xf32>
    %223 = arith.mulf %222, %221 : vector<1x16x128xf32>
    %224 = arith.addf %215, %223 : vector<1x16x128xf32>
    %cst_80 = arith.constant dense<0.000000e+00> : vector<1x16xf32>
    %225 = vector.multi_reduction <add>, %224, %cst_80 [2] : vector<1x16x128xf32> to vector<1x16xf32>
    %226 = vector.shape_cast %225 : vector<1x16xf32> to vector<1x16x1xf32>
    %cst_81 = arith.constant 1.562500e-02 : f32
    %227 = vector.broadcast %cst_81 : f32 to vector<1x16x1xf32>
    %228 = arith.mulf %226, %227 : vector<1x16x1xf32>
    %229 = arith.mulf %228, %228 : vector<1x16x1xf32>
    %cst_82 = arith.constant dense<0.000000e+00> : vector<1x1xf32>
    %230 = vector.multi_reduction <add>, %229, %cst_82 [1] : vector<1x16x1xf32> to vector<1x1xf32>
    %231 = vector.shape_cast %230 : vector<1x1xf32> to vector<1x1x1xf32>
    %232 = math.sqrt %231 : vector<1x1x1xf32>
    %cst_83 = arith.constant 1.000000e+00 : f32
    %233 = vector.broadcast %cst_83 : f32 to vector<1x1x1xf32>
    %234 = arith.addf %233, %231 : vector<1x1x1xf32>
    %235 = arith.divf %232, %234 : vector<1x1x1xf32>
    %236 = vector.broadcast %235 : vector<1x1x1xf32> to vector<1x16x1xf32>
    %237 = arith.mulf %228, %236 : vector<1x16x1xf32>
    %238 = vector.broadcast %237 : vector<1x16x1xf32> to vector<1x16x128xf32>
    %239 = arith.mulf %224, %238 : vector<1x16x128xf32>
    %cst_84 = arith.constant dense<0.000000e+00> : vector<1x128xf32>
    %240 = vector.multi_reduction <add>, %239, %cst_84 [1] : vector<1x16x128xf32> to vector<1x128xf32>
    %241 = vector.shape_cast %240 : vector<1x128xf32> to vector<1x1x128xf32>
    %cst_85 = arith.constant 0xFF800000 : f32
    %242 = vector.broadcast %cst_85 : f32 to vector<1x1x128xf32>
    %243 = arith.select %3, %241, %242 : vector<1x1x128xi1>, vector<1x1x128xf32>
    %cst_86 = arith.constant dense<0xFF800000> : vector<1x1xf32>
    %244 = vector.multi_reduction <maximumf>, %243, %cst_86 [2] : vector<1x1x128xf32> to vector<1x1xf32>
    %245 = vector.shape_cast %244 : vector<1x1xf32> to vector<1x1x1xf32>
    %246 = vector.broadcast %245 : vector<1x1x1xf32> to vector<1x1x128xf32>
    %247 = arith.subf %241, %246 : vector<1x1x128xf32>
    %248 = math.exp %247 : vector<1x1x128xf32>
    %cst_87 = arith.constant 0.000000e+00 : f32
    %249 = vector.broadcast %cst_87 : f32 to vector<1x1x128xf32>
    %250 = arith.select %3, %248, %249 : vector<1x1x128xi1>, vector<1x1x128xf32>
    %cst_88 = arith.constant dense<0.000000e+00> : vector<1x1xf32>
    %251 = vector.multi_reduction <add>, %250, %cst_88 [2] : vector<1x1x128xf32> to vector<1x1xf32>
    %252 = vector.shape_cast %251 : vector<1x1xf32> to vector<1x1x1xf32>
    %253 = vector.broadcast %250 : vector<1x1x128xf32> to vector<1x16x128xf32>
    %254 = arith.mulf %253, %224 : vector<1x16x128xf32>
    %cst_89 = arith.constant dense<0.000000e+00> : vector<1x16xf32>
    %255 = vector.multi_reduction <add>, %254, %cst_89 [2] : vector<1x16x128xf32> to vector<1x16xf32>
    %256 = vector.shape_cast %255 : vector<1x16xf32> to vector<1x16x1xf32>
    %257 = vector.broadcast %252 : vector<1x1x1xf32> to vector<1x16x1xf32>
    %258 = arith.divf %256, %257 : vector<1x16x1xf32>
    %259 = arith.mulf %258, %258 : vector<1x16x1xf32>
    %cst_90 = arith.constant dense<0.000000e+00> : vector<1x1xf32>
    %260 = vector.multi_reduction <add>, %259, %cst_90 [1] : vector<1x16x1xf32> to vector<1x1xf32>
    %261 = vector.shape_cast %260 : vector<1x1xf32> to vector<1x1x1xf32>
    %262 = math.sqrt %261 : vector<1x1x1xf32>
    %cst_91 = arith.constant 1.000000e+00 : f32
    %263 = vector.broadcast %cst_91 : f32 to vector<1x1x1xf32>
    %264 = arith.addf %263, %261 : vector<1x1x1xf32>
    %265 = arith.divf %262, %264 : vector<1x1x1xf32>
    %266 = vector.broadcast %265 : vector<1x1x1xf32> to vector<1x16x1xf32>
    %267 = arith.mulf %258, %266 : vector<1x16x1xf32>
    %268 = vector.broadcast %267 : vector<1x16x1xf32> to vector<1x16x128xf32>
    %269 = arith.mulf %224, %268 : vector<1x16x128xf32>
    %cst_92 = arith.constant dense<0.000000e+00> : vector<1x128xf32>
    %270 = vector.multi_reduction <add>, %269, %cst_92 [1] : vector<1x16x128xf32> to vector<1x128xf32>
    %271 = vector.shape_cast %270 : vector<1x128xf32> to vector<1x1x128xf32>
    %272 = arith.addf %241, %271 : vector<1x1x128xf32>
    %cst_93 = arith.constant 0xFF800000 : f32
    %273 = vector.broadcast %cst_93 : f32 to vector<1x1x128xf32>
    %274 = arith.select %3, %272, %273 : vector<1x1x128xi1>, vector<1x1x128xf32>
    %cst_94 = arith.constant dense<0xFF800000> : vector<1x1xf32>
    %275 = vector.multi_reduction <maximumf>, %274, %cst_94 [2] : vector<1x1x128xf32> to vector<1x1xf32>
    %276 = vector.shape_cast %275 : vector<1x1xf32> to vector<1x1x1xf32>
    %277 = vector.broadcast %276 : vector<1x1x1xf32> to vector<1x1x128xf32>
    %278 = arith.subf %272, %277 : vector<1x1x128xf32>
    %279 = math.exp %278 : vector<1x1x128xf32>
    %cst_95 = arith.constant 0.000000e+00 : f32
    %280 = vector.broadcast %cst_95 : f32 to vector<1x1x128xf32>
    %281 = arith.select %3, %279, %280 : vector<1x1x128xi1>, vector<1x1x128xf32>
    %cst_96 = arith.constant dense<0.000000e+00> : vector<1x1xf32>
    %282 = vector.multi_reduction <add>, %281, %cst_96 [2] : vector<1x1x128xf32> to vector<1x1xf32>
    %283 = vector.shape_cast %282 : vector<1x1xf32> to vector<1x1x1xf32>
    %284 = vector.broadcast %281 : vector<1x1x128xf32> to vector<1x16x128xf32>
    %285 = arith.mulf %284, %224 : vector<1x16x128xf32>
    %cst_97 = arith.constant dense<0.000000e+00> : vector<1x16xf32>
    %286 = vector.multi_reduction <add>, %285, %cst_97 [2] : vector<1x16x128xf32> to vector<1x16xf32>
    %287 = vector.shape_cast %286 : vector<1x16xf32> to vector<1x16x1xf32>
    %288 = vector.broadcast %283 : vector<1x1x1xf32> to vector<1x16x1xf32>
    %289 = arith.divf %287, %288 : vector<1x16x1xf32>
    %290 = arith.mulf %289, %289 : vector<1x16x1xf32>
    %cst_98 = arith.constant dense<0.000000e+00> : vector<1x1xf32>
    %291 = vector.multi_reduction <add>, %290, %cst_98 [1] : vector<1x16x1xf32> to vector<1x1xf32>
    %292 = vector.shape_cast %291 : vector<1x1xf32> to vector<1x1x1xf32>
    %293 = math.sqrt %292 : vector<1x1x1xf32>
    %cst_99 = arith.constant 1.000000e+00 : f32
    %294 = vector.broadcast %cst_99 : f32 to vector<1x1x1xf32>
    %295 = arith.addf %294, %292 : vector<1x1x1xf32>
    %296 = arith.divf %293, %295 : vector<1x1x1xf32>
    %297 = vector.broadcast %296 : vector<1x1x1xf32> to vector<1x16x1xf32>
    %298 = arith.mulf %289, %297 : vector<1x16x1xf32>
    %299 = vector.shape_cast %298 : vector<1x16x1xf32> to vector<1x16xf32>
    %cst_100 = arith.constant 0.000000e+00 : f32
    %300 = vector.broadcast %cst_100 : f32 to vector<1x16x128xf32>
    %301 = vector.extract_strided_slice %0 {offsets = [0, 0, 0], sizes = [1, 1, 128], strides = [1, 1, 1]} : vector<1x8x128xf32> to vector<1x1x128xf32>
    %302 = vector.shape_cast %301 : vector<1x1x128xf32> to vector<1x128xf32>
    %303 = vector.shape_cast %302 : vector<1x128xf32> to vector<1x1x128xf32>
    %c2_101 = arith.constant 2 : index
    %c0_102 = arith.constant 0 : index
    %c0_103 = arith.constant 0 : index
    %c0_104 = arith.constant 0 : index
    %304 = vector.load %arg2[%c2_101, %c0_102, %c0_103, %c0_104] : memref<4x8x16x128xf32, #tpu.memory_space<vmem>>, vector<1x1x16x128xf32>
    %305 = vector.shape_cast %304 : vector<1x1x16x128xf32> to vector<16x128xf32>
    %306 = vector.shape_cast %305 : vector<16x128xf32> to vector<1x16x128xf32>
    %307 = vector.broadcast %303 : vector<1x1x128xf32> to vector<1x16x128xf32>
    %308 = arith.mulf %307, %306 : vector<1x16x128xf32>
    %309 = arith.addf %300, %308 : vector<1x16x128xf32>
    %310 = vector.extract_strided_slice %0 {offsets = [0, 1, 0], sizes = [1, 1, 128], strides = [1, 1, 1]} : vector<1x8x128xf32> to vector<1x1x128xf32>
    %311 = vector.shape_cast %310 : vector<1x1x128xf32> to vector<1x128xf32>
    %312 = vector.shape_cast %311 : vector<1x128xf32> to vector<1x1x128xf32>
    %c2_105 = arith.constant 2 : index
    %c1_106 = arith.constant 1 : index
    %c0_107 = arith.constant 0 : index
    %c0_108 = arith.constant 0 : index
    %313 = vector.load %arg2[%c2_105, %c1_106, %c0_107, %c0_108] : memref<4x8x16x128xf32, #tpu.memory_space<vmem>>, vector<1x1x16x128xf32>
    %314 = vector.shape_cast %313 : vector<1x1x16x128xf32> to vector<16x128xf32>
    %315 = vector.shape_cast %314 : vector<16x128xf32> to vector<1x16x128xf32>
    %316 = vector.broadcast %312 : vector<1x1x128xf32> to vector<1x16x128xf32>
    %317 = arith.mulf %316, %315 : vector<1x16x128xf32>
    %318 = arith.addf %309, %317 : vector<1x16x128xf32>
    %319 = vector.extract_strided_slice %0 {offsets = [0, 2, 0], sizes = [1, 1, 128], strides = [1, 1, 1]} : vector<1x8x128xf32> to vector<1x1x128xf32>
    %320 = vector.shape_cast %319 : vector<1x1x128xf32> to vector<1x128xf32>
    %321 = vector.shape_cast %320 : vector<1x128xf32> to vector<1x1x128xf32>
    %c2_109 = arith.constant 2 : index
    %c2_110 = arith.constant 2 : index
    %c0_111 = arith.constant 0 : index
    %c0_112 = arith.constant 0 : index
    %322 = vector.load %arg2[%c2_109, %c2_110, %c0_111, %c0_112] : memref<4x8x16x128xf32, #tpu.memory_space<vmem>>, vector<1x1x16x128xf32>
    %323 = vector.shape_cast %322 : vector<1x1x16x128xf32> to vector<16x128xf32>
    %324 = vector.shape_cast %323 : vector<16x128xf32> to vector<1x16x128xf32>
    %325 = vector.broadcast %321 : vector<1x1x128xf32> to vector<1x16x128xf32>
    %326 = arith.mulf %325, %324 : vector<1x16x128xf32>
    %327 = arith.addf %318, %326 : vector<1x16x128xf32>
    %328 = vector.extract_strided_slice %0 {offsets = [0, 3, 0], sizes = [1, 1, 128], strides = [1, 1, 1]} : vector<1x8x128xf32> to vector<1x1x128xf32>
    %329 = vector.shape_cast %328 : vector<1x1x128xf32> to vector<1x128xf32>
    %330 = vector.shape_cast %329 : vector<1x128xf32> to vector<1x1x128xf32>
    %c2_113 = arith.constant 2 : index
    %c3_114 = arith.constant 3 : index
    %c0_115 = arith.constant 0 : index
    %c0_116 = arith.constant 0 : index
    %331 = vector.load %arg2[%c2_113, %c3_114, %c0_115, %c0_116] : memref<4x8x16x128xf32, #tpu.memory_space<vmem>>, vector<1x1x16x128xf32>
    %332 = vector.shape_cast %331 : vector<1x1x16x128xf32> to vector<16x128xf32>
    %333 = vector.shape_cast %332 : vector<16x128xf32> to vector<1x16x128xf32>
    %334 = vector.broadcast %330 : vector<1x1x128xf32> to vector<1x16x128xf32>
    %335 = arith.mulf %334, %333 : vector<1x16x128xf32>
    %336 = arith.addf %327, %335 : vector<1x16x128xf32>
    %337 = vector.extract_strided_slice %0 {offsets = [0, 4, 0], sizes = [1, 1, 128], strides = [1, 1, 1]} : vector<1x8x128xf32> to vector<1x1x128xf32>
    %338 = vector.shape_cast %337 : vector<1x1x128xf32> to vector<1x128xf32>
    %339 = vector.shape_cast %338 : vector<1x128xf32> to vector<1x1x128xf32>
    %c2_117 = arith.constant 2 : index
    %c4_118 = arith.constant 4 : index
    %c0_119 = arith.constant 0 : index
    %c0_120 = arith.constant 0 : index
    %340 = vector.load %arg2[%c2_117, %c4_118, %c0_119, %c0_120] : memref<4x8x16x128xf32, #tpu.memory_space<vmem>>, vector<1x1x16x128xf32>
    %341 = vector.shape_cast %340 : vector<1x1x16x128xf32> to vector<16x128xf32>
    %342 = vector.shape_cast %341 : vector<16x128xf32> to vector<1x16x128xf32>
    %343 = vector.broadcast %339 : vector<1x1x128xf32> to vector<1x16x128xf32>
    %344 = arith.mulf %343, %342 : vector<1x16x128xf32>
    %345 = arith.addf %336, %344 : vector<1x16x128xf32>
    %346 = vector.extract_strided_slice %0 {offsets = [0, 5, 0], sizes = [1, 1, 128], strides = [1, 1, 1]} : vector<1x8x128xf32> to vector<1x1x128xf32>
    %347 = vector.shape_cast %346 : vector<1x1x128xf32> to vector<1x128xf32>
    %348 = vector.shape_cast %347 : vector<1x128xf32> to vector<1x1x128xf32>
    %c2_121 = arith.constant 2 : index
    %c5_122 = arith.constant 5 : index
    %c0_123 = arith.constant 0 : index
    %c0_124 = arith.constant 0 : index
    %349 = vector.load %arg2[%c2_121, %c5_122, %c0_123, %c0_124] : memref<4x8x16x128xf32, #tpu.memory_space<vmem>>, vector<1x1x16x128xf32>
    %350 = vector.shape_cast %349 : vector<1x1x16x128xf32> to vector<16x128xf32>
    %351 = vector.shape_cast %350 : vector<16x128xf32> to vector<1x16x128xf32>
    %352 = vector.broadcast %348 : vector<1x1x128xf32> to vector<1x16x128xf32>
    %353 = arith.mulf %352, %351 : vector<1x16x128xf32>
    %354 = arith.addf %345, %353 : vector<1x16x128xf32>
    %355 = vector.extract_strided_slice %0 {offsets = [0, 6, 0], sizes = [1, 1, 128], strides = [1, 1, 1]} : vector<1x8x128xf32> to vector<1x1x128xf32>
    %356 = vector.shape_cast %355 : vector<1x1x128xf32> to vector<1x128xf32>
    %357 = vector.shape_cast %356 : vector<1x128xf32> to vector<1x1x128xf32>
    %c2_125 = arith.constant 2 : index
    %c6_126 = arith.constant 6 : index
    %c0_127 = arith.constant 0 : index
    %c0_128 = arith.constant 0 : index
    %358 = vector.load %arg2[%c2_125, %c6_126, %c0_127, %c0_128] : memref<4x8x16x128xf32, #tpu.memory_space<vmem>>, vector<1x1x16x128xf32>
    %359 = vector.shape_cast %358 : vector<1x1x16x128xf32> to vector<16x128xf32>
    %360 = vector.shape_cast %359 : vector<16x128xf32> to vector<1x16x128xf32>
    %361 = vector.broadcast %357 : vector<1x1x128xf32> to vector<1x16x128xf32>
    %362 = arith.mulf %361, %360 : vector<1x16x128xf32>
    %363 = arith.addf %354, %362 : vector<1x16x128xf32>
    %364 = vector.extract_strided_slice %0 {offsets = [0, 7, 0], sizes = [1, 1, 128], strides = [1, 1, 1]} : vector<1x8x128xf32> to vector<1x1x128xf32>
    %365 = vector.shape_cast %364 : vector<1x1x128xf32> to vector<1x128xf32>
    %366 = vector.shape_cast %365 : vector<1x128xf32> to vector<1x1x128xf32>
    %c2_129 = arith.constant 2 : index
    %c7_130 = arith.constant 7 : index
    %c0_131 = arith.constant 0 : index
    %c0_132 = arith.constant 0 : index
    %367 = vector.load %arg2[%c2_129, %c7_130, %c0_131, %c0_132] : memref<4x8x16x128xf32, #tpu.memory_space<vmem>>, vector<1x1x16x128xf32>
    %368 = vector.shape_cast %367 : vector<1x1x16x128xf32> to vector<16x128xf32>
    %369 = vector.shape_cast %368 : vector<16x128xf32> to vector<1x16x128xf32>
    %370 = vector.broadcast %366 : vector<1x1x128xf32> to vector<1x16x128xf32>
    %371 = arith.mulf %370, %369 : vector<1x16x128xf32>
    %372 = arith.addf %363, %371 : vector<1x16x128xf32>
    %cst_133 = arith.constant dense<0.000000e+00> : vector<1x16xf32>
    %373 = vector.multi_reduction <add>, %372, %cst_133 [2] : vector<1x16x128xf32> to vector<1x16xf32>
    %374 = vector.shape_cast %373 : vector<1x16xf32> to vector<1x16x1xf32>
    %cst_134 = arith.constant 1.562500e-02 : f32
    %375 = vector.broadcast %cst_134 : f32 to vector<1x16x1xf32>
    %376 = arith.mulf %374, %375 : vector<1x16x1xf32>
    %377 = arith.mulf %376, %376 : vector<1x16x1xf32>
    %cst_135 = arith.constant dense<0.000000e+00> : vector<1x1xf32>
    %378 = vector.multi_reduction <add>, %377, %cst_135 [1] : vector<1x16x1xf32> to vector<1x1xf32>
    %379 = vector.shape_cast %378 : vector<1x1xf32> to vector<1x1x1xf32>
    %380 = math.sqrt %379 : vector<1x1x1xf32>
    %cst_136 = arith.constant 1.000000e+00 : f32
    %381 = vector.broadcast %cst_136 : f32 to vector<1x1x1xf32>
    %382 = arith.addf %381, %379 : vector<1x1x1xf32>
    %383 = arith.divf %380, %382 : vector<1x1x1xf32>
    %384 = vector.broadcast %383 : vector<1x1x1xf32> to vector<1x16x1xf32>
    %385 = arith.mulf %376, %384 : vector<1x16x1xf32>
    %386 = vector.broadcast %385 : vector<1x16x1xf32> to vector<1x16x128xf32>
    %387 = arith.mulf %372, %386 : vector<1x16x128xf32>
    %cst_137 = arith.constant dense<0.000000e+00> : vector<1x128xf32>
    %388 = vector.multi_reduction <add>, %387, %cst_137 [1] : vector<1x16x128xf32> to vector<1x128xf32>
    %389 = vector.shape_cast %388 : vector<1x128xf32> to vector<1x1x128xf32>
    %cst_138 = arith.constant 0xFF800000 : f32
    %390 = vector.broadcast %cst_138 : f32 to vector<1x1x128xf32>
    %391 = arith.select %3, %389, %390 : vector<1x1x128xi1>, vector<1x1x128xf32>
    %cst_139 = arith.constant dense<0xFF800000> : vector<1x1xf32>
    %392 = vector.multi_reduction <maximumf>, %391, %cst_139 [2] : vector<1x1x128xf32> to vector<1x1xf32>
    %393 = vector.shape_cast %392 : vector<1x1xf32> to vector<1x1x1xf32>
    %394 = vector.broadcast %393 : vector<1x1x1xf32> to vector<1x1x128xf32>
    %395 = arith.subf %389, %394 : vector<1x1x128xf32>
    %396 = math.exp %395 : vector<1x1x128xf32>
    %cst_140 = arith.constant 0.000000e+00 : f32
    %397 = vector.broadcast %cst_140 : f32 to vector<1x1x128xf32>
    %398 = arith.select %3, %396, %397 : vector<1x1x128xi1>, vector<1x1x128xf32>
    %cst_141 = arith.constant dense<0.000000e+00> : vector<1x1xf32>
    %399 = vector.multi_reduction <add>, %398, %cst_141 [2] : vector<1x1x128xf32> to vector<1x1xf32>
    %400 = vector.shape_cast %399 : vector<1x1xf32> to vector<1x1x1xf32>
    %401 = vector.broadcast %398 : vector<1x1x128xf32> to vector<1x16x128xf32>
    %402 = arith.mulf %401, %372 : vector<1x16x128xf32>
    %cst_142 = arith.constant dense<0.000000e+00> : vector<1x16xf32>
    %403 = vector.multi_reduction <add>, %402, %cst_142 [2] : vector<1x16x128xf32> to vector<1x16xf32>
    %404 = vector.shape_cast %403 : vector<1x16xf32> to vector<1x16x1xf32>
    %405 = vector.broadcast %400 : vector<1x1x1xf32> to vector<1x16x1xf32>
    %406 = arith.divf %404, %405 : vector<1x16x1xf32>
    %407 = arith.mulf %406, %406 : vector<1x16x1xf32>
    %cst_143 = arith.constant dense<0.000000e+00> : vector<1x1xf32>
    %408 = vector.multi_reduction <add>, %407, %cst_143 [1] : vector<1x16x1xf32> to vector<1x1xf32>
    %409 = vector.shape_cast %408 : vector<1x1xf32> to vector<1x1x1xf32>
    %410 = math.sqrt %409 : vector<1x1x1xf32>
    %cst_144 = arith.constant 1.000000e+00 : f32
    %411 = vector.broadcast %cst_144 : f32 to vector<1x1x1xf32>
    %412 = arith.addf %411, %409 : vector<1x1x1xf32>
    %413 = arith.divf %410, %412 : vector<1x1x1xf32>
    %414 = vector.broadcast %413 : vector<1x1x1xf32> to vector<1x16x1xf32>
    %415 = arith.mulf %406, %414 : vector<1x16x1xf32>
    %416 = vector.broadcast %415 : vector<1x16x1xf32> to vector<1x16x128xf32>
    %417 = arith.mulf %372, %416 : vector<1x16x128xf32>
    %cst_145 = arith.constant dense<0.000000e+00> : vector<1x128xf32>
    %418 = vector.multi_reduction <add>, %417, %cst_145 [1] : vector<1x16x128xf32> to vector<1x128xf32>
    %419 = vector.shape_cast %418 : vector<1x128xf32> to vector<1x1x128xf32>
    %420 = arith.addf %389, %419 : vector<1x1x128xf32>
    %cst_146 = arith.constant 0xFF800000 : f32
    %421 = vector.broadcast %cst_146 : f32 to vector<1x1x128xf32>
    %422 = arith.select %3, %420, %421 : vector<1x1x128xi1>, vector<1x1x128xf32>
    %cst_147 = arith.constant dense<0xFF800000> : vector<1x1xf32>
    %423 = vector.multi_reduction <maximumf>, %422, %cst_147 [2] : vector<1x1x128xf32> to vector<1x1xf32>
    %424 = vector.shape_cast %423 : vector<1x1xf32> to vector<1x1x1xf32>
    %425 = vector.broadcast %424 : vector<1x1x1xf32> to vector<1x1x128xf32>
    %426 = arith.subf %420, %425 : vector<1x1x128xf32>
    %427 = math.exp %426 : vector<1x1x128xf32>
    %cst_148 = arith.constant 0.000000e+00 : f32
    %428 = vector.broadcast %cst_148 : f32 to vector<1x1x128xf32>
    %429 = arith.select %3, %427, %428 : vector<1x1x128xi1>, vector<1x1x128xf32>
    %cst_149 = arith.constant dense<0.000000e+00> : vector<1x1xf32>
    %430 = vector.multi_reduction <add>, %429, %cst_149 [2] : vector<1x1x128xf32> to vector<1x1xf32>
    %431 = vector.shape_cast %430 : vector<1x1xf32> to vector<1x1x1xf32>
    %432 = vector.broadcast %429 : vector<1x1x128xf32> to vector<1x16x128xf32>
    %433 = arith.mulf %432, %372 : vector<1x16x128xf32>
    %cst_150 = arith.constant dense<0.000000e+00> : vector<1x16xf32>
    %434 = vector.multi_reduction <add>, %433, %cst_150 [2] : vector<1x16x128xf32> to vector<1x16xf32>
    %435 = vector.shape_cast %434 : vector<1x16xf32> to vector<1x16x1xf32>
    %436 = vector.broadcast %431 : vector<1x1x1xf32> to vector<1x16x1xf32>
    %437 = arith.divf %435, %436 : vector<1x16x1xf32>
    %438 = arith.mulf %437, %437 : vector<1x16x1xf32>
    %cst_151 = arith.constant dense<0.000000e+00> : vector<1x1xf32>
    %439 = vector.multi_reduction <add>, %438, %cst_151 [1] : vector<1x16x1xf32> to vector<1x1xf32>
    %440 = vector.shape_cast %439 : vector<1x1xf32> to vector<1x1x1xf32>
    %441 = math.sqrt %440 : vector<1x1x1xf32>
    %cst_152 = arith.constant 1.000000e+00 : f32
    %442 = vector.broadcast %cst_152 : f32 to vector<1x1x1xf32>
    %443 = arith.addf %442, %440 : vector<1x1x1xf32>
    %444 = arith.divf %441, %443 : vector<1x1x1xf32>
    %445 = vector.broadcast %444 : vector<1x1x1xf32> to vector<1x16x1xf32>
    %446 = arith.mulf %437, %445 : vector<1x16x1xf32>
    %447 = vector.shape_cast %446 : vector<1x16x1xf32> to vector<1x16xf32>
    %cst_153 = arith.constant 0.000000e+00 : f32
    %448 = vector.broadcast %cst_153 : f32 to vector<1x16x128xf32>
    %449 = vector.extract_strided_slice %0 {offsets = [0, 0, 0], sizes = [1, 1, 128], strides = [1, 1, 1]} : vector<1x8x128xf32> to vector<1x1x128xf32>
    %450 = vector.shape_cast %449 : vector<1x1x128xf32> to vector<1x128xf32>
    %451 = vector.shape_cast %450 : vector<1x128xf32> to vector<1x1x128xf32>
    %c3_154 = arith.constant 3 : index
    %c0_155 = arith.constant 0 : index
    %c0_156 = arith.constant 0 : index
    %c0_157 = arith.constant 0 : index
    %452 = vector.load %arg2[%c3_154, %c0_155, %c0_156, %c0_157] : memref<4x8x16x128xf32, #tpu.memory_space<vmem>>, vector<1x1x16x128xf32>
    %453 = vector.shape_cast %452 : vector<1x1x16x128xf32> to vector<16x128xf32>
    %454 = vector.shape_cast %453 : vector<16x128xf32> to vector<1x16x128xf32>
    %455 = vector.broadcast %451 : vector<1x1x128xf32> to vector<1x16x128xf32>
    %456 = arith.mulf %455, %454 : vector<1x16x128xf32>
    %457 = arith.addf %448, %456 : vector<1x16x128xf32>
    %458 = vector.extract_strided_slice %0 {offsets = [0, 1, 0], sizes = [1, 1, 128], strides = [1, 1, 1]} : vector<1x8x128xf32> to vector<1x1x128xf32>
    %459 = vector.shape_cast %458 : vector<1x1x128xf32> to vector<1x128xf32>
    %460 = vector.shape_cast %459 : vector<1x128xf32> to vector<1x1x128xf32>
    %c3_158 = arith.constant 3 : index
    %c1_159 = arith.constant 1 : index
    %c0_160 = arith.constant 0 : index
    %c0_161 = arith.constant 0 : index
    %461 = vector.load %arg2[%c3_158, %c1_159, %c0_160, %c0_161] : memref<4x8x16x128xf32, #tpu.memory_space<vmem>>, vector<1x1x16x128xf32>
    %462 = vector.shape_cast %461 : vector<1x1x16x128xf32> to vector<16x128xf32>
    %463 = vector.shape_cast %462 : vector<16x128xf32> to vector<1x16x128xf32>
    %464 = vector.broadcast %460 : vector<1x1x128xf32> to vector<1x16x128xf32>
    %465 = arith.mulf %464, %463 : vector<1x16x128xf32>
    %466 = arith.addf %457, %465 : vector<1x16x128xf32>
    %467 = vector.extract_strided_slice %0 {offsets = [0, 2, 0], sizes = [1, 1, 128], strides = [1, 1, 1]} : vector<1x8x128xf32> to vector<1x1x128xf32>
    %468 = vector.shape_cast %467 : vector<1x1x128xf32> to vector<1x128xf32>
    %469 = vector.shape_cast %468 : vector<1x128xf32> to vector<1x1x128xf32>
    %c3_162 = arith.constant 3 : index
    %c2_163 = arith.constant 2 : index
    %c0_164 = arith.constant 0 : index
    %c0_165 = arith.constant 0 : index
    %470 = vector.load %arg2[%c3_162, %c2_163, %c0_164, %c0_165] : memref<4x8x16x128xf32, #tpu.memory_space<vmem>>, vector<1x1x16x128xf32>
    %471 = vector.shape_cast %470 : vector<1x1x16x128xf32> to vector<16x128xf32>
    %472 = vector.shape_cast %471 : vector<16x128xf32> to vector<1x16x128xf32>
    %473 = vector.broadcast %469 : vector<1x1x128xf32> to vector<1x16x128xf32>
    %474 = arith.mulf %473, %472 : vector<1x16x128xf32>
    %475 = arith.addf %466, %474 : vector<1x16x128xf32>
    %476 = vector.extract_strided_slice %0 {offsets = [0, 3, 0], sizes = [1, 1, 128], strides = [1, 1, 1]} : vector<1x8x128xf32> to vector<1x1x128xf32>
    %477 = vector.shape_cast %476 : vector<1x1x128xf32> to vector<1x128xf32>
    %478 = vector.shape_cast %477 : vector<1x128xf32> to vector<1x1x128xf32>
    %c3_166 = arith.constant 3 : index
    %c3_167 = arith.constant 3 : index
    %c0_168 = arith.constant 0 : index
    %c0_169 = arith.constant 0 : index
    %479 = vector.load %arg2[%c3_166, %c3_167, %c0_168, %c0_169] : memref<4x8x16x128xf32, #tpu.memory_space<vmem>>, vector<1x1x16x128xf32>
    %480 = vector.shape_cast %479 : vector<1x1x16x128xf32> to vector<16x128xf32>
    %481 = vector.shape_cast %480 : vector<16x128xf32> to vector<1x16x128xf32>
    %482 = vector.broadcast %478 : vector<1x1x128xf32> to vector<1x16x128xf32>
    %483 = arith.mulf %482, %481 : vector<1x16x128xf32>
    %484 = arith.addf %475, %483 : vector<1x16x128xf32>
    %485 = vector.extract_strided_slice %0 {offsets = [0, 4, 0], sizes = [1, 1, 128], strides = [1, 1, 1]} : vector<1x8x128xf32> to vector<1x1x128xf32>
    %486 = vector.shape_cast %485 : vector<1x1x128xf32> to vector<1x128xf32>
    %487 = vector.shape_cast %486 : vector<1x128xf32> to vector<1x1x128xf32>
    %c3_170 = arith.constant 3 : index
    %c4_171 = arith.constant 4 : index
    %c0_172 = arith.constant 0 : index
    %c0_173 = arith.constant 0 : index
    %488 = vector.load %arg2[%c3_170, %c4_171, %c0_172, %c0_173] : memref<4x8x16x128xf32, #tpu.memory_space<vmem>>, vector<1x1x16x128xf32>
    %489 = vector.shape_cast %488 : vector<1x1x16x128xf32> to vector<16x128xf32>
    %490 = vector.shape_cast %489 : vector<16x128xf32> to vector<1x16x128xf32>
    %491 = vector.broadcast %487 : vector<1x1x128xf32> to vector<1x16x128xf32>
    %492 = arith.mulf %491, %490 : vector<1x16x128xf32>
    %493 = arith.addf %484, %492 : vector<1x16x128xf32>
    %494 = vector.extract_strided_slice %0 {offsets = [0, 5, 0], sizes = [1, 1, 128], strides = [1, 1, 1]} : vector<1x8x128xf32> to vector<1x1x128xf32>
    %495 = vector.shape_cast %494 : vector<1x1x128xf32> to vector<1x128xf32>
    %496 = vector.shape_cast %495 : vector<1x128xf32> to vector<1x1x128xf32>
    %c3_174 = arith.constant 3 : index
    %c5_175 = arith.constant 5 : index
    %c0_176 = arith.constant 0 : index
    %c0_177 = arith.constant 0 : index
    %497 = vector.load %arg2[%c3_174, %c5_175, %c0_176, %c0_177] : memref<4x8x16x128xf32, #tpu.memory_space<vmem>>, vector<1x1x16x128xf32>
    %498 = vector.shape_cast %497 : vector<1x1x16x128xf32> to vector<16x128xf32>
    %499 = vector.shape_cast %498 : vector<16x128xf32> to vector<1x16x128xf32>
    %500 = vector.broadcast %496 : vector<1x1x128xf32> to vector<1x16x128xf32>
    %501 = arith.mulf %500, %499 : vector<1x16x128xf32>
    %502 = arith.addf %493, %501 : vector<1x16x128xf32>
    %503 = vector.extract_strided_slice %0 {offsets = [0, 6, 0], sizes = [1, 1, 128], strides = [1, 1, 1]} : vector<1x8x128xf32> to vector<1x1x128xf32>
    %504 = vector.shape_cast %503 : vector<1x1x128xf32> to vector<1x128xf32>
    %505 = vector.shape_cast %504 : vector<1x128xf32> to vector<1x1x128xf32>
    %c3_178 = arith.constant 3 : index
    %c6_179 = arith.constant 6 : index
    %c0_180 = arith.constant 0 : index
    %c0_181 = arith.constant 0 : index
    %506 = vector.load %arg2[%c3_178, %c6_179, %c0_180, %c0_181] : memref<4x8x16x128xf32, #tpu.memory_space<vmem>>, vector<1x1x16x128xf32>
    %507 = vector.shape_cast %506 : vector<1x1x16x128xf32> to vector<16x128xf32>
    %508 = vector.shape_cast %507 : vector<16x128xf32> to vector<1x16x128xf32>
    %509 = vector.broadcast %505 : vector<1x1x128xf32> to vector<1x16x128xf32>
    %510 = arith.mulf %509, %508 : vector<1x16x128xf32>
    %511 = arith.addf %502, %510 : vector<1x16x128xf32>
    %512 = vector.extract_strided_slice %0 {offsets = [0, 7, 0], sizes = [1, 1, 128], strides = [1, 1, 1]} : vector<1x8x128xf32> to vector<1x1x128xf32>
    %513 = vector.shape_cast %512 : vector<1x1x128xf32> to vector<1x128xf32>
    %514 = vector.shape_cast %513 : vector<1x128xf32> to vector<1x1x128xf32>
    %c3_182 = arith.constant 3 : index
    %c7_183 = arith.constant 7 : index
    %c0_184 = arith.constant 0 : index
    %c0_185 = arith.constant 0 : index
    %515 = vector.load %arg2[%c3_182, %c7_183, %c0_184, %c0_185] : memref<4x8x16x128xf32, #tpu.memory_space<vmem>>, vector<1x1x16x128xf32>
    %516 = vector.shape_cast %515 : vector<1x1x16x128xf32> to vector<16x128xf32>
    %517 = vector.shape_cast %516 : vector<16x128xf32> to vector<1x16x128xf32>
    %518 = vector.broadcast %514 : vector<1x1x128xf32> to vector<1x16x128xf32>
    %519 = arith.mulf %518, %517 : vector<1x16x128xf32>
    %520 = arith.addf %511, %519 : vector<1x16x128xf32>
    %cst_186 = arith.constant dense<0.000000e+00> : vector<1x16xf32>
    %521 = vector.multi_reduction <add>, %520, %cst_186 [2] : vector<1x16x128xf32> to vector<1x16xf32>
    %522 = vector.shape_cast %521 : vector<1x16xf32> to vector<1x16x1xf32>
    %cst_187 = arith.constant 1.562500e-02 : f32
    %523 = vector.broadcast %cst_187 : f32 to vector<1x16x1xf32>
    %524 = arith.mulf %522, %523 : vector<1x16x1xf32>
    %525 = arith.mulf %524, %524 : vector<1x16x1xf32>
    %cst_188 = arith.constant dense<0.000000e+00> : vector<1x1xf32>
    %526 = vector.multi_reduction <add>, %525, %cst_188 [1] : vector<1x16x1xf32> to vector<1x1xf32>
    %527 = vector.shape_cast %526 : vector<1x1xf32> to vector<1x1x1xf32>
    %528 = math.sqrt %527 : vector<1x1x1xf32>
    %cst_189 = arith.constant 1.000000e+00 : f32
    %529 = vector.broadcast %cst_189 : f32 to vector<1x1x1xf32>
    %530 = arith.addf %529, %527 : vector<1x1x1xf32>
    %531 = arith.divf %528, %530 : vector<1x1x1xf32>
    %532 = vector.broadcast %531 : vector<1x1x1xf32> to vector<1x16x1xf32>
    %533 = arith.mulf %524, %532 : vector<1x16x1xf32>
    %534 = vector.broadcast %533 : vector<1x16x1xf32> to vector<1x16x128xf32>
    %535 = arith.mulf %520, %534 : vector<1x16x128xf32>
    %cst_190 = arith.constant dense<0.000000e+00> : vector<1x128xf32>
    %536 = vector.multi_reduction <add>, %535, %cst_190 [1] : vector<1x16x128xf32> to vector<1x128xf32>
    %537 = vector.shape_cast %536 : vector<1x128xf32> to vector<1x1x128xf32>
    %cst_191 = arith.constant 0xFF800000 : f32
    %538 = vector.broadcast %cst_191 : f32 to vector<1x1x128xf32>
    %539 = arith.select %3, %537, %538 : vector<1x1x128xi1>, vector<1x1x128xf32>
    %cst_192 = arith.constant dense<0xFF800000> : vector<1x1xf32>
    %540 = vector.multi_reduction <maximumf>, %539, %cst_192 [2] : vector<1x1x128xf32> to vector<1x1xf32>
    %541 = vector.shape_cast %540 : vector<1x1xf32> to vector<1x1x1xf32>
    %542 = vector.broadcast %541 : vector<1x1x1xf32> to vector<1x1x128xf32>
    %543 = arith.subf %537, %542 : vector<1x1x128xf32>
    %544 = math.exp %543 : vector<1x1x128xf32>
    %cst_193 = arith.constant 0.000000e+00 : f32
    %545 = vector.broadcast %cst_193 : f32 to vector<1x1x128xf32>
    %546 = arith.select %3, %544, %545 : vector<1x1x128xi1>, vector<1x1x128xf32>
    %cst_194 = arith.constant dense<0.000000e+00> : vector<1x1xf32>
    %547 = vector.multi_reduction <add>, %546, %cst_194 [2] : vector<1x1x128xf32> to vector<1x1xf32>
    %548 = vector.shape_cast %547 : vector<1x1xf32> to vector<1x1x1xf32>
    %549 = vector.broadcast %546 : vector<1x1x128xf32> to vector<1x16x128xf32>
    %550 = arith.mulf %549, %520 : vector<1x16x128xf32>
    %cst_195 = arith.constant dense<0.000000e+00> : vector<1x16xf32>
    %551 = vector.multi_reduction <add>, %550, %cst_195 [2] : vector<1x16x128xf32> to vector<1x16xf32>
    %552 = vector.shape_cast %551 : vector<1x16xf32> to vector<1x16x1xf32>
    %553 = vector.broadcast %548 : vector<1x1x1xf32> to vector<1x16x1xf32>
    %554 = arith.divf %552, %553 : vector<1x16x1xf32>
    %555 = arith.mulf %554, %554 : vector<1x16x1xf32>
    %cst_196 = arith.constant dense<0.000000e+00> : vector<1x1xf32>
    %556 = vector.multi_reduction <add>, %555, %cst_196 [1] : vector<1x16x1xf32> to vector<1x1xf32>
    %557 = vector.shape_cast %556 : vector<1x1xf32> to vector<1x1x1xf32>
    %558 = math.sqrt %557 : vector<1x1x1xf32>
    %cst_197 = arith.constant 1.000000e+00 : f32
    %559 = vector.broadcast %cst_197 : f32 to vector<1x1x1xf32>
    %560 = arith.addf %559, %557 : vector<1x1x1xf32>
    %561 = arith.divf %558, %560 : vector<1x1x1xf32>
    %562 = vector.broadcast %561 : vector<1x1x1xf32> to vector<1x16x1xf32>
    %563 = arith.mulf %554, %562 : vector<1x16x1xf32>
    %564 = vector.broadcast %563 : vector<1x16x1xf32> to vector<1x16x128xf32>
    %565 = arith.mulf %520, %564 : vector<1x16x128xf32>
    %cst_198 = arith.constant dense<0.000000e+00> : vector<1x128xf32>
    %566 = vector.multi_reduction <add>, %565, %cst_198 [1] : vector<1x16x128xf32> to vector<1x128xf32>
    %567 = vector.shape_cast %566 : vector<1x128xf32> to vector<1x1x128xf32>
    %568 = arith.addf %537, %567 : vector<1x1x128xf32>
    %cst_199 = arith.constant 0xFF800000 : f32
    %569 = vector.broadcast %cst_199 : f32 to vector<1x1x128xf32>
    %570 = arith.select %3, %568, %569 : vector<1x1x128xi1>, vector<1x1x128xf32>
    %cst_200 = arith.constant dense<0xFF800000> : vector<1x1xf32>
    %571 = vector.multi_reduction <maximumf>, %570, %cst_200 [2] : vector<1x1x128xf32> to vector<1x1xf32>
    %572 = vector.shape_cast %571 : vector<1x1xf32> to vector<1x1x1xf32>
    %573 = vector.broadcast %572 : vector<1x1x1xf32> to vector<1x1x128xf32>
    %574 = arith.subf %568, %573 : vector<1x1x128xf32>
    %575 = math.exp %574 : vector<1x1x128xf32>
    %cst_201 = arith.constant 0.000000e+00 : f32
    %576 = vector.broadcast %cst_201 : f32 to vector<1x1x128xf32>
    %577 = arith.select %3, %575, %576 : vector<1x1x128xi1>, vector<1x1x128xf32>
    %cst_202 = arith.constant dense<0.000000e+00> : vector<1x1xf32>
    %578 = vector.multi_reduction <add>, %577, %cst_202 [2] : vector<1x1x128xf32> to vector<1x1xf32>
    %579 = vector.shape_cast %578 : vector<1x1xf32> to vector<1x1x1xf32>
    %580 = vector.broadcast %577 : vector<1x1x128xf32> to vector<1x16x128xf32>
    %581 = arith.mulf %580, %520 : vector<1x16x128xf32>
    %cst_203 = arith.constant dense<0.000000e+00> : vector<1x16xf32>
    %582 = vector.multi_reduction <add>, %581, %cst_203 [2] : vector<1x16x128xf32> to vector<1x16xf32>
    %583 = vector.shape_cast %582 : vector<1x16xf32> to vector<1x16x1xf32>
    %584 = vector.broadcast %579 : vector<1x1x1xf32> to vector<1x16x1xf32>
    %585 = arith.divf %583, %584 : vector<1x16x1xf32>
    %586 = arith.mulf %585, %585 : vector<1x16x1xf32>
    %cst_204 = arith.constant dense<0.000000e+00> : vector<1x1xf32>
    %587 = vector.multi_reduction <add>, %586, %cst_204 [1] : vector<1x16x1xf32> to vector<1x1xf32>
    %588 = vector.shape_cast %587 : vector<1x1xf32> to vector<1x1x1xf32>
    %589 = math.sqrt %588 : vector<1x1x1xf32>
    %cst_205 = arith.constant 1.000000e+00 : f32
    %590 = vector.broadcast %cst_205 : f32 to vector<1x1x1xf32>
    %591 = arith.addf %590, %588 : vector<1x1x1xf32>
    %592 = arith.divf %589, %591 : vector<1x1x1xf32>
    %593 = vector.broadcast %592 : vector<1x1x1xf32> to vector<1x16x1xf32>
    %594 = arith.mulf %585, %593 : vector<1x16x1xf32>
    %595 = vector.shape_cast %594 : vector<1x16x1xf32> to vector<1x16xf32>
    %cst_206 = arith.constant 0.000000e+00 : f32
    %596 = vector.broadcast %cst_206 : f32 to vector<1x64xf32>
    %597 = tpu.concatenate %151, %299, %447, %595, %596 in 1 : vector<1x16xf32>, vector<1x16xf32>, vector<1x16xf32>, vector<1x16xf32>, vector<1x64xf32> -> vector<1x128xf32>
    %598 = vector.shape_cast %597 : vector<1x128xf32> to vector<1x1x128xf32>
    %c0_207 = arith.constant 0 : index
    %c0_208 = arith.constant 0 : index
    %c0_209 = arith.constant 0 : index
    %599 = vector.load %arg3[%c0_207, %c0_208, %c0_209] : memref<1x1x128xf32, #tpu.memory_space<vmem>>, vector<1x1x128xf32>
    tpu.vector_store %arg3[%c0_207, %c0_208, %c0_209], %598 {strides = array<i32>} : memref<1x1x128xf32, #tpu.memory_space<vmem>>, vector<1x1x128xf32>,
    return
  }
  func.func @transform_0(%arg0: i32) -> (i32, i32, i32) {
    %c0_i32 = arith.constant 0 : i32
    %c0_i32_0 = arith.constant 0 : i32
    %c0_i32_1 = arith.constant 0 : i32
    return %arg0, %c0_i32, %c0_i32_0 : i32, i32, i32
  }
  func.func @transform_1(%arg0: i32) -> (i32, i32, i32, i32) {
    %c0_i32 = arith.constant 0 : i32
    %c0_i32_0 = arith.constant 0 : i32
    %c0_i32_1 = arith.constant 0 : i32
    %c0_i32_2 = arith.constant 0 : i32
    %c0_i32_3 = arith.constant 0 : i32
    return %c0_i32, %c0_i32_0, %c0_i32_1, %c0_i32_2 : i32, i32, i32, i32
  }
  func.func @transform_2(%arg0: i32) -> (i32, i32, i32) {
    %c0_i32 = arith.constant 0 : i32
    %c0_i32_0 = arith.constant 0 : i32
    %c0_i32_1 = arith.constant 0 : i32
    return %arg0, %c0_i32, %c0_i32_0 : i32, i32, i32
  }
}

</mosaic_0001>

<llo_original>
// kernel: tpu_custom_call.1
$region0: #{tpu_custom_call.1}
  #allocation0 [shape = 'u32[]', space=smem, size = 0x4, offset = 0x4, fixed_abs, tag = 'smem constant byte address 0x4 - core index']
  #allocation1 [shape = 'u32[144,128]{1,0:T(1,128)}', space=vmem, size = 0x12000, scoped, tag = 'internal scratch']
  %s0 = inlined_call_operand.hbm [shape: f32[2,8,128], index: 0, kind: input, shape index: {}]
  %s1 = inlined_call_operand.hbm [shape: f32[4,8,16,128], index: 1, kind: input, shape index: {}]
  %s2 = inlined_call_operand.hbm [shape: f32[2,1,128], index: 2, kind: output, shape index: {}]
  %s3 = sld [smem:[#allocation0]]
  $region49: #{tpu_custom_call.1} parent=0
    _
  %s5 = ssub.s32 1, %s3
  %s6 = scalar_select 0, %s5, %s3
  $region1: #{tpu_custom_call.1} parent=0
    #allocation2 [shape = 'u8[8192]{0}', space=vmem, size = 0x2000, scoped, tag = 'input window, operand 0']
    #allocation3 [shape = 's32[2]{0}', space=sflag, size = 0x8, scoped, tag = 'scoped memory for tpu_custom_call.1']
    #allocation4 [shape = 's32[2]{0}', space=sflag, size = 0x8, scoped, tag = 'scoped memory for tpu_custom_call.1']
    #allocation5 [shape = 'u8[262144]{0}', space=vmem, size = 0x40000, scoped, tag = 'input window, operand 1, single buffered']
    #allocation6 [shape = 's32[1]{0}', space=sflag, size = 0x4, scoped, tag = 'scoped memory for tpu_custom_call.1']
    #allocation7 [shape = 'u8[1024]{0}', space=vmem, size = 0x400, scoped, tag = 'output window, operand 0']
    %7 = vsyncpa [#allocation3], 0
    %s8 = scalar_lea.sflag [#allocation3], 1
    %9 = vsyncpa %s8, 0
    %10 = vsyncpa [#allocation6], 0
    %11 = vsyncpa [#allocation4], 0
    %s12 = scalar_lea.sflag [#allocation4], 1
    %13 = vsyncpa %s12, 0
    loop: start=0, step=1, limit=4
    $region2: #{tpu_custom_call.1} parent=1 // loop_pre_header
      _
    $region3: #{tpu_custom_call.1} parent=1 // loop_header
      %s15 = sphi 0, %s19
      %p16 = scmp.ge.s32.totalorder %s15, 4
      %s25 = sphi 0, %s27
      %s28 = sphi 0, %s25
      %s29 = sphi 0, %s28
      %s45 = sphi 0, %s29
      %s49 = sphi 0, %s49
      %s51 = sphi 0, %s49
      %s52 = sphi 0, %s51
      %s66 = sphi 0, %s52
      %s72 = sphi 0, %s74
      %s75 = sphi 0, %s72
      %s76 = sphi 0, %s75
      %s92 = sphi 0, %s76
    $region4: #{tpu_custom_call.1} parent=1 // loop_header_branch
      %18 = sbr.rel (%p16) target = $region8
    $region5: #{tpu_custom_call.1} parent=1 // loop_body
      %s20 = ssub.s32 %s15, 1
      %s21 = ssub.s32 %s15, 2
      %s22 = sadd.s32 %s15, 1
      %s23 = ssub.s32 %s15, %s22
      %p24 = scmp.eq.s32.totalorder %s23, 0
      %s26 = sadd.s32 %s25, 1
      %s27 = scalar_select %p24, %s25, %s26
      %p30 = pneg %p24
      %p31 = scmp.eq.s32.totalorder %s15, 1
      %p32 = por %p30, %p31
      %p33 = scmp.ne.s32.totalorder %s25, %s28
      %p34 = scmp.eq.s32.totalorder %s15, 0
      %p35 = por %p33, %p34
      %p36 = scmp.ne.s32.totalorder %s25, %s28
      %p37 = scmp.eq.s32.totalorder %s20, 1
      %p38 = por %p36, %p37
      %p39 = scmp.ne.s32.totalorder %s28, %s29
      %p40 = scmp.eq.s32.totalorder %s20, 0
      %p41 = por %p39, %p40
      %p42 = scmp.ne.s32.totalorder %s28, %s29
      %p43 = scmp.eq.s32.totalorder %s21, 1
      %p44 = por %p42, %p43
      %p46 = scmp.ne.s32.totalorder %s29, %s45
      %p47 = scmp.eq.s32.totalorder %s21, 0
      %p48 = por %p46, %p47
      %s50 = sadd.s32 %s49, 1
      %p53 = scmp.eq.s32.totalorder %s15, 1
      %p54 = scmp.ne.s32.totalorder %s49, %s51
      %p55 = scmp.eq.s32.totalorder %s15, 0
      %p56 = por %p54, %p55
      %p57 = scmp.ne.s32.totalorder %s49, %s51
      %p58 = scmp.eq.s32.totalorder %s20, 1
      %p59 = por %p57, %p58
      %p60 = scmp.ne.s32.totalorder %s51, %s52
      %p61 = scmp.eq.s32.totalorder %s20, 0
      %p62 = por %p60, %p61
      %p63 = scmp.ne.s32.totalorder %s51, %s52
      %p64 = scmp.eq.s32.totalorder %s21, 1
      %p65 = por %p63, %p64
      %p67 = scmp.ne.s32.totalorder %s52, %s66
      %p68 = scmp.eq.s32.totalorder %s21, 0
      %p69 = por %p67, %p68
      %s70 = ssub.s32 %s15, %s22
      %p71 = scmp.eq.s32.totalorder %s70, 0
      %s73 = sadd.s32 %s72, 1
      %s74 = scalar_select %p71, %s72, %s73
      %p77 = pneg %p71
      %p78 = scmp.eq.s32.totalorder %s15, 1
      %p79 = por %p77, %p78
      %p80 = scmp.ne.s32.totalorder %s72, %s75
      %p81 = scmp.eq.s32.totalorder %s15, 0
      %p82 = por %p80, %p81
      %p83 = scmp.ne.s32.totalorder %s72, %s75
      %p84 = scmp.eq.s32.totalorder %s20, 1
      %p85 = por %p83, %p84
      %p86 = scmp.ne.s32.totalorder %s75, %s76
      %p87 = scmp.eq.s32.totalorder %s20, 0
      %p88 = por %p86, %p87
      %p89 = scmp.ne.s32.totalorder %s75, %s76
      %p90 = scmp.eq.s32.totalorder %s21, 1
      %p91 = por %p89, %p90
      %p93 = scmp.ne.s32.totalorder %s76, %s92
      %p94 = scmp.eq.s32.totalorder %s21, 0
      %p95 = por %p93, %p94
      %p96 = scmp.le.s32.totalorder 1, %s15
      %p97 = scmp.lt.s32.totalorder %s15, 3
      %p98 = pnand %p96, %p97
      %p99 = pneg %p98
      // Predicated region
      $region9: #{tpu_custom_call.1} parent=5 // pred_check
        _
      $region10: #{tpu_custom_call.1} parent=5 // pred_check_branch
        %101 = sbr.rel (%p98) target = $region12
      $region11: #{tpu_custom_call.1} parent=5 // pred_region
        %s102 = ssub.s32 %s15, 1
        // Predicated region
        $region13: #{tpu_custom_call.1} parent=11 // pred_check
          %p103 = pneg %p62
        $region14: #{tpu_custom_call.1} parent=11 // pred_check_branch
          %105 = sbr.rel (%p103) target = $region16
        $region15: #{tpu_custom_call.1} parent=11 // pred_region
          %s107 = ssub.s32 8192, 8192
          %108 = vsyncadd [#allocation6], %s107
          %s109 = sshll.u32 [#allocation5], 4
          %s110 = int_to_ptr.vmem [resolvable:$true] %s109
          %115 = dma.hbm_to_vmem [thread:$0]  %s1, 8192, %s110, [#allocation6], 128, 128, 8
        $region16: #{tpu_custom_call.1} parent=11 // pred_fallthru
          _
      $region12: #{tpu_custom_call.1} parent=5 // pred_fallthru
        _
      %p116 = scmp.lt.s32.totalorder %s15, 2
      // Predicated region
      $region17: #{tpu_custom_call.1} parent=5 // pred_check
        %p117 = pneg %p116
      $region18: #{tpu_custom_call.1} parent=5 // pred_check_branch
        %119 = sbr.rel (%p117) target = $region20
      $region19: #{tpu_custom_call.1} parent=5 // pred_region
        // Predicated region
        $region21: #{tpu_custom_call.1} parent=19 // pred_check
          %p120 = pneg %p35
        $region22: #{tpu_custom_call.1} parent=19 // pred_check_branch
          %122 = sbr.rel (%p120) target = $region24
        $region23: #{tpu_custom_call.1} parent=19 // pred_region
          %s123 = sand.u32 %s25, 1
          %s124 = scalar_lea.sflag [#allocation3], %s123
          %s125 = sand.u32 %s25, 1
          %s126 = smul.addr %s125, 8
          %s127 = scalar_lea.vmem [#allocation2], %s126
          %s129 = ssub.s32 128, 128
          %130 = vsyncadd %s124, %s129
          %s131 = smul.addr %s15, 128
          %s132 = scalar_lea.hbm %s0, %s131
          %s134 = sshll.u32 %s127, 4
          %s135 = int_to_ptr.vmem [resolvable:$true] %s134
          %137 = dma.hbm_to_vmem [thread:$0]  %s132, 128, %s135, %s124
        $region24: #{tpu_custom_call.1} parent=19 // pred_fallthru
          _
      $region20: #{tpu_custom_call.1} parent=5 // pred_fallthru
        _
      %p138 = scmp.le.s32.totalorder 1, %s15
      %p139 = scmp.lt.s32.totalorder %s15, 3
      %p140 = pnand %p138, %p139
      %p141 = pneg %p140
      // Predicated region
      $region25: #{tpu_custom_call.1} parent=5 // pred_check
        _
      $region26: #{tpu_custom_call.1} parent=5 // pred_check_branch
        %143 = sbr.rel (%p140) target = $region28
      $region27: #{tpu_custom_call.1} parent=5 // pred_region
        %s144 = ssub.s32 %s15, 1
        %s145 = sand.u32 %s28, 1
        %s146 = scalar_lea.sflag [#allocation3], %s145
        %s147 = sand.u32 %s28, 1
        %s148 = smul.addr %s147, 8
        %s149 = scalar_lea.vmem [#allocation2], %s148
        // Predicated region
        $region29: #{tpu_custom_call.1} parent=27 // pred_check
          %p150 = pneg %p41
        $region30: #{tpu_custom_call.1} parent=27 // pred_check_branch
          %152 = sbr.rel (%p150) target = $region32
        $region31: #{tpu_custom_call.1} parent=27 // pred_region
          %153 = dma.done %s146, 128
        $region32: #{tpu_custom_call.1} parent=27 // pred_fallthru
          _
        // Predicated region
        $region33: #{tpu_custom_call.1} parent=27 // pred_check
          %p154 = pneg %p62
        $region34: #{tpu_custom_call.1} parent=27 // pred_check_branch
          %156 = sbr.rel (%p154) target = $region36
        $region35: #{tpu_custom_call.1} parent=27 // pred_region
          %157 = dma.done [#allocation6], 8192
        $region36: #{tpu_custom_call.1} parent=27 // pred_fallthru
          _
        %s158 = sand.u32 %s28, 1
        %s159 = scalar_lea.sflag [#allocation3], %s158
        %s160 = sand.u32 %s28, 1
        %s161 = smul.addr %s160, 8
        %s162 = scalar_lea.vmem [#allocation2], %s161
        %p163 = pneg %p41
        %p164 = pneg %p38
        %p165 = pneg %p62
        %p166 = pneg %p59
        %p167 = pneg %p88
        %p168 = pneg %p85
        %s169 = sand.u32 %s75, 1
        %s170 = scalar_lea.sflag [#allocation4], %s169
        %s171 = sand.u32 %s75, 1
        %s172 = scalar_lea.vmem [#allocation7], %s171
        %v173 = vld [vmem:[%s149] sm:$0xff]
        %v174 = vlaneseq
        %v175 = vand.u32 %v174, 127
        %vm176 = vcmp.lt.s32.totalorder %v175, 64
        %v177 = vld [vmem:[#allocation5] sm:$0xff]
        %v178 = vld [vmem:[#allocation5 + $0x8] sm:$0xff]
        %v179 = vlaneseq
        %v180 = vshrl.u32 %v179, 7
        %v181 = vsub.s32 0, %v180
        %v182 = vrot.slane %v173, %v181
        %v183 = vmul.f32 %v182, %v177
        %v184 = vmul.f32 %v182, %v178
        %v185 = vadd.f32 %v183, 0.0
        %v186 = vadd.f32 %v184, 0.0
        %s187 = scalar_lea.vmem [#allocation5], 16
        %v188 = vld [vmem:[%s187] sm:$0xff]
        %v189 = vld [vmem:[%s187 + $0x8] sm:$0xff]
        %v190 = vlaneseq
        %v191 = vshrl.u32 %v190, 7
        %v192 = vsub.s32 1, %v191
        %v193 = vrot.slane %v173, %v192
        %v194 = vmul.f32 %v193, %v188
        %v195 = vmul.f32 %v193, %v189
        %v196 = vadd.f32 %v185, %v194
        %v197 = vadd.f32 %v186, %v195
        %s198 = scalar_lea.vmem [#allocation5], 32
        %v199 = vld [vmem:[%s198] sm:$0xff]
        %v200 = vld [vmem:[%s198 + $0x8] sm:$0xff]
        %v201 = vlaneseq
        %v202 = vshrl.u32 %v201, 7
        %v203 = vsub.s32 2, %v202
        %v204 = vrot.slane %v173, %v203
        %v205 = vmul.f32 %v204, %v199
        %v206 = vmul.f32 %v204, %v200
        %v207 = vadd.f32 %v196, %v205
        %v208 = vadd.f32 %v197, %v206
        %s209 = scalar_lea.vmem [#allocation5], 48
        %v210 = vld [vmem:[%s209] sm:$0xff]
        %v211 = vld [vmem:[%s209 + $0x8] sm:$0xff]
        %v212 = vlaneseq
        %v213 = vshrl.u32 %v212, 7
        %v214 = vsub.s32 3, %v213
        %v215 = vrot.slane %v173, %v214
        %v216 = vmul.f32 %v215, %v210
        %v217 = vmul.f32 %v215, %v211
        %v218 = vadd.f32 %v207, %v216
        %v219 = vadd.f32 %v208, %v217
        %s220 = scalar_lea.vmem [#allocation5], 64
        %v221 = vld [vmem:[%s220] sm:$0xff]
        %v222 = vld [vmem:[%s220 + $0x8] sm:$0xff]
        %v223 = vlaneseq
        %v224 = vshrl.u32 %v223, 7
        %v225 = vsub.s32 4, %v224
        %v226 = vrot.slane %v173, %v225
        %v227 = vmul.f32 %v226, %v221
        %v228 = vmul.f32 %v226, %v222
        %v229 = vadd.f32 %v218, %v227
        %v230 = vadd.f32 %v219, %v228
        %s231 = scalar_lea.vmem [#allocation5], 80
        %v232 = vld [vmem:[%s231] sm:$0xff]
        %v233 = vld [vmem:[%s231 + $0x8] sm:$0xff]
        %v234 = vlaneseq
        %v235 = vshrl.u32 %v234, 7
        %v236 = vsub.s32 5, %v235
        %v237 = vrot.slane %v173, %v236
        %v238 = vmul.f32 %v237, %v232
        %v239 = vmul.f32 %v237, %v233
        %v240 = vadd.f32 %v229, %v238
        %v241 = vadd.f32 %v230, %v239
        %s242 = scalar_lea.vmem [#allocation5], 96
        %v243 = vld [vmem:[%s242] sm:$0xff]
        %v244 = vld [vmem:[%s242 + $0x8] sm:$0xff]
        %v245 = vlaneseq
        %v246 = vshrl.u32 %v245, 7
        %v247 = vsub.s32 6, %v246
        %v248 = vrot.slane %v173, %v247
        %v249 = vmul.f32 %v248, %v243
        %v250 = vmul.f32 %v248, %v244
        %v251 = vadd.f32 %v240, %v249
        %v252 = vadd.f32 %v241, %v250
        %s253 = scalar_lea.vmem [#allocation5], 112
        %v254 = vld [vmem:[%s253] sm:$0xff]
        %v255 = vld [vmem:[%s253 + $0x8] sm:$0xff]
        %v256 = vlaneseq
        %v257 = vshrl.u32 %v256, 7
        %v258 = vsub.s32 7, %v257
        %v259 = vrot.slane %v173, %v258
        %v260 = vmul.f32 %v259, %v254
        %v261 = vmul.f32 %v259, %v255
        %v262 = vadd.f32 %v251, %v260
        %v263 = vadd.f32 %v252, %v261
        %264 = vadd.xlane.f32.xlu0 %v262
        %v265 = vpop.xlane.xlu0 %264
        %266 = vadd.xlane.f32.xlu0 %v263
        %v267 = vpop.xlane.xlu0 %266
        %v268 = vmul.f32 %v265, 0.015625
        %v269 = vmul.f32 %v267, 0.015625
        %v270 = vmul.f32 %v268, %v268
        %v271 = vmul.f32 %v269, %v269
        %v272 = vadd.f32 %v270, %v271
        %v273 = vrot.slane %v272, 4
        %v274 = vadd.f32 %v272, %v273
        %v275 = vrot.slane %v274, 2
        %v276 = vadd.f32 %v274, %v275
        %v277 = vrot.slane %v276, 1
        %v278 = vadd.f32 %v276, %v277
        %v279 = vrsqrt.pop %v278
        %v280 = vmul.f32 %v278, %v279
        %vm281 = vcmp.eq.f32.partialorder %v278, inf
        %v282 = vsel %vm281, %v278, %v280
        %vm283 = vcmp.eq.f32.partialorder %v278, 0.0
        %v284 = vand.u32 %v278, 2147483648
        %v285 = vsel %vm283, %v284, %v282
        %v286 = vadd.f32 %v278, 1.0
        %v287 = vrcp.pop %v286
        %v288 = vmul.f32 %v285, %v287
        %v289 = vmul.f32 %v268, %v288
        %v290 = vmul.f32 %v269, %v288
        %v291 = vmul.f32 %v262, %v289
        %v292 = vmul.f32 %v263, %v290
        %v293 = vadd.f32 %v291, %v292
        %v294 = vrot.slane %v293, 4
        %v295 = vadd.f32 %v293, %v294
        %v296 = vrot.slane %v295, 2
        %v297 = vadd.f32 %v295, %v296
        %v298 = vrot.slane %v297, 1
        %v299 = vadd.f32 %v297, %v298
        %v300 = vsel %vm176, %v299, -inf
        %301 = vmax.xlane.f32.xlu0 %v300
        %v302 = vpop.xlane.xlu0 %301
        %v303 = vsub.f32 %v299, %v302
        %v304 = vmul.f32 %v303, 1.442695
        %v305 = vpow.pop %v304
        %v306 = vsel %vm176, %v305, 0.0
        %307 = vadd.xlane.f32.xlu0 %v306
        %v308 = vpop.xlane.xlu0 %307
        %v309 = vmul.f32 %v306, %v262
        %v310 = vmul.f32 %v306, %v263
        %311 = vadd.xlane.f32.xlu0 %v309
        %v312 = vpop.xlane.xlu0 %311
        %313 = vadd.xlane.f32.xlu0 %v310
        %v314 = vpop.xlane.xlu0 %313
        %v315 = vrcp.pop %v308
        %v316 = vmul.f32 %v312, %v315
        %v317 = vmul.f32 %v314, %v315
        %v318 = vmul.f32 %v316, %v316
        %v319 = vmul.f32 %v317, %v317
        %v320 = vadd.f32 %v318, %v319
        %v321 = vrot.slane %v320, 4
        %v322 = vadd.f32 %v320, %v321
        %v323 = vrot.slane %v322, 2
        %v324 = vadd.f32 %v322, %v323
        %v325 = vrot.slane %v324, 1
        %v326 = vadd.f32 %v324, %v325
        %v327 = vrsqrt.pop %v326
        %v328 = vmul.f32 %v326, %v327
        %vm329 = vcmp.eq.f32.partialorder %v326, inf
        %v330 = vsel %vm329, %v326, %v328
        %vm331 = vcmp.eq.f32.partialorder %v326, 0.0
        %v332 = vand.u32 %v326, 2147483648
        %v333 = vsel %vm331, %v332, %v330
        %v334 = vadd.f32 %v326, 1.0
        %v335 = vrcp.pop %v334
        %v336 = vmul.f32 %v333, %v335
        %v337 = vmul.f32 %v316, %v336
        %v338 = vmul.f32 %v317, %v336
        %v339 = vmul.f32 %v262, %v337
        %v340 = vmul.f32 %v263, %v338
        %v341 = vadd.f32 %v339, %v340
        %v342 = vrot.slane %v341, 4
        %v343 = vadd.f32 %v341, %v342
        %v344 = vrot.slane %v343, 2
        %v345 = vadd.f32 %v343, %v344
        %v346 = vrot.slane %v345, 1
        %v347 = vadd.f32 %v345, %v346
        %v348 = vadd.f32 %v299, %v347
        %v349 = vsel %vm176, %v348, -inf
        %350 = vmax.xlane.f32.xlu0 %v349
        %v351 = vpop.xlane.xlu0 %350
        %v352 = vsub.f32 %v348, %v351
        %v353 = vmul.f32 %v352, 1.442695
        %v354 = vpow.pop %v353
        %v355 = vsel %vm176, %v354, 0.0
        %356 = vadd.xlane.f32.xlu0 %v355
        %v357 = vpop.xlane.xlu0 %356
        %v358 = vmul.f32 %v355, %v262
        %v359 = vmul.f32 %v355, %v263
        %360 = vadd.xlane.f32.xlu0 %v358
        %v361 = vpop.xlane.xlu0 %360
        %362 = vadd.xlane.f32.xlu0 %v359
        %v363 = vpop.xlane.xlu0 %362
        %v364 = vrcp.pop %v357
        %v365 = vmul.f32 %v361, %v364
        %v366 = vmul.f32 %v363, %v364
        %v367 = vmul.f32 %v365, %v365
        %v368 = vmul.f32 %v366, %v366
        %v369 = vadd.f32 %v367, %v368
        %v370 = vrot.slane %v369, 4
        %v371 = vadd.f32 %v369, %v370
        %v372 = vrot.slane %v371, 2
        %v373 = vadd.f32 %v371, %v372
        %v374 = vrot.slane %v373, 1
        %v375 = vadd.f32 %v373, %v374
        %v376 = vrsqrt.pop %v375
        %v377 = vmul.f32 %v375, %v376
        %vm378 = vcmp.eq.f32.partialorder %v375, inf
        %v379 = vsel %vm378, %v375, %v377
        %vm380 = vcmp.eq.f32.partialorder %v375, 0.0
        %v381 = vand.u32 %v375, 2147483648
        %v382 = vsel %vm380, %v381, %v379
        %v383 = vadd.f32 %v375, 1.0
        %v384 = vrcp.pop %v383
        %v385 = vmul.f32 %v382, %v384
        %v386 = vmul.f32 %v365, %v385
        %v387 = vmul.f32 %v366, %v385
        %s388 = scalar_lea.vmem [#allocation5], 128
        %v389 = vld [vmem:[%s388] sm:$0xff]
        %v390 = vld [vmem:[%s388 + $0x8] sm:$0xff]
        %v391 = vmul.f32 %v182, %v389
        %v392 = vmul.f32 %v182, %v390
        %v393 = vadd.f32 %v391, 0.0
        %v394 = vadd.f32 %v392, 0.0
        %s395 = scalar_lea.vmem [#allocation5], 144
        %v396 = vld [vmem:[%s395] sm:$0xff]
        %v397 = vld [vmem:[%s395 + $0x8] sm:$0xff]
        %v398 = vmul.f32 %v193, %v396
        %v399 = vmul.f32 %v193, %v397
        %v400 = vadd.f32 %v393, %v398
        %v401 = vadd.f32 %v394, %v399
        %s402 = scalar_lea.vmem [#allocation5], 160
        %v403 = vld [vmem:[%s402] sm:$0xff]
        %v404 = vld [vmem:[%s402 + $0x8] sm:$0xff]
        %v405 = vmul.f32 %v204, %v403
        %v406 = vmul.f32 %v204, %v404
        %v407 = vadd.f32 %v400, %v405
        %v408 = vadd.f32 %v401, %v406
        %s409 = scalar_lea.vmem [#allocation5], 176
        %v410 = vld [vmem:[%s409] sm:$0xff]
        %v411 = vld [vmem:[%s409 + $0x8] sm:$0xff]
        %v412 = vmul.f32 %v215, %v410
        %v413 = vmul.f32 %v215, %v411
        %v414 = vadd.f32 %v407, %v412
        %v415 = vadd.f32 %v408, %v413
        %s416 = scalar_lea.vmem [#allocation5], 192
        %v417 = vld [vmem:[%s416] sm:$0xff]
        %v418 = vld [vmem:[%s416 + $0x8] sm:$0xff]
        %v419 = vmul.f32 %v226, %v417
        %v420 = vmul.f32 %v226, %v418
        %v421 = vadd.f32 %v414, %v419
        %v422 = vadd.f32 %v415, %v420
        %s423 = scalar_lea.vmem [#allocation5], 208
        %v424 = vld [vmem:[%s423] sm:$0xff]
        %v425 = vld [vmem:[%s423 + $0x8] sm:$0xff]
        %v426 = vmul.f32 %v237, %v424
        %v427 = vmul.f32 %v237, %v425
        %v428 = vadd.f32 %v421, %v426
        %v429 = vadd.f32 %v422, %v427
        %s430 = scalar_lea.vmem [#allocation5], 224
        %v431 = vld [vmem:[%s430] sm:$0xff]
        %v432 = vld [vmem:[%s430 + $0x8] sm:$0xff]
        %v433 = vmul.f32 %v248, %v431
        %v434 = vmul.f32 %v248, %v432
        %v435 = vadd.f32 %v428, %v433
        %v436 = vadd.f32 %v429, %v434
        %s437 = scalar_lea.vmem [#allocation5], 240
        %v438 = vld [vmem:[%s437] sm:$0xff]
        %v439 = vld [vmem:[%s437 + $0x8] sm:$0xff]
        %v440 = vmul.f32 %v259, %v438
        %v441 = vmul.f32 %v259, %v439
        %v442 = vadd.f32 %v435, %v440
        %v443 = vadd.f32 %v436, %v441
        %444 = vadd.xlane.f32.xlu0 %v442
        %v445 = vpop.xlane.xlu0 %444
        %446 = vadd.xlane.f32.xlu0 %v443
        %v447 = vpop.xlane.xlu0 %446
        %v448 = vmul.f32 %v445, 0.015625
        %v449 = vmul.f32 %v447, 0.015625
        %v450 = vmul.f32 %v448, %v448
        %v451 = vmul.f32 %v449, %v449
        %v452 = vadd.f32 %v450, %v451
        %v453 = vrot.slane %v452, 4
        %v454 = vadd.f32 %v452, %v453
        %v455 = vrot.slane %v454, 2
        %v456 = vadd.f32 %v454, %v455
        %v457 = vrot.slane %v456, 1
        %v458 = vadd.f32 %v456, %v457
        %v459 = vrsqrt.pop %v458
        %v460 = vmul.f32 %v458, %v459
        %vm461 = vcmp.eq.f32.partialorder %v458, inf
        %v462 = vsel %vm461, %v458, %v460
        %vm463 = vcmp.eq.f32.partialorder %v458, 0.0
        %v464 = vand.u32 %v458, 2147483648
        %v465 = vsel %vm463, %v464, %v462
        %v466 = vadd.f32 %v458, 1.0
        %v467 = vrcp.pop %v466
        %v468 = vmul.f32 %v465, %v467
        %v469 = vmul.f32 %v448, %v468
        %v470 = vmul.f32 %v449, %v468
        %v471 = vmul.f32 %v442, %v469
        %v472 = vmul.f32 %v443, %v470
        %v473 = vadd.f32 %v471, %v472
        %v474 = vrot.slane %v473, 4
        %v475 = vadd.f32 %v473, %v474
        %v476 = vrot.slane %v475, 2
        %v477 = vadd.f32 %v475, %v476
        %v478 = vrot.slane %v477, 1
        %v479 = vadd.f32 %v477, %v478
        %v480 = vsel %vm176, %v479, -inf
        %481 = vmax.xlane.f32.xlu0 %v480
        %v482 = vpop.xlane.xlu0 %481
        %v483 = vsub.f32 %v479, %v482
        %v484 = vmul.f32 %v483, 1.442695
        %v485 = vpow.pop %v484
        %v486 = vsel %vm176, %v485, 0.0
        %487 = vadd.xlane.f32.xlu0 %v486
        %v488 = vpop.xlane.xlu0 %487
        %v489 = vmul.f32 %v486, %v442
        %v490 = vmul.f32 %v486, %v443
        %491 = vadd.xlane.f32.xlu0 %v489
        %v492 = vpop.xlane.xlu0 %491
        %493 = vadd.xlane.f32.xlu0 %v490
        %v494 = vpop.xlane.xlu0 %493
        %v495 = vrcp.pop %v488
        %v496 = vmul.f32 %v492, %v495
        %v497 = vmul.f32 %v494, %v495
        %v498 = vmul.f32 %v496, %v496
        %v499 = vmul.f32 %v497, %v497
        %v500 = vadd.f32 %v498, %v499
        %v501 = vrot.slane %v500, 4
        %v502 = vadd.f32 %v500, %v501
        %v503 = vrot.slane %v502, 2
        %v504 = vadd.f32 %v502, %v503
        %v505 = vrot.slane %v504, 1
        %v506 = vadd.f32 %v504, %v505
        %v507 = vrsqrt.pop %v506
        %v508 = vmul.f32 %v506, %v507
        %vm509 = vcmp.eq.f32.partialorder %v506, inf
        %v510 = vsel %vm509, %v506, %v508
        %vm511 = vcmp.eq.f32.partialorder %v506, 0.0
        %v512 = vand.u32 %v506, 2147483648
        %v513 = vsel %vm511, %v512, %v510
        %v514 = vadd.f32 %v506, 1.0
        %v515 = vrcp.pop %v514
        %v516 = vmul.f32 %v513, %v515
        %v517 = vmul.f32 %v496, %v516
        %v518 = vmul.f32 %v497, %v516
        %v519 = vmul.f32 %v442, %v517
        %v520 = vmul.f32 %v443, %v518
        %v521 = vadd.f32 %v519, %v520
        %v522 = vrot.slane %v521, 4
        %v523 = vadd.f32 %v521, %v522
        %v524 = vrot.slane %v523, 2
        %v525 = vadd.f32 %v523, %v524
        %v526 = vrot.slane %v525, 1
        %v527 = vadd.f32 %v525, %v526
        %v528 = vadd.f32 %v479, %v527
        %v529 = vsel %vm176, %v528, -inf
        %530 = vmax.xlane.f32.xlu0 %v529
        %v531 = vpop.xlane.xlu0 %530
        %v532 = vsub.f32 %v528, %v531
        %v533 = vmul.f32 %v532, 1.442695
        %v534 = vpow.pop %v533
        %v535 = vsel %vm176, %v534, 0.0
        %536 = vadd.xlane.f32.xlu0 %v535
        %v537 = vpop.xlane.xlu0 %536
        %v538 = vmul.f32 %v535, %v442
        %v539 = vmul.f32 %v535, %v443
        %540 = vadd.xlane.f32.xlu0 %v538
        %v541 = vpop.xlane.xlu0 %540
        %542 = vadd.xlane.f32.xlu0 %v539
        %v543 = vpop.xlane.xlu0 %542
        %v544 = vrcp.pop %v537
        %v545 = vmul.f32 %v541, %v544
        %v546 = vmul.f32 %v543, %v544
        %v547 = vmul.f32 %v545, %v545
        %v548 = vmul.f32 %v546, %v546
        %v549 = vadd.f32 %v547, %v548
        %v550 = vrot.slane %v549, 4
        %v551 = vadd.f32 %v549, %v550
        %v552 = vrot.slane %v551, 2
        %v553 = vadd.f32 %v551, %v552
        %v554 = vrot.slane %v553, 1
        %v555 = vadd.f32 %v553, %v554
        %v556 = vrsqrt.pop %v555
        %v557 = vmul.f32 %v555, %v556
        %vm558 = vcmp.eq.f32.partialorder %v555, inf
        %v559 = vsel %vm558, %v555, %v557
        %vm560 = vcmp.eq.f32.partialorder %v555, 0.0
        %v561 = vand.u32 %v555, 2147483648
        %v562 = vsel %vm560, %v561, %v559
        %v563 = vadd.f32 %v555, 1.0
        %v564 = vrcp.pop %v563
        %v565 = vmul.f32 %v562, %v564
        %v566 = vmul.f32 %v545, %v565
        %v567 = vmul.f32 %v546, %v565
        %s568 = scalar_lea.vmem [#allocation5], 256
        %v569 = vld [vmem:[%s568] sm:$0xff]
        %v570 = vld [vmem:[%s568 + $0x8] sm:$0xff]
        %v571 = vmul.f32 %v182, %v569
        %v572 = vmul.f32 %v182, %v570
        %v573 = vadd.f32 %v571, 0.0
        %v574 = vadd.f32 %v572, 0.0
        %s575 = scalar_lea.vmem [#allocation5], 272
        %v576 = vld [vmem:[%s575] sm:$0xff]
        %v577 = vld [vmem:[%s575 + $0x8] sm:$0xff]
        %v578 = vmul.f32 %v193, %v576
        %v579 = vmul.f32 %v193, %v577
        %v580 = vadd.f32 %v573, %v578
        %v581 = vadd.f32 %v574, %v579
        %s582 = scalar_lea.vmem [#allocation5], 288
        %v583 = vld [vmem:[%s582] sm:$0xff]
        %v584 = vld [vmem:[%s582 + $0x8] sm:$0xff]
        %v585 = vmul.f32 %v204, %v583
        %v586 = vmul.f32 %v204, %v584
        %v587 = vadd.f32 %v580, %v585
        %v588 = vadd.f32 %v581, %v586
        %s589 = scalar_lea.vmem [#allocation5], 304
        %v590 = vld [vmem:[%s589] sm:$0xff]
        %v591 = vld [vmem:[%s589 + $0x8] sm:$0xff]
        %v592 = vmul.f32 %v215, %v590
        %v593 = vmul.f32 %v215, %v591
        %v594 = vadd.f32 %v587, %v592
        %v595 = vadd.f32 %v588, %v593
        %s596 = scalar_lea.vmem [#allocation5], 320
        %v597 = vld [vmem:[%s596] sm:$0xff]
        %v598 = vld [vmem:[%s596 + $0x8] sm:$0xff]
        %v599 = vmul.f32 %v226, %v597
        %v600 = vmul.f32 %v226, %v598
        %v601 = vadd.f32 %v594, %v599
        %v602 = vadd.f32 %v595, %v600
        %s603 = scalar_lea.vmem [#allocation5], 336
        %v604 = vld [vmem:[%s603] sm:$0xff]
        %v605 = vld [vmem:[%s603 + $0x8] sm:$0xff]
        %v606 = vmul.f32 %v237, %v604
        %v607 = vmul.f32 %v237, %v605
        %v608 = vadd.f32 %v601, %v606
        %v609 = vadd.f32 %v602, %v607
        %s610 = scalar_lea.vmem [#allocation5], 352
        %v611 = vld [vmem:[%s610] sm:$0xff]
        %v612 = vld [vmem:[%s610 + $0x8] sm:$0xff]
        %v613 = vmul.f32 %v248, %v611
        %v614 = vmul.f32 %v248, %v612
        %v615 = vadd.f32 %v608, %v613
        %v616 = vadd.f32 %v609, %v614
        %s617 = scalar_lea.vmem [#allocation5], 368
        %v618 = vld [vmem:[%s617] sm:$0xff]
        %v619 = vld [vmem:[%s617 + $0x8] sm:$0xff]
        %v620 = vmul.f32 %v259, %v618
        %v621 = vmul.f32 %v259, %v619
        %v622 = vadd.f32 %v615, %v620
        %v623 = vadd.f32 %v616, %v621
        %624 = vadd.xlane.f32.xlu0 %v622
        %v625 = vpop.xlane.xlu0 %624
        %626 = vadd.xlane.f32.xlu0 %v623
        %v627 = vpop.xlane.xlu0 %626
        %v628 = vmul.f32 %v625, 0.015625
        %v629 = vmul.f32 %v627, 0.015625
        %v630 = vmul.f32 %v628, %v628
        %v631 = vmul.f32 %v629, %v629
        %v632 = vadd.f32 %v630, %v631
        %v633 = vrot.slane %v632, 4
        %v634 = vadd.f32 %v632, %v633
        %v635 = vrot.slane %v634, 2
        %v636 = vadd.f32 %v634, %v635
        %v637 = vrot.slane %v636, 1
        %v638 = vadd.f32 %v636, %v637
        %v639 = vrsqrt.pop %v638
        %v640 = vmul.f32 %v638, %v639
        %vm641 = vcmp.eq.f32.partialorder %v638, inf
        %v642 = vsel %vm641, %v638, %v640
        %vm643 = vcmp.eq.f32.partialorder %v638, 0.0
        %v644 = vand.u32 %v638, 2147483648
        %v645 = vsel %vm643, %v644, %v642
        %v646 = vadd.f32 %v638, 1.0
        %v647 = vrcp.pop %v646
        %v648 = vmul.f32 %v645, %v647
        %v649 = vmul.f32 %v628, %v648
        %v650 = vmul.f32 %v629, %v648
        %v651 = vmul.f32 %v622, %v649
        %v652 = vmul.f32 %v623, %v650
        %v653 = vadd.f32 %v651, %v652
        %v654 = vrot.slane %v653, 4
        %v655 = vadd.f32 %v653, %v654
        %v656 = vrot.slane %v655, 2
        %v657 = vadd.f32 %v655, %v656
        %v658 = vrot.slane %v657, 1
        %v659 = vadd.f32 %v657, %v658
        %v660 = vsel %vm176, %v659, -inf
        %661 = vmax.xlane.f32.xlu0 %v660
        %v662 = vpop.xlane.xlu0 %661
        %v663 = vsub.f32 %v659, %v662
        %v664 = vmul.f32 %v663, 1.442695
        %v665 = vpow.pop %v664
        %v666 = vsel %vm176, %v665, 0.0
        %667 = vadd.xlane.f32.xlu0 %v666
        %v668 = vpop.xlane.xlu0 %667
        %v669 = vmul.f32 %v666, %v622
        %v670 = vmul.f32 %v666, %v623
        %671 = vadd.xlane.f32.xlu0 %v669
        %v672 = vpop.xlane.xlu0 %671
        %673 = vadd.xlane.f32.xlu0 %v670
        %v674 = vpop.xlane.xlu0 %673
        %v675 = vrcp.pop %v668
        %v676 = vmul.f32 %v672, %v675
        %v677 = vmul.f32 %v674, %v675
        %v678 = vmul.f32 %v676, %v676
        %v679 = vmul.f32 %v677, %v677
        %v680 = vadd.f32 %v678, %v679
        %v681 = vrot.slane %v680, 4
        %v682 = vadd.f32 %v680, %v681
        %v683 = vrot.slane %v682, 2
        %v684 = vadd.f32 %v682, %v683
        %v685 = vrot.slane %v684, 1
        %v686 = vadd.f32 %v684, %v685
        %v687 = vrsqrt.pop %v686
        %v688 = vmul.f32 %v686, %v687
        %vm689 = vcmp.eq.f32.partialorder %v686, inf
        %v690 = vsel %vm689, %v686, %v688
        %vm691 = vcmp.eq.f32.partialorder %v686, 0.0
        %v692 = vand.u32 %v686, 2147483648
        %v693 = vsel %vm691, %v692, %v690
        %v694 = vadd.f32 %v686, 1.0
        %v695 = vrcp.pop %v694
        %v696 = vmul.f32 %v693, %v695
        %v697 = vmul.f32 %v676, %v696
        %v698 = vmul.f32 %v677, %v696
        %v699 = vmul.f32 %v622, %v697
        %v700 = vmul.f32 %v623, %v698
        %v701 = vadd.f32 %v699, %v700
        %v702 = vrot.slane %v701, 4
        %v703 = vadd.f32 %v701, %v702
        %v704 = vrot.slane %v703, 2
        %v705 = vadd.f32 %v703, %v704
        %v706 = vrot.slane %v705, 1
        %v707 = vadd.f32 %v705, %v706
        %v708 = vadd.f32 %v659, %v707
        %v709 = vsel %vm176, %v708, -inf
        %710 = vmax.xlane.f32.xlu0 %v709
        %v711 = vpop.xlane.xlu0 %710
        %v712 = vsub.f32 %v708, %v711
        %v713 = vmul.f32 %v712, 1.442695
        %v714 = vpow.pop %v713
        %v715 = vsel %vm176, %v714, 0.0
        %716 = vadd.xlane.f32.xlu0 %v715
        %v717 = vpop.xlane.xlu0 %716
        %v718 = vmul.f32 %v715, %v622
        %v719 = vmul.f32 %v715, %v623
        %720 = vadd.xlane.f32.xlu0 %v718
        %v721 = vpop.xlane.xlu0 %720
        %722 = vadd.xlane.f32.xlu0 %v719
        %v723 = vpop.xlane.xlu0 %722
        %v724 = vrcp.pop %v717
        %v725 = vmul.f32 %v721, %v724
        %v726 = vmul.f32 %v723, %v724
        %v727 = vmul.f32 %v725, %v725
        %v728 = vmul.f32 %v726, %v726
        %v729 = vadd.f32 %v727, %v728
        %v730 = vrot.slane %v729, 4
        %v731 = vadd.f32 %v729, %v730
        %v732 = vrot.slane %v731, 2
        %v733 = vadd.f32 %v731, %v732
        %v734 = vrot.slane %v733, 1
        %v735 = vadd.f32 %v733, %v734
        %v736 = vrsqrt.pop %v735
        %v737 = vmul.f32 %v735, %v736
        %vm738 = vcmp.eq.f32.partialorder %v735, inf
        %v739 = vsel %vm738, %v735, %v737
        %vm740 = vcmp.eq.f32.partialorder %v735, 0.0
        %v741 = vand.u32 %v735, 2147483648
        %v742 = vsel %vm740, %v741, %v739
        %v743 = vadd.f32 %v735, 1.0
        %v744 = vrcp.pop %v743
        %v745 = vmul.f32 %v742, %v744
        %v746 = vmul.f32 %v725, %v745
        %v747 = vmul.f32 %v726, %v745
        %s748 = scalar_lea.vmem [#allocation5], 384
        %v749 = vld [vmem:[%s748] sm:$0xff]
        %v750 = vld [vmem:[%s748 + $0x8] sm:$0xff]
        %v751 = vmul.f32 %v182, %v749
        %v752 = vmul.f32 %v182, %v750
        %v753 = vadd.f32 %v751, 0.0
        %v754 = vadd.f32 %v752, 0.0
        %s755 = scalar_lea.vmem [#allocation5], 400
        %v756 = vld [vmem:[%s755] sm:$0xff]
        %v757 = vld [vmem:[%s755 + $0x8] sm:$0xff]
        %v758 = vmul.f32 %v193, %v756
        %v759 = vmul.f32 %v193, %v757
        %v760 = vadd.f32 %v753, %v758
        %v761 = vadd.f32 %v754, %v759
        %s762 = scalar_lea.vmem [#allocation5], 416
        %v763 = vld [vmem:[%s762] sm:$0xff]
        %v764 = vld [vmem:[%s762 + $0x8] sm:$0xff]
        %v765 = vmul.f32 %v204, %v763
        %v766 = vmul.f32 %v204, %v764
        %v767 = vadd.f32 %v760, %v765
        %v768 = vadd.f32 %v761, %v766
        %s769 = scalar_lea.vmem [#allocation5], 432
        %v770 = vld [vmem:[%s769] sm:$0xff]
        %v771 = vld [vmem:[%s769 + $0x8] sm:$0xff]
        %v772 = vmul.f32 %v215, %v770
        %v773 = vmul.f32 %v215, %v771
        %v774 = vadd.f32 %v767, %v772
        %v775 = vadd.f32 %v768, %v773
        %s776 = scalar_lea.vmem [#allocation5], 448
        %v777 = vld [vmem:[%s776] sm:$0xff]
        %v778 = vld [vmem:[%s776 + $0x8] sm:$0xff]
        %v779 = vmul.f32 %v226, %v777
        %v780 = vmul.f32 %v226, %v778
        %v781 = vadd.f32 %v774, %v779
        %v782 = vadd.f32 %v775, %v780
        %s783 = scalar_lea.vmem [#allocation5], 464
        %v784 = vld [vmem:[%s783] sm:$0xff]
        %v785 = vld [vmem:[%s783 + $0x8] sm:$0xff]
        %v786 = vmul.f32 %v237, %v784
        %v787 = vmul.f32 %v237, %v785
        %v788 = vadd.f32 %v781, %v786
        %v789 = vadd.f32 %v782, %v787
        %s790 = scalar_lea.vmem [#allocation5], 480
        %v791 = vld [vmem:[%s790] sm:$0xff]
        %v792 = vld [vmem:[%s790 + $0x8] sm:$0xff]
        %v793 = vmul.f32 %v248, %v791
        %v794 = vmul.f32 %v248, %v792
        %v795 = vadd.f32 %v788, %v793
        %v796 = vadd.f32 %v789, %v794
        %s797 = scalar_lea.vmem [#allocation5], 496
        %v798 = vld [vmem:[%s797] sm:$0xff]
        %v799 = vld [vmem:[%s797 + $0x8] sm:$0xff]
        %v800 = vmul.f32 %v259, %v798
        %v801 = vmul.f32 %v259, %v799
        %v802 = vadd.f32 %v795, %v800
        %v803 = vadd.f32 %v796, %v801
        %804 = vadd.xlane.f32.xlu0 %v802
        %v805 = vpop.xlane.xlu0 %804
        %806 = vadd.xlane.f32.xlu0 %v803
        %v807 = vpop.xlane.xlu0 %806
        %v808 = vmul.f32 %v805, 0.015625
        %v809 = vmul.f32 %v807, 0.015625
        %v810 = vmul.f32 %v808, %v808
        %v811 = vmul.f32 %v809, %v809
        %v812 = vadd.f32 %v810, %v811
        %v813 = vrot.slane %v812, 4
        %v814 = vadd.f32 %v812, %v813
        %v815 = vrot.slane %v814, 2
        %v816 = vadd.f32 %v814, %v815
        %v817 = vrot.slane %v816, 1
        %v818 = vadd.f32 %v816, %v817
        %v819 = vrsqrt.pop %v818
        %v820 = vmul.f32 %v818, %v819
        %vm821 = vcmp.eq.f32.partialorder %v818, inf
        %v822 = vsel %vm821, %v818, %v820
        %vm823 = vcmp.eq.f32.partialorder %v818, 0.0
        %v824 = vand.u32 %v818, 2147483648
        %v825 = vsel %vm823, %v824, %v822
        %v826 = vadd.f32 %v818, 1.0
        %v827 = vrcp.pop %v826
        %v828 = vmul.f32 %v825, %v827
        %v829 = vmul.f32 %v808, %v828
        %v830 = vmul.f32 %v809, %v828
        %v831 = vmul.f32 %v802, %v829
        %v832 = vmul.f32 %v803, %v830
        %v833 = vadd.f32 %v831, %v832
        %v834 = vrot.slane %v833, 4
        %v835 = vadd.f32 %v833, %v834
        %v836 = vrot.slane %v835, 2
        %v837 = vadd.f32 %v835, %v836
        %v838 = vrot.slane %v837, 1
        %v839 = vadd.f32 %v837, %v838
        %v840 = vsel %vm176, %v839, -inf
        %841 = vmax.xlane.f32.xlu0 %v840
        %v842 = vpop.xlane.xlu0 %841
        %v843 = vsub.f32 %v839, %v842
        %v844 = vmul.f32 %v843, 1.442695
        %v845 = vpow.pop %v844
        %v846 = vsel %vm176, %v845, 0.0
        %847 = vadd.xlane.f32.xlu0 %v846
        %v848 = vpop.xlane.xlu0 %847
        %v849 = vmul.f32 %v846, %v802
        %v850 = vmul.f32 %v846, %v803
        %851 = vadd.xlane.f32.xlu0 %v849
        %v852 = vpop.xlane.xlu0 %851
        %853 = vadd.xlane.f32.xlu0 %v850
        %v854 = vpop.xlane.xlu0 %853
        %v855 = vrcp.pop %v848
        %v856 = vmul.f32 %v852, %v855
        %v857 = vmul.f32 %v854, %v855
        %v858 = vmul.f32 %v856, %v856
        %v859 = vmul.f32 %v857, %v857
        %v860 = vadd.f32 %v858, %v859
        %v861 = vrot.slane %v860, 4
        %v862 = vadd.f32 %v860, %v861
        %v863 = vrot.slane %v862, 2
        %v864 = vadd.f32 %v862, %v863
        %v865 = vrot.slane %v864, 1
        %v866 = vadd.f32 %v864, %v865
        %v867 = vrsqrt.pop %v866
        %v868 = vmul.f32 %v866, %v867
        %vm869 = vcmp.eq.f32.partialorder %v866, inf
        %v870 = vsel %vm869, %v866, %v868
        %vm871 = vcmp.eq.f32.partialorder %v866, 0.0
        %v872 = vand.u32 %v866, 2147483648
        %v873 = vsel %vm871, %v872, %v870
        %v874 = vadd.f32 %v866, 1.0
        %v875 = vrcp.pop %v874
        %v876 = vmul.f32 %v873, %v875
        %v877 = vmul.f32 %v856, %v876
        %v878 = vmul.f32 %v857, %v876
        %v879 = vmul.f32 %v802, %v877
        %v880 = vmul.f32 %v803, %v878
        %v881 = vadd.f32 %v879, %v880
        %v882 = vrot.slane %v881, 4
        %v883 = vadd.f32 %v881, %v882
        %v884 = vrot.slane %v883, 2
        %v885 = vadd.f32 %v883, %v884
        %v886 = vrot.slane %v885, 1
        %v887 = vadd.f32 %v885, %v886
        %v888 = vadd.f32 %v839, %v887
        %v889 = vsel %vm176, %v888, -inf
        %890 = vmax.xlane.f32.xlu0 %v889
        %v891 = vpop.xlane.xlu0 %890
        %v892 = vsub.f32 %v888, %v891
        %v893 = vmul.f32 %v892, 1.442695
        %v894 = vpow.pop %v893
        %v895 = vsel %vm176, %v894, 0.0
        %896 = vadd.xlane.f32.xlu0 %v895
        %v897 = vpop.xlane.xlu0 %896
        %v898 = vmul.f32 %v895, %v802
        %v899 = vmul.f32 %v895, %v803
        %900 = vadd.xlane.f32.xlu0 %v898
        %v901 = vpop.xlane.xlu0 %900
        %902 = vadd.xlane.f32.xlu0 %v899
        %v903 = vpop.xlane.xlu0 %902
        %v904 = vrcp.pop %v897
        %v905 = vmul.f32 %v901, %v904
        %v906 = vmul.f32 %v903, %v904
        %v907 = vmul.f32 %v905, %v905
        %v908 = vmul.f32 %v906, %v906
        %v909 = vadd.f32 %v907, %v908
        %v910 = vrot.slane %v909, 4
        %v911 = vadd.f32 %v909, %v910
        %v912 = vrot.slane %v911, 2
        %v913 = vadd.f32 %v911, %v912
        %v914 = vrot.slane %v913, 1
        %v915 = vadd.f32 %v913, %v914
        %v916 = vrsqrt.pop %v915
        %v917 = vmul.f32 %v915, %v916
        %vm918 = vcmp.eq.f32.partialorder %v915, inf
        %v919 = vsel %vm918, %v915, %v917
        %vm920 = vcmp.eq.f32.partialorder %v915, 0.0
        %v921 = vand.u32 %v915, 2147483648
        %v922 = vsel %vm920, %v921, %v919
        %v923 = vadd.f32 %v915, 1.0
        %v924 = vrcp.pop %v923
        %v925 = vmul.f32 %v922, %v924
        %v926 = vmul.f32 %v905, %v925
        %v927 = vmul.f32 %v906, %v925
        %v930 = vlaneseq
        %v931 = vshrl.u32 %v930, 7
        %v932 = vsub.s32 %v175, %v931
        %v933 = vrot.slane %v386, %v932
        %v934 = vadd.s32 %v175, 4294967288
        %v935 = vlaneseq
        %v936 = vshrl.u32 %v935, 7
        %v937 = vsub.s32 %v934, %v936
        %v938 = vrot.slane %v387, %v937
        %vm939 = vcmask 130112
        %v940 = vsel %vm939, %v938, %v933
        %v944 = vadd.s32 %v175, 4294967280
        %v945 = vlaneseq
        %v946 = vshrl.u32 %v945, 7
        %v947 = vsub.s32 %v944, %v946
        %v948 = vrot.slane %v566, %v947
        %v949 = vadd.s32 %v175, 4294967272
        %v950 = vlaneseq
        %v951 = vshrl.u32 %v950, 7
        %v952 = vsub.s32 %v949, %v951
        %v953 = vrot.slane %v567, %v952
        %vm954 = vcmask 261312
        %v955 = vsel %vm954, %v953, %v948
        %v959 = vadd.s32 %v175, 4294967264
        %v960 = vlaneseq
        %v961 = vshrl.u32 %v960, 7
        %v962 = vsub.s32 %v959, %v961
        %v963 = vrot.slane %v746, %v962
        %v964 = vadd.s32 %v175, 4294967256
        %v965 = vlaneseq
        %v966 = vshrl.u32 %v965, 7
        %v967 = vsub.s32 %v964, %v966
        %v968 = vrot.slane %v747, %v967
        %vm969 = vcmask 392512
        %v970 = vsel %vm969, %v968, %v963
        %v974 = vadd.s32 %v175, 4294967248
        %v975 = vlaneseq
        %v976 = vshrl.u32 %v975, 7
        %v977 = vsub.s32 %v974, %v976
        %v978 = vrot.slane %v926, %v977
        %v979 = vadd.s32 %v175, 4294967240
        %v980 = vlaneseq
        %v981 = vshrl.u32 %v980, 7
        %v982 = vsub.s32 %v979, %v981
        %v983 = vrot.slane %v927, %v982
        %vm984 = vcmask 523712
        %v985 = vsel %vm984, %v983, %v978
        %vm987 = vcmask 130048
        %v988 = vsel %vm987, %v940, %v955
        %vm989 = vcmask 261120
        %v990 = vsel %vm989, %v988, %v970
        %vm991 = vcmask 392192
        %v992 = vsel %vm991, %v990, %v985
        %vm993 = vcmask 523264
        %v994 = vsel %vm993, %v992, 0.0
        %995 = vst [vmem:[%s172] sm:$0x1] %v994
        %s996 = sand.u32 %s75, 1
        %s997 = scalar_lea.sflag [#allocation4], %s996
        %s998 = sand.u32 %s75, 1
        %s999 = scalar_lea.vmem [#allocation7], %s998
        // Predicated region
        $region37: #{tpu_custom_call.1} parent=27 // pred_check
          %p1000 = pneg %p85
        $region38: #{tpu_custom_call.1} parent=27 // pred_check_branch
          %1002 = sbr.rel (%p1000) target = $region40
        $region39: #{tpu_custom_call.1} parent=27 // pred_region
          %s1004 = ssub.s32 16, 16
          %1005 = vsyncadd %s997, %s1004
          %s1006 = smul.addr %s20, 16
          %s1007 = scalar_lea.hbm %s2, %s1006
          %s1009 = sshll.u32 %s999, 4
          %s1010 = int_to_ptr.vmem [resolvable:$true] %s1009
          %1012 = dma.vmem_to_hbm [thread:$0]  %s1010, 16, %s1007, %s997
        $region40: #{tpu_custom_call.1} parent=27 // pred_fallthru
          _
      $region28: #{tpu_custom_call.1} parent=5 // pred_fallthru
        _
      %p1013 = scmp.le.s32.totalorder 2, %s15
      // Predicated region
      $region41: #{tpu_custom_call.1} parent=5 // pred_check
        %p1014 = pneg %p1013
      $region42: #{tpu_custom_call.1} parent=5 // pred_check_branch
        %1016 = sbr.rel (%p1014) target = $region44
      $region43: #{tpu_custom_call.1} parent=5 // pred_region
        %s1017 = ssub.s32 %s15, 2
        // Predicated region
        $region45: #{tpu_custom_call.1} parent=43 // pred_check
          %p1018 = pneg %p91
        $region46: #{tpu_custom_call.1} parent=43 // pred_check_branch
          %1020 = sbr.rel (%p1018) target = $region48
        $region47: #{tpu_custom_call.1} parent=43 // pred_region
          %s1021 = sand.u32 %s76, 1
          %s1022 = scalar_lea.sflag [#allocation4], %s1021
          %s1023 = sand.u32 %s76, 1
          %s1024 = scalar_lea.vmem [#allocation7], %s1023
          %1025 = dma.done %s1022, 16
        $region48: #{tpu_custom_call.1} parent=43 // pred_fallthru
          _
      $region44: #{tpu_custom_call.1} parent=5 // pred_fallthru
        _
    $region6: #{tpu_custom_call.1} parent=1 // loop_footer
      %s19 = sadd.s32 1, %s15
    $region7: #{tpu_custom_call.1} parent=1 // loop_footer_branch
      %14 = sbr.rel target = $region3
    $region8: #{tpu_custom_call.1} parent=1 // loop_exit
      _
    %1026 = vsyncpa [#allocation3], 1
    %s1027 = scalar_lea.sflag [#allocation3], 1
    %1028 = vsyncpa %s1027, 1
    %1029 = vsyncpa [#allocation6], 1
    %1030 = vsyncpa [#allocation4], 1
    %s1031 = scalar_lea.sflag [#allocation4], 1
    %1032 = vsyncpa %s1031, 1

// kernel: tpu_custom_call.1
$region0: #{tpu_custom_call.1}
  #allocation0 [shape = 'u32[]', space=smem, size = 0x4, offset = 0x4, fixed_abs, tag = 'smem constant byte address 0x4 - core index']
  #allocation1 [shape = 'u32[144,128]{1,0:T(1,128)}', space=vmem, size = 0x12000, scoped, tag = 'internal scratch']
  %s0 = inlined_call_operand.hbm [shape: f32[2,8,128], index: 0, kind: input, shape index: {}]
  %s1 = inlined_call_operand.hbm [shape: f32[4,8,16,128], index: 1, kind: input, shape index: {}]
  %s2 = inlined_call_operand.hbm [shape: f32[2,1,128], index: 2, kind: output, shape index: {}]
  %s3 = sld [smem:[#allocation0]]
  $region49: #{tpu_custom_call.1} parent=0
    _
  %s5 = ssub.s32 1, %s3
  %s6 = scalar_select 0, %s5, %s3
  $region1: #{tpu_custom_call.1} parent=0
    #allocation2 [shape = 'u8[8192]{0}', space=vmem, size = 0x2000, scoped, tag = 'input window, operand 0']
    #allocation3 [shape = 's32[2]{0}', space=sflag, size = 0x8, scoped, tag = 'scoped memory for tpu_custom_call.1']
    #allocation4 [shape = 's32[2]{0}', space=sflag, size = 0x8, scoped, tag = 'scoped memory for tpu_custom_call.1']
    #allocation5 [shape = 'u8[262144]{0}', space=vmem, size = 0x40000, scoped, tag = 'input window, operand 1, single buffered']
    #allocation6 [shape = 's32[1]{0}', space=sflag, size = 0x4, scoped, tag = 'scoped memory for tpu_custom_call.1']
    #allocation7 [shape = 'u8[1024]{0}', space=vmem, size = 0x400, scoped, tag = 'output window, operand 0']
    %7 = vsyncpa [#allocation3], 0
    %s8 = scalar_lea.sflag [#allocation3], 1
    %9 = vsyncpa %s8, 0
    %10 = vsyncpa [#allocation6], 0
    %11 = vsyncpa [#allocation4], 0
    %s12 = scalar_lea.sflag [#allocation4], 1
    %13 = vsyncpa %s12, 0
    loop: start=0, step=1, limit=4
    $region2: #{tpu_custom_call.1} parent=1 // loop_pre_header
      _
    $region3: #{tpu_custom_call.1} parent=1 // loop_header
      %s15 = sphi 0, %s19
      %p16 = scmp.ge.s32.totalorder %s15, 4
      %s25 = sphi 0, %s27
      %s28 = sphi 0, %s25
      %s29 = sphi 0, %s28
      %s45 = sphi 0, %s29
      %s49 = sphi 0, %s49
      %s51 = sphi 0, %s49
      %s52 = sphi 0, %s51
      %s66 = sphi 0, %s52
      %s72 = sphi 0, %s74
      %s75 = sphi 0, %s72
      %s76 = sphi 0, %s75
      %s92 = sphi 0, %s76
    $region4: #{tpu_custom_call.1} parent=1 // loop_header_branch
      %18 = sbr.rel (%p16) target = $region8
    $region5: #{tpu_custom_call.1} parent=1 // loop_body
      %s20 = ssub.s32 %s15, 1
      %s21 = ssub.s32 %s15, 2
      %s22 = sadd.s32 %s15, 1
      %s23 = ssub.s32 %s15, %s22
      %p24 = scmp.eq.s32.totalorder %s23, 0
      %s26 = sadd.s32 %s25, 1
      %s27 = scalar_select %p24, %s25, %s26
      %p30 = pneg %p24
      %p31 = scmp.eq.s32.totalorder %s15, 1
      %p32 = por %p30, %p31
      %p33 = scmp.ne.s32.totalorder %s25, %s28
      %p34 = scmp.eq.s32.totalorder %s15, 0
      %p35 = por %p33, %p34
      %p36 = scmp.ne.s32.totalorder %s25, %s28
      %p37 = scmp.eq.s32.totalorder %s20, 1
      %p38 = por %p36, %p37
      %p39 = scmp.ne.s32.totalorder %s28, %s29
      %p40 = scmp.eq.s32.totalorder %s20, 0
      %p41 = por %p39, %p40
      %p42 = scmp.ne.s32.totalorder %s28, %s29
      %p43 = scmp.eq.s32.totalorder %s21, 1
      %p44 = por %p42, %p43
      %p46 = scmp.ne.s32.totalorder %s29, %s45
      %p47 = scmp.eq.s32.totalorder %s21, 0
      %p48 = por %p46, %p47
      %s50 = sadd.s32 %s49, 1
      %p53 = scmp.eq.s32.totalorder %s15, 1
      %p54 = scmp.ne.s32.totalorder %s49, %s51
      %p55 = scmp.eq.s32.totalorder %s15, 0
      %p56 = por %p54, %p55
      %p57 = scmp.ne.s32.totalorder %s49, %s51
      %p58 = scmp.eq.s32.totalorder %s20, 1
      %p59 = por %p57, %p58
      %p60 = scmp.ne.s32.totalorder %s51, %s52
      %p61 = scmp.eq.s32.totalorder %s20, 0
      %p62 = por %p60, %p61
      %p63 = scmp.ne.s32.totalorder %s51, %s52
      %p64 = scmp.eq.s32.totalorder %s21, 1
      %p65 = por %p63, %p64
      %p67 = scmp.ne.s32.totalorder %s52, %s66
      %p68 = scmp.eq.s32.totalorder %s21, 0
      %p69 = por %p67, %p68
      %s70 = ssub.s32 %s15, %s22
      %p71 = scmp.eq.s32.totalorder %s70, 0
      %s73 = sadd.s32 %s72, 1
      %s74 = scalar_select %p71, %s72, %s73
      %p77 = pneg %p71
      %p78 = scmp.eq.s32.totalorder %s15, 1
      %p79 = por %p77, %p78
      %p80 = scmp.ne.s32.totalorder %s72, %s75
      %p81 = scmp.eq.s32.totalorder %s15, 0
      %p82 = por %p80, %p81
      %p83 = scmp.ne.s32.totalorder %s72, %s75
      %p84 = scmp.eq.s32.totalorder %s20, 1
      %p85 = por %p83, %p84
      %p86 = scmp.ne.s32.totalorder %s75, %s76
      %p87 = scmp.eq.s32.totalorder %s20, 0
      %p88 = por %p86, %p87
      %p89 = scmp.ne.s32.totalorder %s75, %s76
      %p90 = scmp.eq.s32.totalorder %s21, 1
      %p91 = por %p89, %p90
      %p93 = scmp.ne.s32.totalorder %s76, %s92
      %p94 = scmp.eq.s32.totalorder %s21, 0
      %p95 = por %p93, %p94
      %p96 = scmp.le.s32.totalorder 1, %s15
      %p97 = scmp.lt.s32.totalorder %s15, 3
      %p98 = pnand %p96, %p97
      %p99 = pneg %p98
      // Predicated region
      $region9: #{tpu_custom_call.1} parent=5 // pred_check
        _
      $region10: #{tpu_custom_call.1} parent=5 // pred_check_branch
        %101 = sbr.rel (%p98) target = $region12
      $region11: #{tpu_custom_call.1} parent=5 // pred_region
        %s102 = ssub.s32 %s15, 1
        // Predicated region
        $region13: #{tpu_custom_call.1} parent=11 // pred_check
          %p103 = pneg %p62
        $region14: #{tpu_custom_call.1} parent=11 // pred_check_branch
          %105 = sbr.rel (%p103) target = $region16
        $region15: #{tpu_custom_call.1} parent=11 // pred_region
          %s107 = ssub.s32 8192, 8192
          %108 = vsyncadd [#allocation6], %s107
          %s109 = sshll.u32 [#allocation5], 4
          %s110 = int_to_ptr.vmem [resolvable:$true] %s109
          %115 = dma.hbm_to_vmem [thread:$0]  %s1, 8192, %s110, [#allocation6], 128, 128, 8
        $region16: #{tpu_custom_call.1} parent=11 // pred_fallthru
          _
      $region12: #{tpu_custom_call.1} parent=5 // pred_fallthru
        _
      %p116 = scmp.lt.s32.totalorder %s15, 2
      // Predicated region
      $region17: #{tpu_custom_call.1} parent=5 // pred_check
        %p117 = pneg %p116
      $region18: #{tpu_custom_call.1} parent=5 // pred_check_branch
        %119 = sbr.rel (%p117) target = $region20
      $region19: #{tpu_custom_call.1} parent=5 // pred_region
        // Predicated region
        $region21: #{tpu_custom_call.1} parent=19 // pred_check
          %p120 = pneg %p35
        $region22: #{tpu_custom_call.1} parent=19 // pred_check_branch
          %122 = sbr.rel (%p120) target = $region24
        $region23: #{tpu_custom_call.1} parent=19 // pred_region
          %s123 = sand.u32 %s25, 1
          %s124 = scalar_lea.sflag [#allocation3], %s123
          %s125 = sand.u32 %s25, 1
          %s126 = smul.addr %s125, 8
          %s127 = scalar_lea.vmem [#allocation2], %s126
          %s129 = ssub.s32 128, 128
          %130 = vsyncadd %s124, %s129
          %s131 = smul.addr %s15, 128
          %s132 = scalar_lea.hbm %s0, %s131
          %s134 = sshll.u32 %s127, 4
          %s135 = int_to_ptr.vmem [resolvable:$true] %s134
          %137 = dma.hbm_to_vmem [thread:$0]  %s132, 128, %s135, %s124
        $region24: #{tpu_custom_call.1} parent=19 // pred_fallthru
          _
      $region20: #{tpu_custom_call.1} parent=5 // pred_fallthru
        _
      %p138 = scmp.le.s32.totalorder 1, %s15
      %p139 = scmp.lt.s32.totalorder %s15, 3
      %p140 = pnand %p138, %p139
      %p141 = pneg %p140
      // Predicated region
      $region25: #{tpu_custom_call.1} parent=5 // pred_check
        _
      $region26: #{tpu_custom_call.1} parent=5 // pred_check_branch
        %143 = sbr.rel (%p140) target = $region28
      $region27: #{tpu_custom_call.1} parent=5 // pred_region
        %s144 = ssub.s32 %s15, 1
        %s145 = sand.u32 %s28, 1
        %s146 = scalar_lea.sflag [#allocation3], %s145
        %s147 = sand.u32 %s28, 1
        %s148 = smul.addr %s147, 8
        %s149 = scalar_lea.vmem [#allocation2], %s148
        // Predicated region
        $region29: #{tpu_custom_call.1} parent=27 // pred_check
          %p150 = pneg %p41
        $region30: #{tpu_custom_call.1} parent=27 // pred_check_branch
          %152 = sbr.rel (%p150) target = $region32
        $region31: #{tpu_custom_call.1} parent=27 // pred_region
          %153 = dma.done %s146, 128
        $region32: #{tpu_custom_call.1} parent=27 // pred_fallthru
          _
        // Predicated region
        $region33: #{tpu_custom_call.1} parent=27 // pred_check
          %p154 = pneg %p62
        $region34: #{tpu_custom_call.1} parent=27 // pred_check_branch
          %156 = sbr.rel (%p154) target = $region36
        $region35: #{tpu_custom_call.1} parent=27 // pred_region
          %157 = dma.done [#allocation6], 8192
        $region36: #{tpu_custom_call.1} parent=27 // pred_fallthru
          _
        %s158 = sand.u32 %s28, 1
        %s159 = scalar_lea.sflag [#allocation3], %s158
        %s160 = sand.u32 %s28, 1
        %s161 = smul.addr %s160, 8
        %s162 = scalar_lea.vmem [#allocation2], %s161
        %p163 = pneg %p41
        %p164 = pneg %p38
        %p165 = pneg %p62
        %p166 = pneg %p59
        %p167 = pneg %p88
        %p168 = pneg %p85
        %s169 = sand.u32 %s75, 1
        %s170 = scalar_lea.sflag [#allocation4], %s169
        %s171 = sand.u32 %s75, 1
        %s172 = scalar_lea.vmem [#allocation7], %s171
        %v173 = vld [vmem:[%s149] sm:$0xff]
        %v174 = vlaneseq
        %v175 = vand.u32 %v174, 127
        %vm176 = vcmp.lt.s32.totalorder %v175, 64
        %v177 = vld [vmem:[#allocation5] sm:$0xff]
        %v178 = vld [vmem:[#allocation5 + $0x8] sm:$0xff]
        %v179 = vlaneseq
        %v180 = vshrl.u32 %v179, 7
        %v181 = vsub.s32 0, %v180
        %v182 = vrot.slane %v173, %v181
        %v183 = vmul.f32 %v182, %v177
        %v184 = vmul.f32 %v182, %v178
        %v185 = vadd.f32 %v183, 0.0
        %v186 = vadd.f32 %v184, 0.0
        %s187 = scalar_lea.vmem [#allocation5], 16
        %v188 = vld [vmem:[%s187] sm:$0xff]
        %v189 = vld [vmem:[%s187 + $0x8] sm:$0xff]
        %v190 = vlaneseq
        %v191 = vshrl.u32 %v190, 7
        %v192 = vsub.s32 1, %v191
        %v193 = vrot.slane %v173, %v192
        %v194 = vmul.f32 %v193, %v188
        %v195 = vmul.f32 %v193, %v189
        %v196 = vadd.f32 %v185, %v194
        %v197 = vadd.f32 %v186, %v195
        %s198 = scalar_lea.vmem [#allocation5], 32
        %v199 = vld [vmem:[%s198] sm:$0xff]
        %v200 = vld [vmem:[%s198 + $0x8] sm:$0xff]
        %v201 = vlaneseq
        %v202 = vshrl.u32 %v201, 7
        %v203 = vsub.s32 2, %v202
        %v204 = vrot.slane %v173, %v203
        %v205 = vmul.f32 %v204, %v199
        %v206 = vmul.f32 %v204, %v200
        %v207 = vadd.f32 %v196, %v205
        %v208 = vadd.f32 %v197, %v206
        %s209 = scalar_lea.vmem [#allocation5], 48
        %v210 = vld [vmem:[%s209] sm:$0xff]
        %v211 = vld [vmem:[%s209 + $0x8] sm:$0xff]
        %v212 = vlaneseq
        %v213 = vshrl.u32 %v212, 7
        %v214 = vsub.s32 3, %v213
        %v215 = vrot.slane %v173, %v214
        %v216 = vmul.f32 %v215, %v210
        %v217 = vmul.f32 %v215, %v211
        %v218 = vadd.f32 %v207, %v216
        %v219 = vadd.f32 %v208, %v217
        %s220 = scalar_lea.vmem [#allocation5], 64
        %v221 = vld [vmem:[%s220] sm:$0xff]
        %v222 = vld [vmem:[%s220 + $0x8] sm:$0xff]
        %v223 = vlaneseq
        %v224 = vshrl.u32 %v223, 7
        %v225 = vsub.s32 4, %v224
        %v226 = vrot.slane %v173, %v225
        %v227 = vmul.f32 %v226, %v221
        %v228 = vmul.f32 %v226, %v222
        %v229 = vadd.f32 %v218, %v227
        %v230 = vadd.f32 %v219, %v228
        %s231 = scalar_lea.vmem [#allocation5], 80
        %v232 = vld [vmem:[%s231] sm:$0xff]
        %v233 = vld [vmem:[%s231 + $0x8] sm:$0xff]
        %v234 = vlaneseq
        %v235 = vshrl.u32 %v234, 7
        %v236 = vsub.s32 5, %v235
        %v237 = vrot.slane %v173, %v236
        %v238 = vmul.f32 %v237, %v232
        %v239 = vmul.f32 %v237, %v233
        %v240 = vadd.f32 %v229, %v238
        %v241 = vadd.f32 %v230, %v239
        %s242 = scalar_lea.vmem [#allocation5], 96
        %v243 = vld [vmem:[%s242] sm:$0xff]
        %v244 = vld [vmem:[%s242 + $0x8] sm:$0xff]
        %v245 = vlaneseq
        %v246 = vshrl.u32 %v245, 7
        %v247 = vsub.s32 6, %v246
        %v248 = vrot.slane %v173, %v247
        %v249 = vmul.f32 %v248, %v243
        %v250 = vmul.f32 %v248, %v244
        %v251 = vadd.f32 %v240, %v249
        %v252 = vadd.f32 %v241, %v250
        %s253 = scalar_lea.vmem [#allocation5], 112
        %v254 = vld [vmem:[%s253] sm:$0xff]
        %v255 = vld [vmem:[%s253 + $0x8] sm:$0xff]
        %v256 = vlaneseq
        %v257 = vshrl.u32 %v256, 7
        %v258 = vsub.s32 7, %v257
        %v259 = vrot.slane %v173, %v258
        %v260 = vmul.f32 %v259, %v254
        %v261 = vmul.f32 %v259, %v255
        %v262 = vadd.f32 %v251, %v260
        %v263 = vadd.f32 %v252, %v261
        %264 = vadd.xlane.f32.xlu0 %v262
        %v265 = vpop.xlane.xlu0 %264
        %266 = vadd.xlane.f32.xlu0 %v263
        %v267 = vpop.xlane.xlu0 %266
        %v268 = vmul.f32 %v265, 0.015625
        %v269 = vmul.f32 %v267, 0.015625
        %v270 = vmul.f32 %v268, %v268
        %v271 = vmul.f32 %v269, %v269
        %v272 = vadd.f32 %v270, %v271
        %v273 = vrot.slane %v272, 4
        %v274 = vadd.f32 %v272, %v273
        %v275 = vrot.slane %v274, 2
        %v276 = vadd.f32 %v274, %v275
        %v277 = vrot.slane %v276, 1
        %v278 = vadd.f32 %v276, %v277
        %v279 = vrsqrt.pop %v278
        %v280 = vmul.f32 %v278, %v279
        %vm281 = vcmp.eq.f32.partialorder %v278, inf
        %v282 = vsel %vm281, %v278, %v280
        %vm283 = vcmp.eq.f32.partialorder %v278, 0.0
        %v284 = vand.u32 %v278, 2147483648
        %v285 = vsel %vm283, %v284, %v282
        %v286 = vadd.f32 %v278, 1.0
        %v287 = vrcp.pop %v286
        %v288 = vmul.f32 %v285, %v287
        %v289 = vmul.f32 %v268, %v288
        %v290 = vmul.f32 %v269, %v288
        %v291 = vmul.f32 %v262, %v289
        %v292 = vmul.f32 %v263, %v290
        %v293 = vadd.f32 %v291, %v292
        %v294 = vrot.slane %v293, 4
        %v295 = vadd.f32 %v293, %v294
        %v296 = vrot.slane %v295, 2
        %v297 = vadd.f32 %v295, %v296
        %v298 = vrot.slane %v297, 1
        %v299 = vadd.f32 %v297, %v298
        %v300 = vsel %vm176, %v299, -inf
        %301 = vmax.xlane.f32.xlu0 %v300
        %v302 = vpop.xlane.xlu0 %301
        %v303 = vsub.f32 %v299, %v302
        %v304 = vmul.f32 %v303, 1.442695
        %v305 = vpow.pop %v304
        %v306 = vsel %vm176, %v305, 0.0
        %307 = vadd.xlane.f32.xlu0 %v306
        %v308 = vpop.xlane.xlu0 %307
        %v309 = vmul.f32 %v306, %v262
        %v310 = vmul.f32 %v306, %v263
        %311 = vadd.xlane.f32.xlu0 %v309
        %v312 = vpop.xlane.xlu0 %311
        %313 = vadd.xlane.f32.xlu0 %v310
        %v314 = vpop.xlane.xlu0 %313
        %v315 = vrcp.pop %v308
        %v316 = vmul.f32 %v312, %v315
        %v317 = vmul.f32 %v314, %v315
        %v318 = vmul.f32 %v316, %v316
        %v319 = vmul.f32 %v317, %v317
        %v320 = vadd.f32 %v318, %v319
        %v321 = vrot.slane %v320, 4
        %v322 = vadd.f32 %v320, %v321
        %v323 = vrot.slane %v322, 2
        %v324 = vadd.f32 %v322, %v323
        %v325 = vrot.slane %v324, 1
        %v326 = vadd.f32 %v324, %v325
        %v327 = vrsqrt.pop %v326
        %v328 = vmul.f32 %v326, %v327
        %vm329 = vcmp.eq.f32.partialorder %v326, inf
        %v330 = vsel %vm329, %v326, %v328
        %vm331 = vcmp.eq.f32.partialorder %v326, 0.0
        %v332 = vand.u32 %v326, 2147483648
        %v333 = vsel %vm331, %v332, %v330
        %v334 = vadd.f32 %v326, 1.0
        %v335 = vrcp.pop %v334
        %v336 = vmul.f32 %v333, %v335
        %v337 = vmul.f32 %v316, %v336
        %v338 = vmul.f32 %v317, %v336
        %v339 = vmul.f32 %v262, %v337
        %v340 = vmul.f32 %v263, %v338
        %v341 = vadd.f32 %v339, %v340
        %v342 = vrot.slane %v341, 4
        %v343 = vadd.f32 %v341, %v342
        %v344 = vrot.slane %v343, 2
        %v345 = vadd.f32 %v343, %v344
        %v346 = vrot.slane %v345, 1
        %v347 = vadd.f32 %v345, %v346
        %v348 = vadd.f32 %v299, %v347
        %v349 = vsel %vm176, %v348, -inf
        %350 = vmax.xlane.f32.xlu0 %v349
        %v351 = vpop.xlane.xlu0 %350
        %v352 = vsub.f32 %v348, %v351
        %v353 = vmul.f32 %v352, 1.442695
        %v354 = vpow.pop %v353
        %v355 = vsel %vm176, %v354, 0.0
        %356 = vadd.xlane.f32.xlu0 %v355
        %v357 = vpop.xlane.xlu0 %356
        %v358 = vmul.f32 %v355, %v262
        %v359 = vmul.f32 %v355, %v263
        %360 = vadd.xlane.f32.xlu0 %v358
        %v361 = vpop.xlane.xlu0 %360
        %362 = vadd.xlane.f32.xlu0 %v359
        %v363 = vpop.xlane.xlu0 %362
        %v364 = vrcp.pop %v357
        %v365 = vmul.f32 %v361, %v364
        %v366 = vmul.f32 %v363, %v364
        %v367 = vmul.f32 %v365, %v365
        %v368 = vmul.f32 %v366, %v366
        %v369 = vadd.f32 %v367, %v368
        %v370 = vrot.slane %v369, 4
        %v371 = vadd.f32 %v369, %v370
        %v372 = vrot.slane %v371, 2
        %v373 = vadd.f32 %v371, %v372
        %v374 = vrot.slane %v373, 1
        %v375 = vadd.f32 %v373, %v374
        %v376 = vrsqrt.pop %v375
        %v377 = vmul.f32 %v375, %v376
        %vm378 = vcmp.eq.f32.partialorder %v375, inf
        %v379 = vsel %vm378, %v375, %v377
        %vm380 = vcmp.eq.f32.partialorder %v375, 0.0
        %v381 = vand.u32 %v375, 2147483648
        %v382 = vsel %vm380, %v381, %v379
        %v383 = vadd.f32 %v375, 1.0
        %v384 = vrcp.pop %v383
        %v385 = vmul.f32 %v382, %v384
        %v386 = vmul.f32 %v365, %v385
        %v387 = vmul.f32 %v366, %v385
        %s388 = scalar_lea.vmem [#allocation5], 128
        %v389 = vld [vmem:[%s388] sm:$0xff]
        %v390 = vld [vmem:[%s388 + $0x8] sm:$0xff]
        %v391 = vmul.f32 %v182, %v389
        %v392 = vmul.f32 %v182, %v390
        %v393 = vadd.f32 %v391, 0.0
        %v394 = vadd.f32 %v392, 0.0
        %s395 = scalar_lea.vmem [#allocation5], 144
        %v396 = vld [vmem:[%s395] sm:$0xff]
        %v397 = vld [vmem:[%s395 + $0x8] sm:$0xff]
        %v398 = vmul.f32 %v193, %v396
        %v399 = vmul.f32 %v193, %v397
        %v400 = vadd.f32 %v393, %v398
        %v401 = vadd.f32 %v394, %v399
        %s402 = scalar_lea.vmem [#allocation5], 160
        %v403 = vld [vmem:[%s402] sm:$0xff]
        %v404 = vld [vmem:[%s402 + $0x8] sm:$0xff]
        %v405 = vmul.f32 %v204, %v403
        %v406 = vmul.f32 %v204, %v404
        %v407 = vadd.f32 %v400, %v405
        %v408 = vadd.f32 %v401, %v406
        %s409 = scalar_lea.vmem [#allocation5], 176
        %v410 = vld [vmem:[%s409] sm:$0xff]
        %v411 = vld [vmem:[%s409 + $0x8] sm:$0xff]
        %v412 = vmul.f32 %v215, %v410
        %v413 = vmul.f32 %v215, %v411
        %v414 = vadd.f32 %v407, %v412
        %v415 = vadd.f32 %v408, %v413
        %s416 = scalar_lea.vmem [#allocation5], 192
        %v417 = vld [vmem:[%s416] sm:$0xff]
        %v418 = vld [vmem:[%s416 + $0x8] sm:$0xff]
        %v419 = vmul.f32 %v226, %v417
        %v420 = vmul.f32 %v226, %v418
        %v421 = vadd.f32 %v414, %v419
        %v422 = vadd.f32 %v415, %v420
        %s423 = scalar_lea.vmem [#allocation5], 208
        %v424 = vld [vmem:[%s423] sm:$0xff]
        %v425 = vld [vmem:[%s423 + $0x8] sm:$0xff]
        %v426 = vmul.f32 %v237, %v424
        %v427 = vmul.f32 %v237, %v425
        %v428 = vadd.f32 %v421, %v426
        %v429 = vadd.f32 %v422, %v427
        %s430 = scalar_lea.vmem [#allocation5], 224
        %v431 = vld [vmem:[%s430] sm:$0xff]
        %v432 = vld [vmem:[%s430 + $0x8] sm:$0xff]
        %v433 = vmul.f32 %v248, %v431
        %v434 = vmul.f32 %v248, %v432
        %v435 = vadd.f32 %v428, %v433
        %v436 = vadd.f32 %v429, %v434
        %s437 = scalar_lea.vmem [#allocation5], 240
        %v438 = vld [vmem:[%s437] sm:$0xff]
        %v439 = vld [vmem:[%s437 + $0x8] sm:$0xff]
        %v440 = vmul.f32 %v259, %v438
        %v441 = vmul.f32 %v259, %v439
        %v442 = vadd.f32 %v435, %v440
        %v443 = vadd.f32 %v436, %v441
        %444 = vadd.xlane.f32.xlu0 %v442
        %v445 = vpop.xlane.xlu0 %444
        %446 = vadd.xlane.f32.xlu0 %v443
        %v447 = vpop.xlane.xlu0 %446
        %v448 = vmul.f32 %v445, 0.015625
        %v449 = vmul.f32 %v447, 0.015625
        %v450 = vmul.f32 %v448, %v448
        %v451 = vmul.f32 %v449, %v449
        %v452 = vadd.f32 %v450, %v451
        %v453 = vrot.slane %v452, 4
        %v454 = vadd.f32 %v452, %v453
        %v455 = vrot.slane %v454, 2
        %v456 = vadd.f32 %v454, %v455
        %v457 = vrot.slane %v456, 1
        %v458 = vadd.f32 %v456, %v457
        %v459 = vrsqrt.pop %v458
        %v460 = vmul.f32 %v458, %v459
        %vm461 = vcmp.eq.f32.partialorder %v458, inf
        %v462 = vsel %vm461, %v458, %v460
        %vm463 = vcmp.eq.f32.partialorder %v458, 0.0
        %v464 = vand.u32 %v458, 2147483648
        %v465 = vsel %vm463, %v464, %v462
        %v466 = vadd.f32 %v458, 1.0
        %v467 = vrcp.pop %v466
        %v468 = vmul.f32 %v465, %v467
        %v469 = vmul.f32 %v448, %v468
        %v470 = vmul.f32 %v449, %v468
        %v471 = vmul.f32 %v442, %v469
        %v472 = vmul.f32 %v443, %v470
        %v473 = vadd.f32 %v471, %v472
        %v474 = vrot.slane %v473, 4
        %v475 = vadd.f32 %v473, %v474
        %v476 = vrot.slane %v475, 2
        %v477 = vadd.f32 %v475, %v476
        %v478 = vrot.slane %v477, 1
        %v479 = vadd.f32 %v477, %v478
        %v480 = vsel %vm176, %v479, -inf
        %481 = vmax.xlane.f32.xlu0 %v480
        %v482 = vpop.xlane.xlu0 %481
        %v483 = vsub.f32 %v479, %v482
        %v484 = vmul.f32 %v483, 1.442695
        %v485 = vpow.pop %v484
        %v486 = vsel %vm176, %v485, 0.0
        %487 = vadd.xlane.f32.xlu0 %v486
        %v488 = vpop.xlane.xlu0 %487
        %v489 = vmul.f32 %v486, %v442
        %v490 = vmul.f32 %v486, %v443
        %491 = vadd.xlane.f32.xlu0 %v489
        %v492 = vpop.xlane.xlu0 %491
        %493 = vadd.xlane.f32.xlu0 %v490
        %v494 = vpop.xlane.xlu0 %493
        %v495 = vrcp.pop %v488
        %v496 = vmul.f32 %v492, %v495
        %v497 = vmul.f32 %v494, %v495
        %v498 = vmul.f32 %v496, %v496
        %v499 = vmul.f32 %v497, %v497
        %v500 = vadd.f32 %v498, %v499
        %v501 = vrot.slane %v500, 4
        %v502 = vadd.f32 %v500, %v501
        %v503 = vrot.slane %v502, 2
        %v504 = vadd.f32 %v502, %v503
        %v505 = vrot.slane %v504, 1
        %v506 = vadd.f32 %v504, %v505
        %v507 = vrsqrt.pop %v506
        %v508 = vmul.f32 %v506, %v507
        %vm509 = vcmp.eq.f32.partialorder %v506, inf
        %v510 = vsel %vm509, %v506, %v508
        %vm511 = vcmp.eq.f32.partialorder %v506, 0.0
        %v512 = vand.u32 %v506, 2147483648
        %v513 = vsel %vm511, %v512, %v510
        %v514 = vadd.f32 %v506, 1.0
        %v515 = vrcp.pop %v514
        %v516 = vmul.f32 %v513, %v515
        %v517 = vmul.f32 %v496, %v516
        %v518 = vmul.f32 %v497, %v516
        %v519 = vmul.f32 %v442, %v517
        %v520 = vmul.f32 %v443, %v518
        %v521 = vadd.f32 %v519, %v520
        %v522 = vrot.slane %v521, 4
        %v523 = vadd.f32 %v521, %v522
        %v524 = vrot.slane %v523, 2
        %v525 = vadd.f32 %v523, %v524
        %v526 = vrot.slane %v525, 1
        %v527 = vadd.f32 %v525, %v526
        %v528 = vadd.f32 %v479, %v527
        %v529 = vsel %vm176, %v528, -inf
        %530 = vmax.xlane.f32.xlu0 %v529
        %v531 = vpop.xlane.xlu0 %530
        %v532 = vsub.f32 %v528, %v531
        %v533 = vmul.f32 %v532, 1.442695
        %v534 = vpow.pop %v533
        %v535 = vsel %vm176, %v534, 0.0
        %536 = vadd.xlane.f32.xlu0 %v535
        %v537 = vpop.xlane.xlu0 %536
        %v538 = vmul.f32 %v535, %v442
        %v539 = vmul.f32 %v535, %v443
        %540 = vadd.xlane.f32.xlu0 %v538
        %v541 = vpop.xlane.xlu0 %540
        %542 = vadd.xlane.f32.xlu0 %v539
        %v543 = vpop.xlane.xlu0 %542
        %v544 = vrcp.pop %v537
        %v545 = vmul.f32 %v541, %v544
        %v546 = vmul.f32 %v543, %v544
        %v547 = vmul.f32 %v545, %v545
        %v548 = vmul.f32 %v546, %v546
        %v549 = vadd.f32 %v547, %v548
        %v550 = vrot.slane %v549, 4
        %v551 = vadd.f32 %v549, %v550
        %v552 = vrot.slane %v551, 2
        %v553 = vadd.f32 %v551, %v552
        %v554 = vrot.slane %v553, 1
        %v555 = vadd.f32 %v553, %v554
        %v556 = vrsqrt.pop %v555
        %v557 = vmul.f32 %v555, %v556
        %vm558 = vcmp.eq.f32.partialorder %v555, inf
        %v559 = vsel %vm558, %v555, %v557
        %vm560 = vcmp.eq.f32.partialorder %v555, 0.0
        %v561 = vand.u32 %v555, 2147483648
        %v562 = vsel %vm560, %v561, %v559
        %v563 = vadd.f32 %v555, 1.0
        %v564 = vrcp.pop %v563
        %v565 = vmul.f32 %v562, %v564
        %v566 = vmul.f32 %v545, %v565
        %v567 = vmul.f32 %v546, %v565
        %s568 = scalar_lea.vmem [#allocation5], 256
        %v569 = vld [vmem:[%s568] sm:$0xff]
        %v570 = vld [vmem:[%s568 + $0x8] sm:$0xff]
        %v571 = vmul.f32 %v182, %v569
        %v572 = vmul.f32 %v182, %v570
        %v573 = vadd.f32 %v571, 0.0
        %v574 = vadd.f32 %v572, 0.0
        %s575 = scalar_lea.vmem [#allocation5], 272
        %v576 = vld [vmem:[%s575] sm:$0xff]
        %v577 = vld [vmem:[%s575 + $0x8] sm:$0xff]
        %v578 = vmul.f32 %v193, %v576
        %v579 = vmul.f32 %v193, %v577
        %v580 = vadd.f32 %v573, %v578
        %v581 = vadd.f32 %v574, %v579
        %s582 = scalar_lea.vmem [#allocation5], 288
        %v583 = vld [vmem:[%s582] sm:$0xff]
        %v584 = vld [vmem:[%s582 + $0x8] sm:$0xff]
        %v585 = vmul.f32 %v204, %v583
        %v586 = vmul.f32 %v204, %v584
        %v587 = vadd.f32 %v580, %v585
        %v588 = vadd.f32 %v581, %v586
        %s589 = scalar_lea.vmem [#allocation5], 304
        %v590 = vld [vmem:[%s589] sm:$0xff]
        %v591 = vld [vmem:[%s589 + $0x8] sm:$0xff]
        %v592 = vmul.f32 %v215, %v590
        %v593 = vmul.f32 %v215, %v591
        %v594 = vadd.f32 %v587, %v592
        %v595 = vadd.f32 %v588, %v593
        %s596 = scalar_lea.vmem [#allocation5], 320
        %v597 = vld [vmem:[%s596] sm:$0xff]
        %v598 = vld [vmem:[%s596 + $0x8] sm:$0xff]
        %v599 = vmul.f32 %v226, %v597
        %v600 = vmul.f32 %v226, %v598
        %v601 = vadd.f32 %v594, %v599
        %v602 = vadd.f32 %v595, %v600
        %s603 = scalar_lea.vmem [#allocation5], 336
        %v604 = vld [vmem:[%s603] sm:$0xff]
        %v605 = vld [vmem:[%s603 + $0x8] sm:$0xff]
        %v606 = vmul.f32 %v237, %v604
        %v607 = vmul.f32 %v237, %v605
        %v608 = vadd.f32 %v601, %v606
        %v609 = vadd.f32 %v602, %v607
        %s610 = scalar_lea.vmem [#allocation5], 352
        %v611 = vld [vmem:[%s610] sm:$0xff]
        %v612 = vld [vmem:[%s610 + $0x8] sm:$0xff]
        %v613 = vmul.f32 %v248, %v611
        %v614 = vmul.f32 %v248, %v612
        %v615 = vadd.f32 %v608, %v613
        %v616 = vadd.f32 %v609, %v614
        %s617 = scalar_lea.vmem [#allocation5], 368
        %v618 = vld [vmem:[%s617] sm:$0xff]
        %v619 = vld [vmem:[%s617 + $0x8] sm:$0xff]
        %v620 = vmul.f32 %v259, %v618
        %v621 = vmul.f32 %v259, %v619
        %v622 = vadd.f32 %v615, %v620
        %v623 = vadd.f32 %v616, %v621
        %624 = vadd.xlane.f32.xlu0 %v622
        %v625 = vpop.xlane.xlu0 %624
        %626 = vadd.xlane.f32.xlu0 %v623
        %v627 = vpop.xlane.xlu0 %626
        %v628 = vmul.f32 %v625, 0.015625
        %v629 = vmul.f32 %v627, 0.015625
        %v630 = vmul.f32 %v628, %v628
        %v631 = vmul.f32 %v629, %v629
        %v632 = vadd.f32 %v630, %v631
        %v633 = vrot.slane %v632, 4
        %v634 = vadd.f32 %v632, %v633
        %v635 = vrot.slane %v634, 2
        %v636 = vadd.f32 %v634, %v635
        %v637 = vrot.slane %v636, 1
        %v638 = vadd.f32 %v636, %v637
        %v639 = vrsqrt.pop %v638
        %v640 = vmul.f32 %v638, %v639
        %vm641 = vcmp.eq.f32.partialorder %v638, inf
        %v642 = vsel %vm641, %v638, %v640
        %vm643 = vcmp.eq.f32.partialorder %v638, 0.0
        %v644 = vand.u32 %v638, 2147483648
        %v645 = vsel %vm643, %v644, %v642
        %v646 = vadd.f32 %v638, 1.0
        %v647 = vrcp.pop %v646
        %v648 = vmul.f32 %v645, %v647
        %v649 = vmul.f32 %v628, %v648
        %v650 = vmul.f32 %v629, %v648
        %v651 = vmul.f32 %v622, %v649
        %v652 = vmul.f32 %v623, %v650
        %v653 = vadd.f32 %v651, %v652
        %v654 = vrot.slane %v653, 4
        %v655 = vadd.f32 %v653, %v654
        %v656 = vrot.slane %v655, 2
        %v657 = vadd.f32 %v655, %v656
        %v658 = vrot.slane %v657, 1
        %v659 = vadd.f32 %v657, %v658
        %v660 = vsel %vm176, %v659, -inf
        %661 = vmax.xlane.f32.xlu0 %v660
        %v662 = vpop.xlane.xlu0 %661
        %v663 = vsub.f32 %v659, %v662
        %v664 = vmul.f32 %v663, 1.442695
        %v665 = vpow.pop %v664
        %v666 = vsel %vm176, %v665, 0.0
        %667 = vadd.xlane.f32.xlu0 %v666
        %v668 = vpop.xlane.xlu0 %667
        %v669 = vmul.f32 %v666, %v622
        %v670 = vmul.f32 %v666, %v623
        %671 = vadd.xlane.f32.xlu0 %v669
        %v672 = vpop.xlane.xlu0 %671
        %673 = vadd.xlane.f32.xlu0 %v670
        %v674 = vpop.xlane.xlu0 %673
        %v675 = vrcp.pop %v668
        %v676 = vmul.f32 %v672, %v675
        %v677 = vmul.f32 %v674, %v675
        %v678 = vmul.f32 %v676, %v676
        %v679 = vmul.f32 %v677, %v677
        %v680 = vadd.f32 %v678, %v679
        %v681 = vrot.slane %v680, 4
        %v682 = vadd.f32 %v680, %v681
        %v683 = vrot.slane %v682, 2
        %v684 = vadd.f32 %v682, %v683
        %v685 = vrot.slane %v684, 1
        %v686 = vadd.f32 %v684, %v685
        %v687 = vrsqrt.pop %v686
        %v688 = vmul.f32 %v686, %v687
        %vm689 = vcmp.eq.f32.partialorder %v686, inf
        %v690 = vsel %vm689, %v686, %v688
        %vm691 = vcmp.eq.f32.partialorder %v686, 0.0
        %v692 = vand.u32 %v686, 2147483648
        %v693 = vsel %vm691, %v692, %v690
        %v694 = vadd.f32 %v686, 1.0
        %v695 = vrcp.pop %v694
        %v696 = vmul.f32 %v693, %v695
        %v697 = vmul.f32 %v676, %v696
        %v698 = vmul.f32 %v677, %v696
        %v699 = vmul.f32 %v622, %v697
        %v700 = vmul.f32 %v623, %v698
        %v701 = vadd.f32 %v699, %v700
        %v702 = vrot.slane %v701, 4
        %v703 = vadd.f32 %v701, %v702
        %v704 = vrot.slane %v703, 2
        %v705 = vadd.f32 %v703, %v704
        %v706 = vrot.slane %v705, 1
        %v707 = vadd.f32 %v705, %v706
        %v708 = vadd.f32 %v659, %v707
        %v709 = vsel %vm176, %v708, -inf
        %710 = vmax.xlane.f32.xlu0 %v709
        %v711 = vpop.xlane.xlu0 %710
        %v712 = vsub.f32 %v708, %v711
        %v713 = vmul.f32 %v712, 1.442695
        %v714 = vpow.pop %v713
        %v715 = vsel %vm176, %v714, 0.0
        %716 = vadd.xlane.f32.xlu0 %v715
        %v717 = vpop.xlane.xlu0 %716
        %v718 = vmul.f32 %v715, %v622
        %v719 = vmul.f32 %v715, %v623
        %720 = vadd.xlane.f32.xlu0 %v718
        %v721 = vpop.xlane.xlu0 %720
        %722 = vadd.xlane.f32.xlu0 %v719
        %v723 = vpop.xlane.xlu0 %722
        %v724 = vrcp.pop %v717
        %v725 = vmul.f32 %v721, %v724
        %v726 = vmul.f32 %v723, %v724
        %v727 = vmul.f32 %v725, %v725
        %v728 = vmul.f32 %v726, %v726
        %v729 = vadd.f32 %v727, %v728
        %v730 = vrot.slane %v729, 4
        %v731 = vadd.f32 %v729, %v730
        %v732 = vrot.slane %v731, 2
        %v733 = vadd.f32 %v731, %v732
        %v734 = vrot.slane %v733, 1
        %v735 = vadd.f32 %v733, %v734
        %v736 = vrsqrt.pop %v735
        %v737 = vmul.f32 %v735, %v736
        %vm738 = vcmp.eq.f32.partialorder %v735, inf
        %v739 = vsel %vm738, %v735, %v737
        %vm740 = vcmp.eq.f32.partialorder %v735, 0.0
        %v741 = vand.u32 %v735, 2147483648
        %v742 = vsel %vm740, %v741, %v739
        %v743 = vadd.f32 %v735, 1.0
        %v744 = vrcp.pop %v743
        %v745 = vmul.f32 %v742, %v744
        %v746 = vmul.f32 %v725, %v745
        %v747 = vmul.f32 %v726, %v745
        %s748 = scalar_lea.vmem [#allocation5], 384
        %v749 = vld [vmem:[%s748] sm:$0xff]
        %v750 = vld [vmem:[%s748 + $0x8] sm:$0xff]
        %v751 = vmul.f32 %v182, %v749
        %v752 = vmul.f32 %v182, %v750
        %v753 = vadd.f32 %v751, 0.0
        %v754 = vadd.f32 %v752, 0.0
        %s755 = scalar_lea.vmem [#allocation5], 400
        %v756 = vld [vmem:[%s755] sm:$0xff]
        %v757 = vld [vmem:[%s755 + $0x8] sm:$0xff]
        %v758 = vmul.f32 %v193, %v756
        %v759 = vmul.f32 %v193, %v757
        %v760 = vadd.f32 %v753, %v758
        %v761 = vadd.f32 %v754, %v759
        %s762 = scalar_lea.vmem [#allocation5], 416
        %v763 = vld [vmem:[%s762] sm:$0xff]
        %v764 = vld [vmem:[%s762 + $0x8] sm:$0xff]
        %v765 = vmul.f32 %v204, %v763
        %v766 = vmul.f32 %v204, %v764
        %v767 = vadd.f32 %v760, %v765
        %v768 = vadd.f32 %v761, %v766
        %s769 = scalar_lea.vmem [#allocation5], 432
        %v770 = vld [vmem:[%s769] sm:$0xff]
        %v771 = vld [vmem:[%s769 + $0x8] sm:$0xff]
        %v772 = vmul.f32 %v215, %v770
        %v773 = vmul.f32 %v215, %v771
        %v774 = vadd.f32 %v767, %v772
        %v775 = vadd.f32 %v768, %v773
        %s776 = scalar_lea.vmem [#allocation5], 448
        %v777 = vld [vmem:[%s776] sm:$0xff]
        %v778 = vld [vmem:[%s776 + $0x8] sm:$0xff]
        %v779 = vmul.f32 %v226, %v777
        %v780 = vmul.f32 %v226, %v778
        %v781 = vadd.f32 %v774, %v779
        %v782 = vadd.f32 %v775, %v780
        %s783 = scalar_lea.vmem [#allocation5], 464
        %v784 = vld [vmem:[%s783] sm:$0xff]
        %v785 = vld [vmem:[%s783 + $0x8] sm:$0xff]
        %v786 = vmul.f32 %v237, %v784
        %v787 = vmul.f32 %v237, %v785
        %v788 = vadd.f32 %v781, %v786
        %v789 = vadd.f32 %v782, %v787
        %s790 = scalar_lea.vmem [#allocation5], 480
        %v791 = vld [vmem:[%s790] sm:$0xff]
        %v792 = vld [vmem:[%s790 + $0x8] sm:$0xff]
        %v793 = vmul.f32 %v248, %v791
        %v794 = vmul.f32 %v248, %v792
        %v795 = vadd.f32 %v788, %v793
        %v796 = vadd.f32 %v789, %v794
        %s797 = scalar_lea.vmem [#allocation5], 496
        %v798 = vld [vmem:[%s797] sm:$0xff]
        %v799 = vld [vmem:[%s797 + $0x8] sm:$0xff]
        %v800 = vmul.f32 %v259, %v798
        %v801 = vmul.f32 %v259, %v799
        %v802 = vadd.f32 %v795, %v800
        %v803 = vadd.f32 %v796, %v801
        %804 = vadd.xlane.f32.xlu0 %v802
        %v805 = vpop.xlane.xlu0 %804
        %806 = vadd.xlane.f32.xlu0 %v803
        %v807 = vpop.xlane.xlu0 %806
        %v808 = vmul.f32 %v805, 0.015625
        %v809 = vmul.f32 %v807, 0.015625
        %v810 = vmul.f32 %v808, %v808
        %v811 = vmul.f32 %v809, %v809
        %v812 = vadd.f32 %v810, %v811
        %v813 = vrot.slane %v812, 4
        %v814 = vadd.f32 %v812, %v813
        %v815 = vrot.slane %v814, 2
        %v816 = vadd.f32 %v814, %v815
        %v817 = vrot.slane %v816, 1
        %v818 = vadd.f32 %v816, %v817
        %v819 = vrsqrt.pop %v818
        %v820 = vmul.f32 %v818, %v819
        %vm821 = vcmp.eq.f32.partialorder %v818, inf
        %v822 = vsel %vm821, %v818, %v820
        %vm823 = vcmp.eq.f32.partialorder %v818, 0.0
        %v824 = vand.u32 %v818, 2147483648
        %v825 = vsel %vm823, %v824, %v822
        %v826 = vadd.f32 %v818, 1.0
        %v827 = vrcp.pop %v826
        %v828 = vmul.f32 %v825, %v827
        %v829 = vmul.f32 %v808, %v828
        %v830 = vmul.f32 %v809, %v828
        %v831 = vmul.f32 %v802, %v829
        %v832 = vmul.f32 %v803, %v830
        %v833 = vadd.f32 %v831, %v832
        %v834 = vrot.slane %v833, 4
        %v835 = vadd.f32 %v833, %v834
        %v836 = vrot.slane %v835, 2
        %v837 = vadd.f32 %v835, %v836
        %v838 = vrot.slane %v837, 1
        %v839 = vadd.f32 %v837, %v838
        %v840 = vsel %vm176, %v839, -inf
        %841 = vmax.xlane.f32.xlu0 %v840
        %v842 = vpop.xlane.xlu0 %841
        %v843 = vsub.f32 %v839, %v842
        %v844 = vmul.f32 %v843, 1.442695
        %v845 = vpow.pop %v844
        %v846 = vsel %vm176, %v845, 0.0
        %847 = vadd.xlane.f32.xlu0 %v846
        %v848 = vpop.xlane.xlu0 %847
        %v849 = vmul.f32 %v846, %v802
        %v850 = vmul.f32 %v846, %v803
        %851 = vadd.xlane.f32.xlu0 %v849
        %v852 = vpop.xlane.xlu0 %851
        %853 = vadd.xlane.f32.xlu0 %v850
        %v854 = vpop.xlane.xlu0 %853
        %v855 = vrcp.pop %v848
        %v856 = vmul.f32 %v852, %v855
        %v857 = vmul.f32 %v854, %v855
        %v858 = vmul.f32 %v856, %v856
        %v859 = vmul.f32 %v857, %v857
        %v860 = vadd.f32 %v858, %v859
        %v861 = vrot.slane %v860, 4
        %v862 = vadd.f32 %v860, %v861
        %v863 = vrot.slane %v862, 2
        %v864 = vadd.f32 %v862, %v863
        %v865 = vrot.slane %v864, 1
        %v866 = vadd.f32 %v864, %v865
        %v867 = vrsqrt.pop %v866
        %v868 = vmul.f32 %v866, %v867
        %vm869 = vcmp.eq.f32.partialorder %v866, inf
        %v870 = vsel %vm869, %v866, %v868
        %vm871 = vcmp.eq.f32.partialorder %v866, 0.0
        %v872 = vand.u32 %v866, 2147483648
        %v873 = vsel %vm871, %v872, %v870
        %v874 = vadd.f32 %v866, 1.0
        %v875 = vrcp.pop %v874
        %v876 = vmul.f32 %v873, %v875
        %v877 = vmul.f32 %v856, %v876
        %v878 = vmul.f32 %v857, %v876
        %v879 = vmul.f32 %v802, %v877
        %v880 = vmul.f32 %v803, %v878
        %v881 = vadd.f32 %v879, %v880
        %v882 = vrot.slane %v881, 4
        %v883 = vadd.f32 %v881, %v882
        %v884 = vrot.slane %v883, 2
        %v885 = vadd.f32 %v883, %v884
        %v886 = vrot.slane %v885, 1
        %v887 = vadd.f32 %v885, %v886
        %v888 = vadd.f32 %v839, %v887
        %v889 = vsel %vm176, %v888, -inf
        %890 = vmax.xlane.f32.xlu0 %v889
        %v891 = vpop.xlane.xlu0 %890
        %v892 = vsub.f32 %v888, %v891
        %v893 = vmul.f32 %v892, 1.442695
        %v894 = vpow.pop %v893
        %v895 = vsel %vm176, %v894, 0.0
        %896 = vadd.xlane.f32.xlu0 %v895
        %v897 = vpop.xlane.xlu0 %896
        %v898 = vmul.f32 %v895, %v802
        %v899 = vmul.f32 %v895, %v803
        %900 = vadd.xlane.f32.xlu0 %v898
        %v901 = vpop.xlane.xlu0 %900
        %902 = vadd.xlane.f32.xlu0 %v899
        %v903 = vpop.xlane.xlu0 %902
        %v904 = vrcp.pop %v897
        %v905 = vmul.f32 %v901, %v904
        %v906 = vmul.f32 %v903, %v904
        %v907 = vmul.f32 %v905, %v905
        %v908 = vmul.f32 %v906, %v906
        %v909 = vadd.f32 %v907, %v908
        %v910 = vrot.slane %v909, 4
        %v911 = vadd.f32 %v909, %v910
        %v912 = vrot.slane %v911, 2
        %v913 = vadd.f32 %v911, %v912
        %v914 = vrot.slane %v913, 1
        %v915 = vadd.f32 %v913, %v914
        %v916 = vrsqrt.pop %v915
        %v917 = vmul.f32 %v915, %v916
        %vm918 = vcmp.eq.f32.partialorder %v915, inf
        %v919 = vsel %vm918, %v915, %v917
        %vm920 = vcmp.eq.f32.partialorder %v915, 0.0
        %v921 = vand.u32 %v915, 2147483648
        %v922 = vsel %vm920, %v921, %v919
        %v923 = vadd.f32 %v915, 1.0
        %v924 = vrcp.pop %v923
        %v925 = vmul.f32 %v922, %v924
        %v926 = vmul.f32 %v905, %v925
        %v927 = vmul.f32 %v906, %v925
        %v930 = vlaneseq
        %v931 = vshrl.u32 %v930, 7
        %v932 = vsub.s32 %v175, %v931
        %v933 = vrot.slane %v386, %v932
        %v934 = vadd.s32 %v175, 4294967288
        %v935 = vlaneseq
        %v936 = vshrl.u32 %v935, 7
        %v937 = vsub.s32 %v934, %v936
        %v938 = vrot.slane %v387, %v937
        %vm939 = vcmask 130112
        %v940 = vsel %vm939, %v938, %v933
        %v944 = vadd.s32 %v175, 4294967280
        %v945 = vlaneseq
        %v946 = vshrl.u32 %v945, 7
        %v947 = vsub.s32 %v944, %v946
        %v948 = vrot.slane %v566, %v947
        %v949 = vadd.s32 %v175, 4294967272
        %v950 = vlaneseq
        %v951 = vshrl.u32 %v950, 7
        %v952 = vsub.s32 %v949, %v951
        %v953 = vrot.slane %v567, %v952
        %vm954 = vcmask 261312
        %v955 = vsel %vm954, %v953, %v948
        %v959 = vadd.s32 %v175, 4294967264
        %v960 = vlaneseq
        %v961 = vshrl.u32 %v960, 7
        %v962 = vsub.s32 %v959, %v961
        %v963 = vrot.slane %v746, %v962
        %v964 = vadd.s32 %v175, 4294967256
        %v965 = vlaneseq
        %v966 = vshrl.u32 %v965, 7
        %v967 = vsub.s32 %v964, %v966
        %v968 = vrot.slane %v747, %v967
        %vm969 = vcmask 392512
        %v970 = vsel %vm969, %v968, %v963
        %v974 = vadd.s32 %v175, 4294967248
        %v975 = vlaneseq
        %v976 = vshrl.u32 %v975, 7
        %v977 = vsub.s32 %v974, %v976
        %v978 = vrot.slane %v926, %v977
        %v979 = vadd.s32 %v175, 4294967240
        %v980 = vlaneseq
        %v981 = vshrl.u32 %v980, 7
        %v982 = vsub.s32 %v979, %v981
        %v983 = vrot.slane %v927, %v982
        %vm984 = vcmask 523712
        %v985 = vsel %vm984, %v983, %v978
        %vm987 = vcmask 130048
        %v988 = vsel %vm987, %v940, %v955
        %vm989 = vcmask 261120
        %v990 = vsel %vm989, %v988, %v970
        %vm991 = vcmask 392192
        %v992 = vsel %vm991, %v990, %v985
        %vm993 = vcmask 523264
        %v994 = vsel %vm993, %v992, 0.0
        %995 = vst [vmem:[%s172] sm:$0x1] %v994
        %s996 = sand.u32 %s75, 1
        %s997 = scalar_lea.sflag [#allocation4], %s996
        %s998 = sand.u32 %s75, 1
        %s999 = scalar_lea.vmem [#allocation7], %s998
        // Predicated region
        $region37: #{tpu_custom_call.1} parent=27 // pred_check
          %p1000 = pneg %p85
        $region38: #{tpu_custom_call.1} parent=27 // pred_check_branch
          %1002 = sbr.rel (%p1000) target = $region40
        $region39: #{tpu_custom_call.1} parent=27 // pred_region
          %s1004 = ssub.s32 16, 16
          %1005 = vsyncadd %s997, %s1004
          %s1006 = smul.addr %s20, 16
          %s1007 = scalar_lea.hbm %s2, %s1006
          %s1009 = sshll.u32 %s999, 4
          %s1010 = int_to_ptr.vmem [resolvable:$true] %s1009
          %1012 = dma.vmem_to_hbm [thread:$0]  %s1010, 16, %s1007, %s997
        $region40: #{tpu_custom_call.1} parent=27 // pred_fallthru
          _
      $region28: #{tpu_custom_call.1} parent=5 // pred_fallthru
        _
      %p1013 = scmp.le.s32.totalorder 2, %s15
      // Predicated region
      $region41: #{tpu_custom_call.1} parent=5 // pred_check
        %p1014 = pneg %p1013
      $region42: #{tpu_custom_call.1} parent=5 // pred_check_branch
        %1016 = sbr.rel (%p1014) target = $region44
      $region43: #{tpu_custom_call.1} parent=5 // pred_region
        %s1017 = ssub.s32 %s15, 2
        // Predicated region
        $region45: #{tpu_custom_call.1} parent=43 // pred_check
          %p1018 = pneg %p91
        $region46: #{tpu_custom_call.1} parent=43 // pred_check_branch
          %1020 = sbr.rel (%p1018) target = $region48
        $region47: #{tpu_custom_call.1} parent=43 // pred_region
          %s1021 = sand.u32 %s76, 1
          %s1022 = scalar_lea.sflag [#allocation4], %s1021
          %s1023 = sand.u32 %s76, 1
          %s1024 = scalar_lea.vmem [#allocation7], %s1023
          %1025 = dma.done %s1022, 16
        $region48: #{tpu_custom_call.1} parent=43 // pred_fallthru
          _
      $region44: #{tpu_custom_call.1} parent=5 // pred_fallthru
        _
    $region6: #{tpu_custom_call.1} parent=1 // loop_footer
      %s19 = sadd.s32 1, %s15
    $region7: #{tpu_custom_call.1} parent=1 // loop_footer_branch
      %14 = sbr.rel target = $region3
    $region8: #{tpu_custom_call.1} parent=1 // loop_exit
      _
    %1026 = vsyncpa [#allocation3], 1
    %s1027 = scalar_lea.sflag [#allocation3], 1
    %1028 = vsyncpa %s1027, 1
    %1029 = vsyncpa [#allocation6], 1
    %1030 = vsyncpa [#allocation4], 1
    %s1031 = scalar_lea.sflag [#allocation4], 1
    %1032 = vsyncpa %s1031, 1

</llo_original>
